<compile_context>
chip_gen: v5e
topology: v5e:2x2
jax: 0.10.0
libtpu: 0.0.40
codegen_flags: <defaults>
</compile_context>

<pallas_src>
import jax
import jax.numpy as jnp
import numpy as np
from jax.experimental import pallas as pl
from jax.experimental.pallas import tpu as pltpu


# ---------------------------------------------------------------------------
# small helpers
# ---------------------------------------------------------------------------
def _choose_tile(dim, desired):
    """Largest tile <= desired that divides dim exactly (so no undefined
    partial-block data is ever accumulated) and is (8,128)-friendly."""
    if dim <= desired:
        return dim
    for t in (desired, 1024, 768, 512, 384, 256, 128):
        if t <= desired and dim % t == 0:
            return t
    return dim  # fall back to a full-extent (untiled) block — always legal


def _vmem_limit(footprint_bytes):
    """Per-call VMEM request: actual per-step footprint + pipelining/compiler
    headroom, clamped well below the 64 MiB/TC physical VMEM of v7x."""
    return int(min(max(footprint_bytes + (8 << 20), 16 << 20), 48 << 20))


# ---------------------------------------------------------------------------
# Fused encoder:  z = adj @ (X @ W)       grid = (N/tm, N/tk)
# ---------------------------------------------------------------------------
def _encoder_kernel(x_hbm, w_ref, adj_ref, z_ref, xw_ref, acc_ref, xbuf_ref):
    i = pl.program_id(0)
    k = pl.program_id(1)
    tk = xbuf_ref.shape[0]
    off = pl.multiple_of(k * tk, tk)

    # First row pass only: stage the k-th row slab of X from HBM and fill the
    # resident xw = X @ W cache one tk-row slab at a time.
    @pl.when(i == 0)
    def _():
        pltpu.sync_copy(x_hbm.at[pl.ds(off, tk), :], xbuf_ref)
        xw_blk = jnp.dot(xbuf_ref[...], w_ref[...],
                         preferred_element_type=jnp.float32)
        xw_ref[pl.ds(off, tk), :] = xw_blk.astype(xw_ref.dtype)

    @pl.when(k == 0)
    def _():
        acc_ref[...] = jnp.zeros_like(acc_ref)

    acc_ref[...] += jnp.dot(adj_ref[...], xw_ref[pl.ds(off, tk), :],
                            preferred_element_type=jnp.float32)

    @pl.when(k == pl.num_programs(1) - 1)
    def _():
        z_ref[...] = acc_ref[...].astype(z_ref.dtype)


def _fused_encoder(X, W, adj, *, tm=512, tk=512):
    N, F = X.shape
    Fw, D = W.shape
    assert Fw == F and adj.shape == (N, N)
    dtype = X.dtype
    it = jnp.dtype(dtype).itemsize

    tm = _choose_tile(N, tm)
    tk = _choose_tile(N, tk)
    grid = (N // tm, N // tk)

    footprint = (2 * tm * tk * it      # adj tiles (double buffered)
                 + 2 * F * D * it      # resident W
                 + 2 * tm * D * it     # z output tile
                 + N * D * it          # xw cache
                 + tm * D * 4          # f32 accumulator
                 + tk * F * it)        # X staging buffer
    cost = pl.CostEstimate(
        flops=2 * N * F * D + 2 * N * N * D,
        transcendentals=0,
        bytes_accessed=int((N * F + F * D + N * N + N * D) * it))

    return pl.pallas_call(
        _encoder_kernel,
        out_shape=jax.ShapeDtypeStruct((N, D), dtype),
        grid_spec=pltpu.PrefetchScalarGridSpec(
            num_scalar_prefetch=0,
            grid=grid,
            in_specs=[pl.BlockSpec(memory_space=pl.ANY),             # X in HBM
                      pl.BlockSpec((F, D), lambda i, k: (0, 0)),     # W resident
                      pl.BlockSpec((tm, tk), lambda i, k: (i, k))],  # adj tiles
            out_specs=pl.BlockSpec((tm, D), lambda i, k: (i, 0)),
            scratch_shapes=[pltpu.VMEM((N, D), dtype),          # xw cache
                            pltpu.VMEM((tm, D), jnp.float32),   # accumulator
                            pltpu.VMEM((tk, F), dtype)]),       # X staging
        compiler_params=pltpu.CompilerParams(
            # xw cache is filled on the i == 0 pass and VMEM scratch is
            # per-TensorCore, so the row axis must stay sequential.
            dimension_semantics=("arbitrary", "arbitrary"),
            vmem_limit_bytes=_vmem_limit(footprint)),
        cost_estimate=cost,
    )(X, W, adj)


# ---------------------------------------------------------------------------
# Pairwise decoder:  out[i, j] = sigmoid(z_i . z_j)
# z is [N, D]; zt = z.T is the lane-dense [D, N] j-side operand, kept fully
# resident in VMEM when it fits so it is DMA'd exactly once.
# ---------------------------------------------------------------------------
def _decode_kernel(z_ref, zt_ref, o_ref):
    logits = jnp.dot(z_ref[...], zt_ref[...],
                     preferred_element_type=jnp.float32)
    # sigmoid on the f32 accumulator; cast only on the final (bf16) store
    o_ref[...] = jax.nn.sigmoid(logits).astype(o_ref.dtype)


def _pairwise_decode(z, *, tm=512, tn=512, out_dtype=jnp.bfloat16,
                     resident_budget=8 << 20):
    N, D = z.shape
    it = jnp.dtype(z.dtype).itemsize
    oit = jnp.dtype(out_dtype).itemsize

    tm = _choose_tile(N, tm)
    if N // tm < 2 and tm > 128:          # keep >=2 parallel row blocks (v7x: 2 TCs)
        tm = _choose_tile(N, max(128, tm // 2))
    tn = _choose_tile(N, tn)

    zt = z.T                              # [D, N] lane-dense (layout plumbing)

    cost = pl.CostEstimate(
        flops=2 * N * N * D,
        transcendentals=N * N,            # sigmoid -> exp on the EUP
        bytes_accessed=int(2 * N * D * it + N * N * oit))

    resident = (N * D * it <= resident_budget) and N <= 4096
    if resident:
        grid = (N // tm,)
        in_specs = [pl.BlockSpec((tm, D), lambda i: (i, 0)),
                    pl.BlockSpec((D, N), lambda i: (0, 0))]   # zt resident
        out_specs = pl.BlockSpec((tm, N), lambda i: (i, 0))   # lane-dense rows
        dims = ("parallel",)
        footprint = 2 * tm * D * it + D * N * it + 2 * tm * N * oit + tm * N * 4
    else:
        grid = (N // tm, N // tn)
        in_specs = [pl.BlockSpec((tm, D), lambda i, j: (i, 0)),
                    pl.BlockSpec((D, tn), lambda i, j: (0, j))]
        out_specs = pl.BlockSpec((tm, tn), lambda i, j: (i, j))
        dims = ("parallel", "parallel")
        footprint = (2 * tm * D * it + 2 * D * tn * it
                     + 2 * tm * tn * oit + tm * tn * 4)

    return pl.pallas_call(
        _decode_kernel,
        out_shape=jax.ShapeDtypeStruct((N, N), out_dtype),
        grid_spec=pltpu.PrefetchScalarGridSpec(
            num_scalar_prefetch=0,
            grid=grid,
            in_specs=in_specs,
            out_specs=out_specs),
        compiler_params=pltpu.CompilerParams(
            dimension_semantics=dims,
            vmem_limit_bytes=_vmem_limit(footprint)),
        cost_estimate=cost,
    )(z, zt)


# ---------------------------------------------------------------------------
# LGAE forward
# ---------------------------------------------------------------------------
def lgae_forward(X, adj, weight, *, matmul_dtype=jnp.bfloat16,
                 out_dtype=jnp.bfloat16, enc_tm=512, enc_tk=512,
                 dec_tm=512, dec_tn=512):
    """A_pred = sigmoid( (adj @ (X @ W)) @ (adj @ (X @ W)).T )."""
    md = jnp.dtype(matmul_dtype)
    # Cast operands once in the wrapper; adj is {0,1} so bf16 is exact, and the
    # MXU always accumulates in f32 via preferred_element_type.
    Xc = X.astype(md)
    Wc = weight.astype(md)
    adjc = adj.astype(md)
    z = _fused_encoder(Xc, Wc, adjc, tm=enc_tm, tk=enc_tk)       # [N, D]
    return _pairwise_decode(z, tm=dec_tm, tn=dec_tn, out_dtype=out_dtype)


# ---------------------------------------------------------------------------
# Reference + test
# ---------------------------------------------------------------------------
def glorot_init(key, input_dim, output_dim):
    r = float(np.sqrt(6.0 / (input_dim + output_dim)))
    return jax.random.uniform(key, (input_dim, output_dim), jnp.float32, -r, r)


def ref_forward(X, adj, w):
    z = adj @ (X @ w)
    return jax.nn.sigmoid(z @ z.T)


if __name__ == "__main__":
    # GraphConvSparse(adj.shape[0], hidden1_dim, adj): input feature dim == N.
    N, hidden1_dim = 512, 128

    key = jax.random.PRNGKey(0)
    k_x, k_adj, k_w = jax.random.split(key, 3)

    X = 0.05 * jax.random.normal(k_x, (N, N), jnp.float32)
    adj_rnd = (jax.random.uniform(k_adj, (N, N)) < 0.02).astype(jnp.float32)
    adj = ((adj_rnd + adj_rnd.T) > 0).astype(jnp.float32)    # symmetric dense adj

    w1 = glorot_init(k_w, N, hidden1_dim)

    expected = ref_forward(X, adj, w1)

    # f32 path: matches the torch forward up to f32 accumulation order.
    out_f32 = lgae_forward(X, adj, w1, matmul_dtype=jnp.float32,
                           out_dtype=jnp.float32)
    out_f32 = jax.block_until_ready(out_f32)
    np.testing.assert_allclose(np.asarray(out_f32), np.asarray(expected),
                               rtol=1e-5, atol=1e-5)

    # Default fast path: bf16 MXU operands + bf16 output, f32 accumulation.
    out_fast = lgae_forward(X, adj, w1)
    out_fast = jax.block_until_ready(out_fast)
    np.testing.assert_allclose(np.asarray(out_fast.astype(jnp.float32)),
                               np.asarray(expected), rtol=0.0, atol=5e-2)

    print("KERNEL_OK")
</pallas_src>

<mosaic_0001>
module attributes {stable_mosaic.version = 11 : i64} {
  func.func @_encoder_kernel(%arg0: i32, %arg1: i32, %arg2: memref<512x512xf32, #tpu.memory_space<any>>, %arg3: memref<512x128xf32, #tpu.memory_space<vmem>>, %arg4: memref<512x512xf32, #tpu.memory_space<vmem>>, %arg5: memref<512x128xf32, #tpu.memory_space<vmem>>, %arg6: memref<512x128xf32, #tpu.memory_space<vmem>>, %arg7: memref<512x128xf32, #tpu.memory_space<vmem>>, %arg8: memref<512x512xf32, #tpu.memory_space<vmem>>) attributes {dimension_semantics = [#tpu.dimension_semantics<arbitrary>, #tpu.dimension_semantics<arbitrary>], iteration_bounds = array<i64: 1, 1>, scalar_prefetch = 0 : i64, scratch_operands = 3 : i64, tpu.core_type = #tpu.core_type<tc>, window_params = [{}, {pipeline_mode = #tpu.pipeline_mode<synchronous>, transform_indices = @transform_1, window_bounds = array<i64: 512, 128>}, {transform_indices = @transform_2, window_bounds = array<i64: 512, 512>}, {transform_indices = @transform_3, window_bounds = array<i64: 512, 128>}]} {
    %c512_i32 = arith.constant 512 : i32
    %0 = arith.muli %arg1, %c512_i32 : i32
    %1 = tpu.assume_multiple %0, 512 : i32
    %c0_i32 = arith.constant 0 : i32
    %2 = arith.cmpi eq, %arg0, %c0_i32 : i32
    %3 = arith.extui %2 : i1 to i32
    %c0_i32_0 = arith.constant 0 : i32
    %4 = arith.cmpi ne, %3, %c0_i32_0 : i32
    scf.if %4 {
      "tpu.region"() ({
        %23 = tpu.sem_alloc : memref<!tpu.dma_semaphore, #tpu.memory_space<semaphore_mem>>
        %c0_i32_17 = arith.constant 0 : i32
        %24 = tpu.memref_slice %arg2[%1, %c0_i32_17] : memref<512x512xf32, #tpu.memory_space<any>> -> memref<512x512xf32, #tpu.memory_space<any>>
        tpu.enqueue_dma source(%24 : memref<512x512xf32, #tpu.memory_space<any>>) target(%arg8 : memref<512x512xf32, #tpu.memory_space<vmem>>) target_semaphore(%23 : memref<!tpu.dma_semaphore, #tpu.memory_space<semaphore_mem>>)
        %c0_i32_18 = arith.constant 0 : i32
        %25 = tpu.memref_slice %arg2[%1, %c0_i32_18] : memref<512x512xf32, #tpu.memory_space<any>> -> memref<512x512xf32, #tpu.memory_space<any>>
        tpu.wait_dma2 semaphore(%23 : memref<!tpu.dma_semaphore, #tpu.memory_space<semaphore_mem>>) src(%25 : memref<512x512xf32, #tpu.memory_space<any>>) dst(%arg8 : memref<512x512xf32, #tpu.memory_space<vmem>>)
        tpu.yield
      }) : () -> ()
      %c0_11 = arith.constant 0 : index
      %c0_12 = arith.constant 0 : index
      %18 = vector.load %arg8[%c0_11, %c0_12] : memref<512x512xf32, #tpu.memory_space<vmem>>, vector<512x512xf32>
      %c0_13 = arith.constant 0 : index
      %c0_14 = arith.constant 0 : index
      %19 = vector.load %arg3[%c0_13, %c0_14] : memref<512x128xf32, #tpu.memory_space<vmem>>, vector<512x128xf32>
      %cst_15 = arith.constant dense<0.000000e+00> : vector<512x128xf32>
      %20 = tpu.matmul %18, %19, %cst_15 {dimension_numbers = #tpu.dot_dimension_numbers<[1], [0], [0], [1], [0, 0, 1, 1], [], []>} : vector<512x512xf32>, vector<512x128xf32>, vector<512x128xf32> -> vector<512x128xf32>
      %21 = arith.index_cast %1 : i32 to index
      %c0_16 = arith.constant 0 : index
      %22 = vector.load %arg6[%21, %c0_16] : memref<512x128xf32, #tpu.memory_space<vmem>>, vector<512x128xf32>
      tpu.vector_store %arg6[%21, %c0_16], %20 {strides = array<i32>} : memref<512x128xf32, #tpu.memory_space<vmem>>, vector<512x128xf32>,
    } else {
    }
    %c0_i32_1 = arith.constant 0 : i32
    %5 = arith.cmpi eq, %arg1, %c0_i32_1 : i32
    %6 = arith.extui %5 : i1 to i32
    %c0_i32_2 = arith.constant 0 : i32
    %7 = arith.cmpi ne, %6, %c0_i32_2 : i32
    scf.if %7 {
      %cst_11 = arith.constant 0.000000e+00 : f32
      %18 = vector.broadcast %cst_11 : f32 to vector<512x128xf32>
      %c0_12 = arith.constant 0 : index
      %c0_13 = arith.constant 0 : index
      %19 = vector.load %arg7[%c0_12, %c0_13] : memref<512x128xf32, #tpu.memory_space<vmem>>, vector<512x128xf32>
      tpu.vector_store %arg7[%c0_12, %c0_13], %18 {strides = array<i32>} : memref<512x128xf32, #tpu.memory_space<vmem>>, vector<512x128xf32>,
    } else {
    }
    %c0 = arith.constant 0 : index
    %c0_3 = arith.constant 0 : index
    %8 = vector.load %arg7[%c0, %c0_3] : memref<512x128xf32, #tpu.memory_space<vmem>>, vector<512x128xf32>
    %c0_4 = arith.constant 0 : index
    %c0_5 = arith.constant 0 : index
    %9 = vector.load %arg4[%c0_4, %c0_5] : memref<512x512xf32, #tpu.memory_space<vmem>>, vector<512x512xf32>
    %10 = arith.index_cast %1 : i32 to index
    %c0_6 = arith.constant 0 : index
    %11 = vector.load %arg6[%10, %c0_6] : memref<512x128xf32, #tpu.memory_space<vmem>>, vector<512x128xf32>
    %cst = arith.constant dense<0.000000e+00> : vector<512x128xf32>
    %12 = tpu.matmul %9, %11, %cst {dimension_numbers = #tpu.dot_dimension_numbers<[1], [0], [0], [1], [0, 0, 1, 1], [], []>} : vector<512x512xf32>, vector<512x128xf32>, vector<512x128xf32> -> vector<512x128xf32>
    %13 = arith.addf %8, %12 : vector<512x128xf32>
    %c0_7 = arith.constant 0 : index
    %c0_8 = arith.constant 0 : index
    %14 = vector.load %arg7[%c0_7, %c0_8] : memref<512x128xf32, #tpu.memory_space<vmem>>, vector<512x128xf32>
    tpu.vector_store %arg7[%c0_7, %c0_8], %13 {strides = array<i32>} : memref<512x128xf32, #tpu.memory_space<vmem>>, vector<512x128xf32>,
    %c0_i32_9 = arith.constant 0 : i32
    %15 = arith.cmpi eq, %arg1, %c0_i32_9 : i32
    %16 = arith.extui %15 : i1 to i32
    %c0_i32_10 = arith.constant 0 : i32
    %17 = arith.cmpi ne, %16, %c0_i32_10 : i32
    scf.if %17 {
      %c0_11 = arith.constant 0 : index
      %c0_12 = arith.constant 0 : index
      %18 = vector.load %arg7[%c0_11, %c0_12] : memref<512x128xf32, #tpu.memory_space<vmem>>, vector<512x128xf32>
      %c0_13 = arith.constant 0 : index
      %c0_14 = arith.constant 0 : index
      %19 = vector.load %arg5[%c0_13, %c0_14] : memref<512x128xf32, #tpu.memory_space<vmem>>, vector<512x128xf32>
      tpu.vector_store %arg5[%c0_13, %c0_14], %18 {strides = array<i32>} : memref<512x128xf32, #tpu.memory_space<vmem>>, vector<512x128xf32>,
    } else {
    }
    return
  }
  func.func @transform_1(%arg0: i32, %arg1: i32) -> (i32, i32) {
    %c0_i32 = arith.constant 0 : i32
    %c0_i32_0 = arith.constant 0 : i32
    %c0_i32_1 = arith.constant 0 : i32
    return %c0_i32, %c0_i32_0 : i32, i32
  }
  func.func @transform_2(%arg0: i32, %arg1: i32) -> (i32, i32) {
    %c0_i32 = arith.constant 0 : i32
    return %arg0, %arg1 : i32, i32
  }
  func.func @transform_3(%arg0: i32, %arg1: i32) -> (i32, i32) {
    %c0_i32 = arith.constant 0 : i32
    %c0_i32_0 = arith.constant 0 : i32
    return %arg0, %c0_i32 : i32, i32
  }
}

</mosaic_0001>

<llo_original>
// kernel: tpu_custom_call.1
$region0: #{tpu_custom_call.1}
  #allocation0 [shape = 'u32[]', space=smem, size = 0x4, offset = 0x4, fixed_abs, tag = 'smem constant byte address 0x4 - core index']
  #allocation1 [shape = 'u32[72,128]{1,0:T(1,128)}', space=vmem, size = 0x9000, scoped, tag = 'internal scratch']
  #allocation2 [shape = 'f32[512,128]{1,0:T(8,128)}', space=vmem, size = 0x40000, scoped, tag = 'scratch operand']
  #allocation3 [shape = 'f32[512,128]{1,0:T(8,128)}', space=vmem, size = 0x40000, scoped, tag = 'scratch operand']
  #allocation4 [shape = 'f32[512,512]{1,0:T(8,128)}', space=vmem, size = 0x100000, scoped, tag = 'scratch operand']
  #allocation12 [shape = 's32[]', space=sflag, size = 0x4, offset = 0, fixed_abs, tag = 'sflag constant byte address 0x0 - dummy sync flag']
  #allocation13 [shape = 's32[]', space=sflag, size = 0x4, offset = 0, fixed_abs, tag = 'sflag constant byte address 0x0 - dummy sync flag']
  #allocation14 [shape = 'u32[]', space=smem, size = 0x4, offset = 0x44, fixed_abs, tag = 'smem constant byte address 0x44 - assertion arg 0']
  #allocation15 [shape = 'u32[]', space=smem, size = 0x4, offset = 0x48, fixed_abs, tag = 'smem constant byte address 0x48 - assertion arg 1']
  %s0 = inlined_call_operand.hbm [shape: f32[512,512], index: 0, kind: input, shape index: {}]
  %s1 = inlined_call_operand.hbm [shape: f32[512,128], index: 1, kind: input, shape index: {}]
  %s2 = inlined_call_operand.hbm [shape: f32[512,512], index: 2, kind: input, shape index: {}]
  %s3 = inlined_call_operand.hbm [shape: f32[512,128], index: 3, kind: output, shape index: {}]
  %s4 = sld [smem:[#allocation0]]
  $region43: #{tpu_custom_call.1} parent=0
    _
  %s6 = ssub.s32 1, %s4
  %s7 = scalar_select 0, %s6, %s4
  $region1: #{tpu_custom_call.1} parent=0
    #allocation5 [shape = 'u8[262144]{0}', space=vmem, size = 0x40000, scoped, tag = 'input window, operand 1, single buffered']
    #allocation6 [shape = 's32[1]{0}', space=sflag, size = 0x4, scoped, tag = 'scoped memory for tpu_custom_call.1']
    #allocation7 [shape = 's32[1]{0}', space=sflag, size = 0x4, scoped, tag = 'scoped memory for tpu_custom_call.1']
    #allocation8 [shape = 'u8[1048576]{0}', space=vmem, size = 0x100000, scoped, tag = 'input window, operand 2, single buffered']
    #allocation9 [shape = 's32[1]{0}', space=sflag, size = 0x4, scoped, tag = 'scoped memory for tpu_custom_call.1']
    #allocation10 [shape = 'u8[262144]{0}', space=vmem, size = 0x40000, scoped, tag = 'output window, operand 0, single buffered']
    %8 = vsyncpa [#allocation6], 0
    %9 = vsyncpa [#allocation9], 0
    %10 = vsyncpa [#allocation7], 0
    // Predicated region
    $region2: #{tpu_custom_call.1} parent=1 // pred_check
      _
    $region3: #{tpu_custom_call.1} parent=1 // pred_check_branch
      %12 = sbr.rel (0) target = $region5
    $region4: #{tpu_custom_call.1} parent=1 // pred_region
      %14 = vsyncadd [#allocation6], 0
      %s15 = sshll.u32 %s1, 4
      %s16 = int_to_ptr.hbm [resolvable:$true] %s15
      %s17 = sshll.u32 [#allocation5], 4
      %s18 = int_to_ptr.vmem [resolvable:$true] %s17
      %23 = dma.hbm_to_vmem [thread:$0]  %s16, 8192, %s18, [#allocation6], 128, 128, 8
    $region5: #{tpu_custom_call.1} parent=1 // pred_fallthru
      _
    // Predicated region
    $region6: #{tpu_custom_call.1} parent=1 // pred_check
      _
    $region7: #{tpu_custom_call.1} parent=1 // pred_check_branch
      %25 = sbr.rel (0) target = $region9
    $region8: #{tpu_custom_call.1} parent=1 // pred_region
      %27 = vsyncadd [#allocation9], 0
      %s28 = sshll.u32 %s2, 4
      %s29 = int_to_ptr.hbm [resolvable:$true] %s28
      %s30 = sshll.u32 [#allocation8], 4
      %s31 = int_to_ptr.vmem [resolvable:$true] %s30
      %36 = dma.hbm_to_vmem [thread:$0]  %s29, 32768, %s31, [#allocation9], 512, 512, 32
    $region9: #{tpu_custom_call.1} parent=1 // pred_fallthru
      _
    // Predicated region
    $region10: #{tpu_custom_call.1} parent=1 // pred_check
      _
    $region11: #{tpu_custom_call.1} parent=1 // pred_check_branch
      %38 = sbr.rel (0) target = $region13
    $region12: #{tpu_custom_call.1} parent=1 // pred_region
      %40 = dma.done [#allocation6], 8192
    $region13: #{tpu_custom_call.1} parent=1 // pred_fallthru
      _
    // Predicated region
    $region14: #{tpu_custom_call.1} parent=1 // pred_check
      _
    $region15: #{tpu_custom_call.1} parent=1 // pred_check_branch
      %42 = sbr.rel (0) target = $region17
    $region16: #{tpu_custom_call.1} parent=1 // pred_region
      %44 = dma.done [#allocation9], 32768
    $region17: #{tpu_custom_call.1} parent=1 // pred_fallthru
      _
    %s45 = smul.u32 0, 512
    %p46 = scmp.eq.s32.totalorder 0, 0
    // Predicated region
    $region18: #{tpu_custom_call.1} parent=1 // pred_check
      %p47 = pneg %p46
    $region19: #{tpu_custom_call.1} parent=1 // pred_check_branch
      %49 = sbr.rel (%p47) target = $region21
    $region20: #{tpu_custom_call.1} parent=1 // pred_region
      $region22: #{tpu_custom_call.1} parent=20
        #allocation11 [shape = 's32[1]{0}', space=sflag, size = 0x4, scoped, tag = 'scoped memory for tpu_custom_call.1']
        %s50 = sshra.s32 %s45, 3
        %s51 = sand.u32 %s45, 7
        %s52 = smul.u32 %s50, 4
        %s53 = smul.addr %s52, 8
        %s54 = scalar_lea.hbm %s0, %s53
        // Predicated region
        $region23: #{tpu_custom_call.1} parent=22 // pred_check
          _
        $region24: #{tpu_custom_call.1} parent=22 // pred_check_branch
          %56 = sbr.rel target = $region26
        $region25: #{tpu_custom_call.1} parent=22 // pred_region
          %57 = sst [smem:[#allocation14]] [#allocation13]
          %58 = sst [smem:[#allocation15]] [#allocation12]
        $region26: #{tpu_custom_call.1} parent=22 // pred_fallthru
          _
        %60 = shalt.err (0)
        %s62 = sshll.u32 %s54, 4
        %s63 = int_to_ptr.hbm [resolvable:$true] %s62
        %s64 = sshll.u32 [#allocation4], 4
        %s65 = int_to_ptr.vmem [resolvable:$true] %s64
        %67 = dma.hbm_to_vmem [thread:$0]  %s63, 32768, %s65, [#allocation11]
        %s68 = smul.u32 8, 64
        %s69 = smul.u32 %s68, 4
        %s70 = sshll.u32 %s69, 4
        %71 = dma.done [#allocation11], %s70
      %v72 = vld [vmem:[#allocation4] sm:$0xff]
      %v73 = vld [vmem:[#allocation4 + $0x8] sm:$0xff]
      %v74 = vld [vmem:[#allocation4 + $0x10] sm:$0xff]
      %v75 = vld [vmem:[#allocation4 + $0x18] sm:$0xff]
      %v76 = vld [vmem:[#allocation4 + $0x20] sm:$0xff]
      %v77 = vld [vmem:[#allocation4 + $0x28] sm:$0xff]
      %v78 = vld [vmem:[#allocation4 + $0x30] sm:$0xff]
      %v79 = vld [vmem:[#allocation4 + $0x38] sm:$0xff]
      %v80 = vld [vmem:[#allocation4 + $0x40] sm:$0xff]
      %v81 = vld [vmem:[#allocation4 + $0x48] sm:$0xff]
      %v82 = vld [vmem:[#allocation4 + $0x50] sm:$0xff]
      %v83 = vld [vmem:[#allocation4 + $0x58] sm:$0xff]
      %v84 = vld [vmem:[#allocation4 + $0x60] sm:$0xff]
      %v85 = vld [vmem:[#allocation4 + $0x68] sm:$0xff]
      %v86 = vld [vmem:[#allocation4 + $0x70] sm:$0xff]
      %v87 = vld [vmem:[#allocation4 + $0x78] sm:$0xff]
      %v88 = vld [vmem:[#allocation4 + $0x80] sm:$0xff]
      %v89 = vld [vmem:[#allocation4 + $0x88] sm:$0xff]
      %v90 = vld [vmem:[#allocation4 + $0x90] sm:$0xff]
      %v91 = vld [vmem:[#allocation4 + $0x98] sm:$0xff]
      %v92 = vld [vmem:[#allocation4 + $0xa0] sm:$0xff]
      %v93 = vld [vmem:[#allocation4 + $0xa8] sm:$0xff]
      %v94 = vld [vmem:[#allocation4 + $0xb0] sm:$0xff]
      %v95 = vld [vmem:[#allocation4 + $0xb8] sm:$0xff]
      %v96 = vld [vmem:[#allocation4 + $0xc0] sm:$0xff]
      %v97 = vld [vmem:[#allocation4 + $0xc8] sm:$0xff]
      %v98 = vld [vmem:[#allocation4 + $0xd0] sm:$0xff]
      %v99 = vld [vmem:[#allocation4 + $0xd8] sm:$0xff]
      %v100 = vld [vmem:[#allocation4 + $0xe0] sm:$0xff]
      %v101 = vld [vmem:[#allocation4 + $0xe8] sm:$0xff]
      %v102 = vld [vmem:[#allocation4 + $0xf0] sm:$0xff]
      %v103 = vld [vmem:[#allocation4 + $0xf8] sm:$0xff]
      %v104 = vld [vmem:[#allocation4 + $0x100] sm:$0xff]
      %v105 = vld [vmem:[#allocation4 + $0x108] sm:$0xff]
      %v106 = vld [vmem:[#allocation4 + $0x110] sm:$0xff]
      %v107 = vld [vmem:[#allocation4 + $0x118] sm:$0xff]
      %v108 = vld [vmem:[#allocation4 + $0x120] sm:$0xff]
      %v109 = vld [vmem:[#allocation4 + $0x128] sm:$0xff]
      %v110 = vld [vmem:[#allocation4 + $0x130] sm:$0xff]
      %v111 = vld [vmem:[#allocation4 + $0x138] sm:$0xff]
      %v112 = vld [vmem:[#allocation4 + $0x140] sm:$0xff]
      %v113 = vld [vmem:[#allocation4 + $0x148] sm:$0xff]
      %v114 = vld [vmem:[#allocation4 + $0x150] sm:$0xff]
      %v115 = vld [vmem:[#allocation4 + $0x158] sm:$0xff]
      %v116 = vld [vmem:[#allocation4 + $0x160] sm:$0xff]
      %v117 = vld [vmem:[#allocation4 + $0x168] sm:$0xff]
      %v118 = vld [vmem:[#allocation4 + $0x170] sm:$0xff]
      %v119 = vld [vmem:[#allocation4 + $0x178] sm:$0xff]
      %v120 = vld [vmem:[#allocation4 + $0x180] sm:$0xff]
      %v121 = vld [vmem:[#allocation4 + $0x188] sm:$0xff]
      %v122 = vld [vmem:[#allocation4 + $0x190] sm:$0xff]
      %v123 = vld [vmem:[#allocation4 + $0x198] sm:$0xff]
      %v124 = vld [vmem:[#allocation4 + $0x1a0] sm:$0xff]
      %v125 = vld [vmem:[#allocation4 + $0x1a8] sm:$0xff]
      %v126 = vld [vmem:[#allocation4 + $0x1b0] sm:$0xff]
      %v127 = vld [vmem:[#allocation4 + $0x1b8] sm:$0xff]
      %v128 = vld [vmem:[#allocation4 + $0x1c0] sm:$0xff]
      %v129 = vld [vmem:[#allocation4 + $0x1c8] sm:$0xff]
      %v130 = vld [vmem:[#allocation4 + $0x1d0] sm:$0xff]
      %v131 = vld [vmem:[#allocation4 + $0x1d8] sm:$0xff]
      %v132 = vld [vmem:[#allocation4 + $0x1e0] sm:$0xff]
      %v133 = vld [vmem:[#allocation4 + $0x1e8] sm:$0xff]
      %v134 = vld [vmem:[#allocation4 + $0x1f0] sm:$0xff]
      %v135 = vld [vmem:[#allocation4 + $0x1f8] sm:$0xff]
      %v136 = vld [vmem:[#allocation4 + $0x200] sm:$0xff]
      %v137 = vld [vmem:[#allocation4 + $0x208] sm:$0xff]
      %v138 = vld [vmem:[#allocation4 + $0x210] sm:$0xff]
      %v139 = vld [vmem:[#allocation4 + $0x218] sm:$0xff]
      %v140 = vld [vmem:[#allocation4 + $0x220] sm:$0xff]
      %v141 = vld [vmem:[#allocation4 + $0x228] sm:$0xff]
      %v142 = vld [vmem:[#allocation4 + $0x230] sm:$0xff]
      %v143 = vld [vmem:[#allocation4 + $0x238] sm:$0xff]
      %v144 = vld [vmem:[#allocation4 + $0x240] sm:$0xff]
      %v145 = vld [vmem:[#allocation4 + $0x248] sm:$0xff]
      %v146 = vld [vmem:[#allocation4 + $0x250] sm:$0xff]
      %v147 = vld [vmem:[#allocation4 + $0x258] sm:$0xff]
      %v148 = vld [vmem:[#allocation4 + $0x260] sm:$0xff]
      %v149 = vld [vmem:[#allocation4 + $0x268] sm:$0xff]
      %v150 = vld [vmem:[#allocation4 + $0x270] sm:$0xff]
      %v151 = vld [vmem:[#allocation4 + $0x278] sm:$0xff]
      %v152 = vld [vmem:[#allocation4 + $0x280] sm:$0xff]
      %v153 = vld [vmem:[#allocation4 + $0x288] sm:$0xff]
      %v154 = vld [vmem:[#allocation4 + $0x290] sm:$0xff]
      %v155 = vld [vmem:[#allocation4 + $0x298] sm:$0xff]
      %v156 = vld [vmem:[#allocation4 + $0x2a0] sm:$0xff]
      %v157 = vld [vmem:[#allocation4 + $0x2a8] sm:$0xff]
      %v158 = vld [vmem:[#allocation4 + $0x2b0] sm:$0xff]
      %v159 = vld [vmem:[#allocation4 + $0x2b8] sm:$0xff]
      %v160 = vld [vmem:[#allocation4 + $0x2c0] sm:$0xff]
      %v161 = vld [vmem:[#allocation4 + $0x2c8] sm:$0xff]
      %v162 = vld [vmem:[#allocation4 + $0x2d0] sm:$0xff]
      %v163 = vld [vmem:[#allocation4 + $0x2d8] sm:$0xff]
      %v164 = vld [vmem:[#allocation4 + $0x2e0] sm:$0xff]
      %v165 = vld [vmem:[#allocation4 + $0x2e8] sm:$0xff]
      %v166 = vld [vmem:[#allocation4 + $0x2f0] sm:$0xff]
      %v167 = vld [vmem:[#allocation4 + $0x2f8] sm:$0xff]
      %v168 = vld [vmem:[#allocation4 + $0x300] sm:$0xff]
      %v169 = vld [vmem:[#allocation4 + $0x308] sm:$0xff]
      %v170 = vld [vmem:[#allocation4 + $0x310] sm:$0xff]
      %v171 = vld [vmem:[#allocation4 + $0x318] sm:$0xff]
      %v172 = vld [vmem:[#allocation4 + $0x320] sm:$0xff]
      %v173 = vld [vmem:[#allocation4 + $0x328] sm:$0xff]
      %v174 = vld [vmem:[#allocation4 + $0x330] sm:$0xff]
      %v175 = vld [vmem:[#allocation4 + $0x338] sm:$0xff]
      %v176 = vld [vmem:[#allocation4 + $0x340] sm:$0xff]
      %v177 = vld [vmem:[#allocation4 + $0x348] sm:$0xff]
      %v178 = vld [vmem:[#allocation4 + $0x350] sm:$0xff]
      %v179 = vld [vmem:[#allocation4 + $0x358] sm:$0xff]
      %v180 = vld [vmem:[#allocation4 + $0x360] sm:$0xff]
      %v181 = vld [vmem:[#allocation4 + $0x368] sm:$0xff]
      %v182 = vld [vmem:[#allocation4 + $0x370] sm:$0xff]
      %v183 = vld [vmem:[#allocation4 + $0x378] sm:$0xff]
      %v184 = vld [vmem:[#allocation4 + $0x380] sm:$0xff]
      %v185 = vld [vmem:[#allocation4 + $0x388] sm:$0xff]
      %v186 = vld [vmem:[#allocation4 + $0x390] sm:$0xff]
      %v187 = vld [vmem:[#allocation4 + $0x398] sm:$0xff]
      %v188 = vld [vmem:[#allocation4 + $0x3a0] sm:$0xff]
      %v189 = vld [vmem:[#allocation4 + $0x3a8] sm:$0xff]
      %v190 = vld [vmem:[#allocation4 + $0x3b0] sm:$0xff]
      %v191 = vld [vmem:[#allocation4 + $0x3b8] sm:$0xff]
      %v192 = vld [vmem:[#allocation4 + $0x3c0] sm:$0xff]
      %v193 = vld [vmem:[#allocation4 + $0x3c8] sm:$0xff]
      %v194 = vld [vmem:[#allocation4 + $0x3d0] sm:$0xff]
      %v195 = vld [vmem:[#allocation4 + $0x3d8] sm:$0xff]
      %v196 = vld [vmem:[#allocation4 + $0x3e0] sm:$0xff]
      %v197 = vld [vmem:[#allocation4 + $0x3e8] sm:$0xff]
      %v198 = vld [vmem:[#allocation4 + $0x3f0] sm:$0xff]
      %v199 = vld [vmem:[#allocation4 + $0x3f8] sm:$0xff]
      %v200 = vld [vmem:[#allocation4 + $0x400] sm:$0xff]
      %v201 = vld [vmem:[#allocation4 + $0x408] sm:$0xff]
      %v202 = vld [vmem:[#allocation4 + $0x410] sm:$0xff]
      %v203 = vld [vmem:[#allocation4 + $0x418] sm:$0xff]
      %v204 = vld [vmem:[#allocation4 + $0x420] sm:$0xff]
      %v205 = vld [vmem:[#allocation4 + $0x428] sm:$0xff]
      %v206 = vld [vmem:[#allocation4 + $0x430] sm:$0xff]
      %v207 = vld [vmem:[#allocation4 + $0x438] sm:$0xff]
      %v208 = vld [vmem:[#allocation4 + $0x440] sm:$0xff]
      %v209 = vld [vmem:[#allocation4 + $0x448] sm:$0xff]
      %v210 = vld [vmem:[#allocation4 + $0x450] sm:$0xff]
      %v211 = vld [vmem:[#allocation4 + $0x458] sm:$0xff]
      %v212 = vld [vmem:[#allocation4 + $0x460] sm:$0xff]
      %v213 = vld [vmem:[#allocation4 + $0x468] sm:$0xff]
      %v214 = vld [vmem:[#allocation4 + $0x470] sm:$0xff]
      %v215 = vld [vmem:[#allocation4 + $0x478] sm:$0xff]
      %v216 = vld [vmem:[#allocation4 + $0x480] sm:$0xff]
      %v217 = vld [vmem:[#allocation4 + $0x488] sm:$0xff]
      %v218 = vld [vmem:[#allocation4 + $0x490] sm:$0xff]
      %v219 = vld [vmem:[#allocation4 + $0x498] sm:$0xff]
      %v220 = vld [vmem:[#allocation4 + $0x4a0] sm:$0xff]
      %v221 = vld [vmem:[#allocation4 + $0x4a8] sm:$0xff]
      %v222 = vld [vmem:[#allocation4 + $0x4b0] sm:$0xff]
      %v223 = vld [vmem:[#allocation4 + $0x4b8] sm:$0xff]
      %v224 = vld [vmem:[#allocation4 + $0x4c0] sm:$0xff]
      %v225 = vld [vmem:[#allocation4 + $0x4c8] sm:$0xff]
      %v226 = vld [vmem:[#allocation4 + $0x4d0] sm:$0xff]
      %v227 = vld [vmem:[#allocation4 + $0x4d8] sm:$0xff]
      %v228 = vld [vmem:[#allocation4 + $0x4e0] sm:$0xff]
      %v229 = vld [vmem:[#allocation4 + $0x4e8] sm:$0xff]
      %v230 = vld [vmem:[#allocation4 + $0x4f0] sm:$0xff]
      %v231 = vld [vmem:[#allocation4 + $0x4f8] sm:$0xff]
      %v232 = vld [vmem:[#allocation4 + $0x500] sm:$0xff]
      %v233 = vld [vmem:[#allocation4 + $0x508] sm:$0xff]
      %v234 = vld [vmem:[#allocation4 + $0x510] sm:$0xff]
      %v235 = vld [vmem:[#allocation4 + $0x518] sm:$0xff]
      %v236 = vld [vmem:[#allocation4 + $0x520] sm:$0xff]
      %v237 = vld [vmem:[#allocation4 + $0x528] sm:$0xff]
      %v238 = vld [vmem:[#allocation4 + $0x530] sm:$0xff]
      %v239 = vld [vmem:[#allocation4 + $0x538] sm:$0xff]
      %v240 = vld [vmem:[#allocation4 + $0x540] sm:$0xff]
      %v241 = vld [vmem:[#allocation4 + $0x548] sm:$0xff]
      %v242 = vld [vmem:[#allocation4 + $0x550] sm:$0xff]
      %v243 = vld [vmem:[#allocation4 + $0x558] sm:$0xff]
      %v244 = vld [vmem:[#allocation4 + $0x560] sm:$0xff]
      %v245 = vld [vmem:[#allocation4 + $0x568] sm:$0xff]
      %v246 = vld [vmem:[#allocation4 + $0x570] sm:$0xff]
      %v247 = vld [vmem:[#allocation4 + $0x578] sm:$0xff]
      %v248 = vld [vmem:[#allocation4 + $0x580] sm:$0xff]
      %v249 = vld [vmem:[#allocation4 + $0x588] sm:$0xff]
      %v250 = vld [vmem:[#allocation4 + $0x590] sm:$0xff]
      %v251 = vld [vmem:[#allocation4 + $0x598] sm:$0xff]
      %v252 = vld [vmem:[#allocation4 + $0x5a0] sm:$0xff]
      %v253 = vld [vmem:[#allocation4 + $0x5a8] sm:$0xff]
      %v254 = vld [vmem:[#allocation4 + $0x5b0] sm:$0xff]
      %v255 = vld [vmem:[#allocation4 + $0x5b8] sm:$0xff]
      %v256 = vld [vmem:[#allocation4 + $0x5c0] sm:$0xff]
      %v257 = vld [vmem:[#allocation4 + $0x5c8] sm:$0xff]
      %v258 = vld [vmem:[#allocation4 + $0x5d0] sm:$0xff]
      %v259 = vld [vmem:[#allocation4 + $0x5d8] sm:$0xff]
      %v260 = vld [vmem:[#allocation4 + $0x5e0] sm:$0xff]
      %v261 = vld [vmem:[#allocation4 + $0x5e8] sm:$0xff]
      %v262 = vld [vmem:[#allocation4 + $0x5f0] sm:$0xff]
      %v263 = vld [vmem:[#allocation4 + $0x5f8] sm:$0xff]
      %v264 = vld [vmem:[#allocation4 + $0x600] sm:$0xff]
      %v265 = vld [vmem:[#allocation4 + $0x608] sm:$0xff]
      %v266 = vld [vmem:[#allocation4 + $0x610] sm:$0xff]
      %v267 = vld [vmem:[#allocation4 + $0x618] sm:$0xff]
      %v268 = vld [vmem:[#allocation4 + $0x620] sm:$0xff]
      %v269 = vld [vmem:[#allocation4 + $0x628] sm:$0xff]
      %v270 = vld [vmem:[#allocation4 + $0x630] sm:$0xff]
      %v271 = vld [vmem:[#allocation4 + $0x638] sm:$0xff]
      %v272 = vld [vmem:[#allocation4 + $0x640] sm:$0xff]
      %v273 = vld [vmem:[#allocation4 + $0x648] sm:$0xff]
      %v274 = vld [vmem:[#allocation4 + $0x650] sm:$0xff]
      %v275 = vld [vmem:[#allocation4 + $0x658] sm:$0xff]
      %v276 = vld [vmem:[#allocation4 + $0x660] sm:$0xff]
      %v277 = vld [vmem:[#allocation4 + $0x668] sm:$0xff]
      %v278 = vld [vmem:[#allocation4 + $0x670] sm:$0xff]
      %v279 = vld [vmem:[#allocation4 + $0x678] sm:$0xff]
      %v280 = vld [vmem:[#allocation4 + $0x680] sm:$0xff]
      %v281 = vld [vmem:[#allocation4 + $0x688] sm:$0xff]
      %v282 = vld [vmem:[#allocation4 + $0x690] sm:$0xff]
      %v283 = vld [vmem:[#allocation4 + $0x698] sm:$0xff]
      %v284 = vld [vmem:[#allocation4 + $0x6a0] sm:$0xff]
      %v285 = vld [vmem:[#allocation4 + $0x6a8] sm:$0xff]
      %v286 = vld [vmem:[#allocation4 + $0x6b0] sm:$0xff]
      %v287 = vld [vmem:[#allocation4 + $0x6b8] sm:$0xff]
      %v288 = vld [vmem:[#allocation4 + $0x6c0] sm:$0xff]
      %v289 = vld [vmem:[#allocation4 + $0x6c8] sm:$0xff]
      %v290 = vld [vmem:[#allocation4 + $0x6d0] sm:$0xff]
      %v291 = vld [vmem:[#allocation4 + $0x6d8] sm:$0xff]
      %v292 = vld [vmem:[#allocation4 + $0x6e0] sm:$0xff]
      %v293 = vld [vmem:[#allocation4 + $0x6e8] sm:$0xff]
      %v294 = vld [vmem:[#allocation4 + $0x6f0] sm:$0xff]
      %v295 = vld [vmem:[#allocation4 + $0x6f8] sm:$0xff]
      %v296 = vld [vmem:[#allocation4 + $0x700] sm:$0xff]
      %v297 = vld [vmem:[#allocation4 + $0x708] sm:$0xff]
      %v298 = vld [vmem:[#allocation4 + $0x710] sm:$0xff]
      %v299 = vld [vmem:[#allocation4 + $0x718] sm:$0xff]
      %v300 = vld [vmem:[#allocation4 + $0x720] sm:$0xff]
      %v301 = vld [vmem:[#allocation4 + $0x728] sm:$0xff]
      %v302 = vld [vmem:[#allocation4 + $0x730] sm:$0xff]
      %v303 = vld [vmem:[#allocation4 + $0x738] sm:$0xff]
      %v304 = vld [vmem:[#allocation4 + $0x740] sm:$0xff]
      %v305 = vld [vmem:[#allocation4 + $0x748] sm:$0xff]
      %v306 = vld [vmem:[#allocation4 + $0x750] sm:$0xff]
      %v307 = vld [vmem:[#allocation4 + $0x758] sm:$0xff]
      %v308 = vld [vmem:[#allocation4 + $0x760] sm:$0xff]
      %v309 = vld [vmem:[#allocation4 + $0x768] sm:$0xff]
      %v310 = vld [vmem:[#allocation4 + $0x770] sm:$0xff]
      %v311 = vld [vmem:[#allocation4 + $0x778] sm:$0xff]
      %v312 = vld [vmem:[#allocation4 + $0x780] sm:$0xff]
      %v313 = vld [vmem:[#allocation4 + $0x788] sm:$0xff]
      %v314 = vld [vmem:[#allocation4 + $0x790] sm:$0xff]
      %v315 = vld [vmem:[#allocation4 + $0x798] sm:$0xff]
      %v316 = vld [vmem:[#allocation4 + $0x7a0] sm:$0xff]
      %v317 = vld [vmem:[#allocation4 + $0x7a8] sm:$0xff]
      %v318 = vld [vmem:[#allocation4 + $0x7b0] sm:$0xff]
      %v319 = vld [vmem:[#allocation4 + $0x7b8] sm:$0xff]
      %v320 = vld [vmem:[#allocation4 + $0x7c0] sm:$0xff]
      %v321 = vld [vmem:[#allocation4 + $0x7c8] sm:$0xff]
      %v322 = vld [vmem:[#allocation4 + $0x7d0] sm:$0xff]
      %v323 = vld [vmem:[#allocation4 + $0x7d8] sm:$0xff]
      %v324 = vld [vmem:[#allocation4 + $0x7e0] sm:$0xff]
      %v325 = vld [vmem:[#allocation4 + $0x7e8] sm:$0xff]
      %v326 = vld [vmem:[#allocation4 + $0x7f0] sm:$0xff]
      %v327 = vld [vmem:[#allocation4 + $0x7f8] sm:$0xff]
      %v328 = vld [vmem:[#allocation5] sm:$0xff]
      %v329 = vld [vmem:[#allocation5 + $0x8] sm:$0xff]
      %v330 = vld [vmem:[#allocation5 + $0x10] sm:$0xff]
      %v331 = vld [vmem:[#allocation5 + $0x18] sm:$0xff]
      %v332 = vld [vmem:[#allocation5 + $0x20] sm:$0xff]
      %v333 = vld [vmem:[#allocation5 + $0x28] sm:$0xff]
      %v334 = vld [vmem:[#allocation5 + $0x30] sm:$0xff]
      %v335 = vld [vmem:[#allocation5 + $0x38] sm:$0xff]
      %v336 = vld [vmem:[#allocation5 + $0x40] sm:$0xff]
      %v337 = vld [vmem:[#allocation5 + $0x48] sm:$0xff]
      %v338 = vld [vmem:[#allocation5 + $0x50] sm:$0xff]
      %v339 = vld [vmem:[#allocation5 + $0x58] sm:$0xff]
      %v340 = vld [vmem:[#allocation5 + $0x60] sm:$0xff]
      %v341 = vld [vmem:[#allocation5 + $0x68] sm:$0xff]
      %v342 = vld [vmem:[#allocation5 + $0x70] sm:$0xff]
      %v343 = vld [vmem:[#allocation5 + $0x78] sm:$0xff]
      %v344 = vld [vmem:[#allocation5 + $0x80] sm:$0xff]
      %v345 = vld [vmem:[#allocation5 + $0x88] sm:$0xff]
      %v346 = vld [vmem:[#allocation5 + $0x90] sm:$0xff]
      %v347 = vld [vmem:[#allocation5 + $0x98] sm:$0xff]
      %v348 = vld [vmem:[#allocation5 + $0xa0] sm:$0xff]
      %v349 = vld [vmem:[#allocation5 + $0xa8] sm:$0xff]
      %v350 = vld [vmem:[#allocation5 + $0xb0] sm:$0xff]
      %v351 = vld [vmem:[#allocation5 + $0xb8] sm:$0xff]
      %v352 = vld [vmem:[#allocation5 + $0xc0] sm:$0xff]
      %v353 = vld [vmem:[#allocation5 + $0xc8] sm:$0xff]
      %v354 = vld [vmem:[#allocation5 + $0xd0] sm:$0xff]
      %v355 = vld [vmem:[#allocation5 + $0xd8] sm:$0xff]
      %v356 = vld [vmem:[#allocation5 + $0xe0] sm:$0xff]
      %v357 = vld [vmem:[#allocation5 + $0xe8] sm:$0xff]
      %v358 = vld [vmem:[#allocation5 + $0xf0] sm:$0xff]
      %v359 = vld [vmem:[#allocation5 + $0xf8] sm:$0xff]
      %v360 = vld [vmem:[#allocation5 + $0x100] sm:$0xff]
      %v361 = vld [vmem:[#allocation5 + $0x108] sm:$0xff]
      %v362 = vld [vmem:[#allocation5 + $0x110] sm:$0xff]
      %v363 = vld [vmem:[#allocation5 + $0x118] sm:$0xff]
      %v364 = vld [vmem:[#allocation5 + $0x120] sm:$0xff]
      %v365 = vld [vmem:[#allocation5 + $0x128] sm:$0xff]
      %v366 = vld [vmem:[#allocation5 + $0x130] sm:$0xff]
      %v367 = vld [vmem:[#allocation5 + $0x138] sm:$0xff]
      %v368 = vld [vmem:[#allocation5 + $0x140] sm:$0xff]
      %v369 = vld [vmem:[#allocation5 + $0x148] sm:$0xff]
      %v370 = vld [vmem:[#allocation5 + $0x150] sm:$0xff]
      %v371 = vld [vmem:[#allocation5 + $0x158] sm:$0xff]
      %v372 = vld [vmem:[#allocation5 + $0x160] sm:$0xff]
      %v373 = vld [vmem:[#allocation5 + $0x168] sm:$0xff]
      %v374 = vld [vmem:[#allocation5 + $0x170] sm:$0xff]
      %v375 = vld [vmem:[#allocation5 + $0x178] sm:$0xff]
      %v376 = vld [vmem:[#allocation5 + $0x180] sm:$0xff]
      %v377 = vld [vmem:[#allocation5 + $0x188] sm:$0xff]
      %v378 = vld [vmem:[#allocation5 + $0x190] sm:$0xff]
      %v379 = vld [vmem:[#allocation5 + $0x198] sm:$0xff]
      %v380 = vld [vmem:[#allocation5 + $0x1a0] sm:$0xff]
      %v381 = vld [vmem:[#allocation5 + $0x1a8] sm:$0xff]
      %v382 = vld [vmem:[#allocation5 + $0x1b0] sm:$0xff]
      %v383 = vld [vmem:[#allocation5 + $0x1b8] sm:$0xff]
      %v384 = vld [vmem:[#allocation5 + $0x1c0] sm:$0xff]
      %v385 = vld [vmem:[#allocation5 + $0x1c8] sm:$0xff]
      %v386 = vld [vmem:[#allocation5 + $0x1d0] sm:$0xff]
      %v387 = vld [vmem:[#allocation5 + $0x1d8] sm:$0xff]
      %v388 = vld [vmem:[#allocation5 + $0x1e0] sm:$0xff]
      %v389 = vld [vmem:[#allocation5 + $0x1e8] sm:$0xff]
      %v390 = vld [vmem:[#allocation5 + $0x1f0] sm:$0xff]
      %v391 = vld [vmem:[#allocation5 + $0x1f8] sm:$0xff]
      %392 = vmatpush.msra.mxu0 %v343
      %393 = vmatpush.msra.mxu0 %v342
      %394 = vmatpush.msra.mxu0 %v341
      %395 = vmatpush.msra.mxu0 %v340
      %396 = vmatpush.msra.mxu0 %v339
      %397 = vmatpush.msra.mxu0 %v338
      %398 = vmatpush.msra.mxu0 %v337
      %399 = vmatpush.msra.mxu0 %v336
      %400 = vmatpush.msra.mxu0 %v335
      %401 = vmatpush.msra.mxu0 %v334
      %402 = vmatpush.msra.mxu0 %v333
      %403 = vmatpush.msra.mxu0 %v332
      %404 = vmatpush.msra.mxu0 %v331
      %405 = vmatpush.msra.mxu0 %v330
      %406 = vmatpush.msra.mxu0 %v329
      %407 = vmatpush.msra.mxu0 %v328
      %408 = vmatmul.f32.gmra.mxu0 %v72
      %v409 = vpop.f32.mrf.mxu0
      %v410 = vadd.f32 0.0, %v409
      %411 = vmatmul.f32.gmra.mxu0 %v76
      %v412 = vpop.f32.mrf.mxu0
      %v413 = vadd.f32 0.0, %v412
      %414 = vmatmul.f32.gmra.mxu0 %v80
      %v415 = vpop.f32.mrf.mxu0
      %v416 = vadd.f32 0.0, %v415
      %417 = vmatmul.f32.gmra.mxu0 %v84
      %v418 = vpop.f32.mrf.mxu0
      %v419 = vadd.f32 0.0, %v418
      %420 = vmatmul.f32.gmra.mxu0 %v88
      %v421 = vpop.f32.mrf.mxu0
      %v422 = vadd.f32 0.0, %v421
      %423 = vmatmul.f32.gmra.mxu0 %v92
      %v424 = vpop.f32.mrf.mxu0
      %v425 = vadd.f32 0.0, %v424
      %426 = vmatmul.f32.gmra.mxu0 %v96
      %v427 = vpop.f32.mrf.mxu0
      %v428 = vadd.f32 0.0, %v427
      %429 = vmatmul.f32.gmra.mxu0 %v100
      %v430 = vpop.f32.mrf.mxu0
      %v431 = vadd.f32 0.0, %v430
      %432 = vmatmul.f32.gmra.mxu0 %v104
      %v433 = vpop.f32.mrf.mxu0
      %v434 = vadd.f32 0.0, %v433
      %435 = vmatmul.f32.gmra.mxu0 %v108
      %v436 = vpop.f32.mrf.mxu0
      %v437 = vadd.f32 0.0, %v436
      %438 = vmatmul.f32.gmra.mxu0 %v112
      %v439 = vpop.f32.mrf.mxu0
      %v440 = vadd.f32 0.0, %v439
      %441 = vmatmul.f32.gmra.mxu0 %v116
      %v442 = vpop.f32.mrf.mxu0
      %v443 = vadd.f32 0.0, %v442
      %444 = vmatmul.f32.gmra.mxu0 %v120
      %v445 = vpop.f32.mrf.mxu0
      %v446 = vadd.f32 0.0, %v445
      %447 = vmatmul.f32.gmra.mxu0 %v124
      %v448 = vpop.f32.mrf.mxu0
      %v449 = vadd.f32 0.0, %v448
      %450 = vmatmul.f32.gmra.mxu0 %v128
      %v451 = vpop.f32.mrf.mxu0
      %v452 = vadd.f32 0.0, %v451
      %453 = vmatmul.f32.gmra.mxu0 %v132
      %v454 = vpop.f32.mrf.mxu0
      %v455 = vadd.f32 0.0, %v454
      %456 = vmatmul.f32.gmra.mxu0 %v136
      %v457 = vpop.f32.mrf.mxu0
      %v458 = vadd.f32 0.0, %v457
      %459 = vmatmul.f32.gmra.mxu0 %v140
      %v460 = vpop.f32.mrf.mxu0
      %v461 = vadd.f32 0.0, %v460
      %462 = vmatmul.f32.gmra.mxu0 %v144
      %v463 = vpop.f32.mrf.mxu0
      %v464 = vadd.f32 0.0, %v463
      %465 = vmatmul.f32.gmra.mxu0 %v148
      %v466 = vpop.f32.mrf.mxu0
      %v467 = vadd.f32 0.0, %v466
      %468 = vmatmul.f32.gmra.mxu0 %v152
      %v469 = vpop.f32.mrf.mxu0
      %v470 = vadd.f32 0.0, %v469
      %471 = vmatmul.f32.gmra.mxu0 %v156
      %v472 = vpop.f32.mrf.mxu0
      %v473 = vadd.f32 0.0, %v472
      %474 = vmatmul.f32.gmra.mxu0 %v160
      %v475 = vpop.f32.mrf.mxu0
      %v476 = vadd.f32 0.0, %v475
      %477 = vmatmul.f32.gmra.mxu0 %v164
      %v478 = vpop.f32.mrf.mxu0
      %v479 = vadd.f32 0.0, %v478
      %480 = vmatmul.f32.gmra.mxu0 %v168
      %v481 = vpop.f32.mrf.mxu0
      %v482 = vadd.f32 0.0, %v481
      %483 = vmatmul.f32.gmra.mxu0 %v172
      %v484 = vpop.f32.mrf.mxu0
      %v485 = vadd.f32 0.0, %v484
      %486 = vmatmul.f32.gmra.mxu0 %v176
      %v487 = vpop.f32.mrf.mxu0
      %v488 = vadd.f32 0.0, %v487
      %489 = vmatmul.f32.gmra.mxu0 %v180
      %v490 = vpop.f32.mrf.mxu0
      %v491 = vadd.f32 0.0, %v490
      %492 = vmatmul.f32.gmra.mxu0 %v184
      %v493 = vpop.f32.mrf.mxu0
      %v494 = vadd.f32 0.0, %v493
      %495 = vmatmul.f32.gmra.mxu0 %v188
      %v496 = vpop.f32.mrf.mxu0
      %v497 = vadd.f32 0.0, %v496
      %498 = vmatmul.f32.gmra.mxu0 %v192
      %v499 = vpop.f32.mrf.mxu0
      %v500 = vadd.f32 0.0, %v499
      %501 = vmatmul.f32.gmra.mxu0 %v196
      %v502 = vpop.f32.mrf.mxu0
      %v503 = vadd.f32 0.0, %v502
      %504 = vmatmul.f32.gmra.mxu0 %v200
      %v505 = vpop.f32.mrf.mxu0
      %v506 = vadd.f32 0.0, %v505
      %507 = vmatmul.f32.gmra.mxu0 %v204
      %v508 = vpop.f32.mrf.mxu0
      %v509 = vadd.f32 0.0, %v508
      %510 = vmatmul.f32.gmra.mxu0 %v208
      %v511 = vpop.f32.mrf.mxu0
      %v512 = vadd.f32 0.0, %v511
      %513 = vmatmul.f32.gmra.mxu0 %v212
      %v514 = vpop.f32.mrf.mxu0
      %v515 = vadd.f32 0.0, %v514
      %516 = vmatmul.f32.gmra.mxu0 %v216
      %v517 = vpop.f32.mrf.mxu0
      %v518 = vadd.f32 0.0, %v517
      %519 = vmatmul.f32.gmra.mxu0 %v220
      %v520 = vpop.f32.mrf.mxu0
      %v521 = vadd.f32 0.0, %v520
      %522 = vmatmul.f32.gmra.mxu0 %v224
      %v523 = vpop.f32.mrf.mxu0
      %v524 = vadd.f32 0.0, %v523
      %525 = vmatmul.f32.gmra.mxu0 %v228
      %v526 = vpop.f32.mrf.mxu0
      %v527 = vadd.f32 0.0, %v526
      %528 = vmatmul.f32.gmra.mxu0 %v232
      %v529 = vpop.f32.mrf.mxu0
      %v530 = vadd.f32 0.0, %v529
      %531 = vmatmul.f32.gmra.mxu0 %v236
      %v532 = vpop.f32.mrf.mxu0
      %v533 = vadd.f32 0.0, %v532
      %534 = vmatmul.f32.gmra.mxu0 %v240
      %v535 = vpop.f32.mrf.mxu0
      %v536 = vadd.f32 0.0, %v535
      %537 = vmatmul.f32.gmra.mxu0 %v244
      %v538 = vpop.f32.mrf.mxu0
      %v539 = vadd.f32 0.0, %v538
      %540 = vmatmul.f32.gmra.mxu0 %v248
      %v541 = vpop.f32.mrf.mxu0
      %v542 = vadd.f32 0.0, %v541
      %543 = vmatmul.f32.gmra.mxu0 %v252
      %v544 = vpop.f32.mrf.mxu0
      %v545 = vadd.f32 0.0, %v544
      %546 = vmatmul.f32.gmra.mxu0 %v256
      %v547 = vpop.f32.mrf.mxu0
      %v548 = vadd.f32 0.0, %v547
      %549 = vmatmul.f32.gmra.mxu0 %v260
      %v550 = vpop.f32.mrf.mxu0
      %v551 = vadd.f32 0.0, %v550
      %552 = vmatmul.f32.gmra.mxu0 %v264
      %v553 = vpop.f32.mrf.mxu0
      %v554 = vadd.f32 0.0, %v553
      %555 = vmatmul.f32.gmra.mxu0 %v268
      %v556 = vpop.f32.mrf.mxu0
      %v557 = vadd.f32 0.0, %v556
      %558 = vmatmul.f32.gmra.mxu0 %v272
      %v559 = vpop.f32.mrf.mxu0
      %v560 = vadd.f32 0.0, %v559
      %561 = vmatmul.f32.gmra.mxu0 %v276
      %v562 = vpop.f32.mrf.mxu0
      %v563 = vadd.f32 0.0, %v562
      %564 = vmatmul.f32.gmra.mxu0 %v280
      %v565 = vpop.f32.mrf.mxu0
      %v566 = vadd.f32 0.0, %v565
      %567 = vmatmul.f32.gmra.mxu0 %v284
      %v568 = vpop.f32.mrf.mxu0
      %v569 = vadd.f32 0.0, %v568
      %570 = vmatmul.f32.gmra.mxu0 %v288
      %v571 = vpop.f32.mrf.mxu0
      %v572 = vadd.f32 0.0, %v571
      %573 = vmatmul.f32.gmra.mxu0 %v292
      %v574 = vpop.f32.mrf.mxu0
      %v575 = vadd.f32 0.0, %v574
      %576 = vmatmul.f32.gmra.mxu0 %v296
      %v577 = vpop.f32.mrf.mxu0
      %v578 = vadd.f32 0.0, %v577
      %579 = vmatmul.f32.gmra.mxu0 %v300
      %v580 = vpop.f32.mrf.mxu0
      %v581 = vadd.f32 0.0, %v580
      %582 = vmatmul.f32.gmra.mxu0 %v304
      %v583 = vpop.f32.mrf.mxu0
      %v584 = vadd.f32 0.0, %v583
      %585 = vmatmul.f32.gmra.mxu0 %v308
      %v586 = vpop.f32.mrf.mxu0
      %v587 = vadd.f32 0.0, %v586
      %588 = vmatmul.f32.gmra.mxu0 %v312
      %v589 = vpop.f32.mrf.mxu0
      %v590 = vadd.f32 0.0, %v589
      %591 = vmatmul.f32.gmra.mxu0 %v316
      %v592 = vpop.f32.mrf.mxu0
      %v593 = vadd.f32 0.0, %v592
      %594 = vmatmul.f32.gmra.mxu0 %v320
      %v595 = vpop.f32.mrf.mxu0
      %v596 = vadd.f32 0.0, %v595
      %597 = vmatmul.f32.gmra.mxu0 %v324
      %v598 = vpop.f32.mrf.mxu0
      %v599 = vadd.f32 0.0, %v598
      %600 = vdwg.mxu0
      %601 = vmatpush.msra.mxu0 %v359
      %602 = vmatpush.msra.mxu0 %v358
      %603 = vmatpush.msra.mxu0 %v357
      %604 = vmatpush.msra.mxu0 %v356
      %605 = vmatpush.msra.mxu0 %v355
      %606 = vmatpush.msra.mxu0 %v354
      %607 = vmatpush.msra.mxu0 %v353
      %608 = vmatpush.msra.mxu0 %v352
      %609 = vmatpush.msra.mxu0 %v351
      %610 = vmatpush.msra.mxu0 %v350
      %611 = vmatpush.msra.mxu0 %v349
      %612 = vmatpush.msra.mxu0 %v348
      %613 = vmatpush.msra.mxu0 %v347
      %614 = vmatpush.msra.mxu0 %v346
      %615 = vmatpush.msra.mxu0 %v345
      %616 = vmatpush.msra.mxu0 %v344
      %617 = vmatmul.f32.gmra.mxu0 %v73
      %v618 = vpop.f32.mrf.mxu0
      %v619 = vadd.f32 %v410, %v618
      %620 = vmatmul.f32.gmra.mxu0 %v77
      %v621 = vpop.f32.mrf.mxu0
      %v622 = vadd.f32 %v413, %v621
      %623 = vmatmul.f32.gmra.mxu0 %v81
      %v624 = vpop.f32.mrf.mxu0
      %v625 = vadd.f32 %v416, %v624
      %626 = vmatmul.f32.gmra.mxu0 %v85
      %v627 = vpop.f32.mrf.mxu0
      %v628 = vadd.f32 %v419, %v627
      %629 = vmatmul.f32.gmra.mxu0 %v89
      %v630 = vpop.f32.mrf.mxu0
      %v631 = vadd.f32 %v422, %v630
      %632 = vmatmul.f32.gmra.mxu0 %v93
      %v633 = vpop.f32.mrf.mxu0
      %v634 = vadd.f32 %v425, %v633
      %635 = vmatmul.f32.gmra.mxu0 %v97
      %v636 = vpop.f32.mrf.mxu0
      %v637 = vadd.f32 %v428, %v636
      %638 = vmatmul.f32.gmra.mxu0 %v101
      %v639 = vpop.f32.mrf.mxu0
      %v640 = vadd.f32 %v431, %v639
      %641 = vmatmul.f32.gmra.mxu0 %v105
      %v642 = vpop.f32.mrf.mxu0
      %v643 = vadd.f32 %v434, %v642
      %644 = vmatmul.f32.gmra.mxu0 %v109
      %v645 = vpop.f32.mrf.mxu0
      %v646 = vadd.f32 %v437, %v645
      %647 = vmatmul.f32.gmra.mxu0 %v113
      %v648 = vpop.f32.mrf.mxu0
      %v649 = vadd.f32 %v440, %v648
      %650 = vmatmul.f32.gmra.mxu0 %v117
      %v651 = vpop.f32.mrf.mxu0
      %v652 = vadd.f32 %v443, %v651
      %653 = vmatmul.f32.gmra.mxu0 %v121
      %v654 = vpop.f32.mrf.mxu0
      %v655 = vadd.f32 %v446, %v654
      %656 = vmatmul.f32.gmra.mxu0 %v125
      %v657 = vpop.f32.mrf.mxu0
      %v658 = vadd.f32 %v449, %v657
      %659 = vmatmul.f32.gmra.mxu0 %v129
      %v660 = vpop.f32.mrf.mxu0
      %v661 = vadd.f32 %v452, %v660
      %662 = vmatmul.f32.gmra.mxu0 %v133
      %v663 = vpop.f32.mrf.mxu0
      %v664 = vadd.f32 %v455, %v663
      %665 = vmatmul.f32.gmra.mxu0 %v137
      %v666 = vpop.f32.mrf.mxu0
      %v667 = vadd.f32 %v458, %v666
      %668 = vmatmul.f32.gmra.mxu0 %v141
      %v669 = vpop.f32.mrf.mxu0
      %v670 = vadd.f32 %v461, %v669
      %671 = vmatmul.f32.gmra.mxu0 %v145
      %v672 = vpop.f32.mrf.mxu0
      %v673 = vadd.f32 %v464, %v672
      %674 = vmatmul.f32.gmra.mxu0 %v149
      %v675 = vpop.f32.mrf.mxu0
      %v676 = vadd.f32 %v467, %v675
      %677 = vmatmul.f32.gmra.mxu0 %v153
      %v678 = vpop.f32.mrf.mxu0
      %v679 = vadd.f32 %v470, %v678
      %680 = vmatmul.f32.gmra.mxu0 %v157
      %v681 = vpop.f32.mrf.mxu0
      %v682 = vadd.f32 %v473, %v681
      %683 = vmatmul.f32.gmra.mxu0 %v161
      %v684 = vpop.f32.mrf.mxu0
      %v685 = vadd.f32 %v476, %v684
      %686 = vmatmul.f32.gmra.mxu0 %v165
      %v687 = vpop.f32.mrf.mxu0
      %v688 = vadd.f32 %v479, %v687
      %689 = vmatmul.f32.gmra.mxu0 %v169
      %v690 = vpop.f32.mrf.mxu0
      %v691 = vadd.f32 %v482, %v690
      %692 = vmatmul.f32.gmra.mxu0 %v173
      %v693 = vpop.f32.mrf.mxu0
      %v694 = vadd.f32 %v485, %v693
      %695 = vmatmul.f32.gmra.mxu0 %v177
      %v696 = vpop.f32.mrf.mxu0
      %v697 = vadd.f32 %v488, %v696
      %698 = vmatmul.f32.gmra.mxu0 %v181
      %v699 = vpop.f32.mrf.mxu0
      %v700 = vadd.f32 %v491, %v699
      %701 = vmatmul.f32.gmra.mxu0 %v185
      %v702 = vpop.f32.mrf.mxu0
      %v703 = vadd.f32 %v494, %v702
      %704 = vmatmul.f32.gmra.mxu0 %v189
      %v705 = vpop.f32.mrf.mxu0
      %v706 = vadd.f32 %v497, %v705
      %707 = vmatmul.f32.gmra.mxu0 %v193
      %v708 = vpop.f32.mrf.mxu0
      %v709 = vadd.f32 %v500, %v708
      %710 = vmatmul.f32.gmra.mxu0 %v197
      %v711 = vpop.f32.mrf.mxu0
      %v712 = vadd.f32 %v503, %v711
      %713 = vmatmul.f32.gmra.mxu0 %v201
      %v714 = vpop.f32.mrf.mxu0
      %v715 = vadd.f32 %v506, %v714
      %716 = vmatmul.f32.gmra.mxu0 %v205
      %v717 = vpop.f32.mrf.mxu0
      %v718 = vadd.f32 %v509, %v717
      %719 = vmatmul.f32.gmra.mxu0 %v209
      %v720 = vpop.f32.mrf.mxu0
      %v721 = vadd.f32 %v512, %v720
      %722 = vmatmul.f32.gmra.mxu0 %v213
      %v723 = vpop.f32.mrf.mxu0
      %v724 = vadd.f32 %v515, %v723
      %725 = vmatmul.f32.gmra.mxu0 %v217
      %v726 = vpop.f32.mrf.mxu0
      %v727 = vadd.f32 %v518, %v726
      %728 = vmatmul.f32.gmra.mxu0 %v221
      %v729 = vpop.f32.mrf.mxu0
      %v730 = vadd.f32 %v521, %v729
      %731 = vmatmul.f32.gmra.mxu0 %v225
      %v732 = vpop.f32.mrf.mxu0
      %v733 = vadd.f32 %v524, %v732
      %734 = vmatmul.f32.gmra.mxu0 %v229
      %v735 = vpop.f32.mrf.mxu0
      %v736 = vadd.f32 %v527, %v735
      %737 = vmatmul.f32.gmra.mxu0 %v233
      %v738 = vpop.f32.mrf.mxu0
      %v739 = vadd.f32 %v530, %v738
      %740 = vmatmul.f32.gmra.mxu0 %v237
      %v741 = vpop.f32.mrf.mxu0
      %v742 = vadd.f32 %v533, %v741
      %743 = vmatmul.f32.gmra.mxu0 %v241
      %v744 = vpop.f32.mrf.mxu0
      %v745 = vadd.f32 %v536, %v744
      %746 = vmatmul.f32.gmra.mxu0 %v245
      %v747 = vpop.f32.mrf.mxu0
      %v748 = vadd.f32 %v539, %v747
      %749 = vmatmul.f32.gmra.mxu0 %v249
      %v750 = vpop.f32.mrf.mxu0
      %v751 = vadd.f32 %v542, %v750
      %752 = vmatmul.f32.gmra.mxu0 %v253
      %v753 = vpop.f32.mrf.mxu0
      %v754 = vadd.f32 %v545, %v753
      %755 = vmatmul.f32.gmra.mxu0 %v257
      %v756 = vpop.f32.mrf.mxu0
      %v757 = vadd.f32 %v548, %v756
      %758 = vmatmul.f32.gmra.mxu0 %v261
      %v759 = vpop.f32.mrf.mxu0
      %v760 = vadd.f32 %v551, %v759
      %761 = vmatmul.f32.gmra.mxu0 %v265
      %v762 = vpop.f32.mrf.mxu0
      %v763 = vadd.f32 %v554, %v762
      %764 = vmatmul.f32.gmra.mxu0 %v269
      %v765 = vpop.f32.mrf.mxu0
      %v766 = vadd.f32 %v557, %v765
      %767 = vmatmul.f32.gmra.mxu0 %v273
      %v768 = vpop.f32.mrf.mxu0
      %v769 = vadd.f32 %v560, %v768
      %770 = vmatmul.f32.gmra.mxu0 %v277
      %v771 = vpop.f32.mrf.mxu0
      %v772 = vadd.f32 %v563, %v771
      %773 = vmatmul.f32.gmra.mxu0 %v281
      %v774 = vpop.f32.mrf.mxu0
      %v775 = vadd.f32 %v566, %v774
      %776 = vmatmul.f32.gmra.mxu0 %v285
      %v777 = vpop.f32.mrf.mxu0
      %v778 = vadd.f32 %v569, %v777
      %779 = vmatmul.f32.gmra.mxu0 %v289
      %v780 = vpop.f32.mrf.mxu0
      %v781 = vadd.f32 %v572, %v780
      %782 = vmatmul.f32.gmra.mxu0 %v293
      %v783 = vpop.f32.mrf.mxu0
      %v784 = vadd.f32 %v575, %v783
      %785 = vmatmul.f32.gmra.mxu0 %v297
      %v786 = vpop.f32.mrf.mxu0
      %v787 = vadd.f32 %v578, %v786
      %788 = vmatmul.f32.gmra.mxu0 %v301
      %v789 = vpop.f32.mrf.mxu0
      %v790 = vadd.f32 %v581, %v789
      %791 = vmatmul.f32.gmra.mxu0 %v305
      %v792 = vpop.f32.mrf.mxu0
      %v793 = vadd.f32 %v584, %v792
      %794 = vmatmul.f32.gmra.mxu0 %v309
      %v795 = vpop.f32.mrf.mxu0
      %v796 = vadd.f32 %v587, %v795
      %797 = vmatmul.f32.gmra.mxu0 %v313
      %v798 = vpop.f32.mrf.mxu0
      %v799 = vadd.f32 %v590, %v798
      %800 = vmatmul.f32.gmra.mxu0 %v317
      %v801 = vpop.f32.mrf.mxu0
      %v802 = vadd.f32 %v593, %v801
      %803 = vmatmul.f32.gmra.mxu0 %v321
      %v804 = vpop.f32.mrf.mxu0
      %v805 = vadd.f32 %v596, %v804
      %806 = vmatmul.f32.gmra.mxu0 %v325
      %v807 = vpop.f32.mrf.mxu0
      %v808 = vadd.f32 %v599, %v807
      %809 = vdwg.mxu0
      %810 = vmatpush.msra.mxu0 %v375
      %811 = vmatpush.msra.mxu0 %v374
      %812 = vmatpush.msra.mxu0 %v373
      %813 = vmatpush.msra.mxu0 %v372
      %814 = vmatpush.msra.mxu0 %v371
      %815 = vmatpush.msra.mxu0 %v370
      %816 = vmatpush.msra.mxu0 %v369
      %817 = vmatpush.msra.mxu0 %v368
      %818 = vmatpush.msra.mxu0 %v367
      %819 = vmatpush.msra.mxu0 %v366
      %820 = vmatpush.msra.mxu0 %v365
      %821 = vmatpush.msra.mxu0 %v364
      %822 = vmatpush.msra.mxu0 %v363
      %823 = vmatpush.msra.mxu0 %v362
      %824 = vmatpush.msra.mxu0 %v361
      %825 = vmatpush.msra.mxu0 %v360
      %826 = vmatmul.f32.gmra.mxu0 %v74
      %v827 = vpop.f32.mrf.mxu0
      %v828 = vadd.f32 %v619, %v827
      %829 = vmatmul.f32.gmra.mxu0 %v78
      %v830 = vpop.f32.mrf.mxu0
      %v831 = vadd.f32 %v622, %v830
      %832 = vmatmul.f32.gmra.mxu0 %v82
      %v833 = vpop.f32.mrf.mxu0
      %v834 = vadd.f32 %v625, %v833
      %835 = vmatmul.f32.gmra.mxu0 %v86
      %v836 = vpop.f32.mrf.mxu0
      %v837 = vadd.f32 %v628, %v836
      %838 = vmatmul.f32.gmra.mxu0 %v90
      %v839 = vpop.f32.mrf.mxu0
      %v840 = vadd.f32 %v631, %v839
      %841 = vmatmul.f32.gmra.mxu0 %v94
      %v842 = vpop.f32.mrf.mxu0
      %v843 = vadd.f32 %v634, %v842
      %844 = vmatmul.f32.gmra.mxu0 %v98
      %v845 = vpop.f32.mrf.mxu0
      %v846 = vadd.f32 %v637, %v845
      %847 = vmatmul.f32.gmra.mxu0 %v102
      %v848 = vpop.f32.mrf.mxu0
      %v849 = vadd.f32 %v640, %v848
      %850 = vmatmul.f32.gmra.mxu0 %v106
      %v851 = vpop.f32.mrf.mxu0
      %v852 = vadd.f32 %v643, %v851
      %853 = vmatmul.f32.gmra.mxu0 %v110
      %v854 = vpop.f32.mrf.mxu0
      %v855 = vadd.f32 %v646, %v854
      %856 = vmatmul.f32.gmra.mxu0 %v114
      %v857 = vpop.f32.mrf.mxu0
      %v858 = vadd.f32 %v649, %v857
      %859 = vmatmul.f32.gmra.mxu0 %v118
      %v860 = vpop.f32.mrf.mxu0
      %v861 = vadd.f32 %v652, %v860
      %862 = vmatmul.f32.gmra.mxu0 %v122
      %v863 = vpop.f32.mrf.mxu0
      %v864 = vadd.f32 %v655, %v863
      %865 = vmatmul.f32.gmra.mxu0 %v126
      %v866 = vpop.f32.mrf.mxu0
      %v867 = vadd.f32 %v658, %v866
      %868 = vmatmul.f32.gmra.mxu0 %v130
      %v869 = vpop.f32.mrf.mxu0
      %v870 = vadd.f32 %v661, %v869
      %871 = vmatmul.f32.gmra.mxu0 %v134
      %v872 = vpop.f32.mrf.mxu0
      %v873 = vadd.f32 %v664, %v872
      %874 = vmatmul.f32.gmra.mxu0 %v138
      %v875 = vpop.f32.mrf.mxu0
      %v876 = vadd.f32 %v667, %v875
      %877 = vmatmul.f32.gmra.mxu0 %v142
      %v878 = vpop.f32.mrf.mxu0
      %v879 = vadd.f32 %v670, %v878
      %880 = vmatmul.f32.gmra.mxu0 %v146
      %v881 = vpop.f32.mrf.mxu0
      %v882 = vadd.f32 %v673, %v881
      %883 = vmatmul.f32.gmra.mxu0 %v150
      %v884 = vpop.f32.mrf.mxu0
      %v885 = vadd.f32 %v676, %v884
      %886 = vmatmul.f32.gmra.mxu0 %v154
      %v887 = vpop.f32.mrf.mxu0
      %v888 = vadd.f32 %v679, %v887
      %889 = vmatmul.f32.gmra.mxu0 %v158
      %v890 = vpop.f32.mrf.mxu0
      %v891 = vadd.f32 %v682, %v890
      %892 = vmatmul.f32.gmra.mxu0 %v162
      %v893 = vpop.f32.mrf.mxu0
      %v894 = vadd.f32 %v685, %v893
      %895 = vmatmul.f32.gmra.mxu0 %v166
      %v896 = vpop.f32.mrf.mxu0
      %v897 = vadd.f32 %v688, %v896
      %898 = vmatmul.f32.gmra.mxu0 %v170
      %v899 = vpop.f32.mrf.mxu0
      %v900 = vadd.f32 %v691, %v899
      %901 = vmatmul.f32.gmra.mxu0 %v174
      %v902 = vpop.f32.mrf.mxu0
      %v903 = vadd.f32 %v694, %v902
      %904 = vmatmul.f32.gmra.mxu0 %v178
      %v905 = vpop.f32.mrf.mxu0
      %v906 = vadd.f32 %v697, %v905
      %907 = vmatmul.f32.gmra.mxu0 %v182
      %v908 = vpop.f32.mrf.mxu0
      %v909 = vadd.f32 %v700, %v908
      %910 = vmatmul.f32.gmra.mxu0 %v186
      %v911 = vpop.f32.mrf.mxu0
      %v912 = vadd.f32 %v703, %v911
      %913 = vmatmul.f32.gmra.mxu0 %v190
      %v914 = vpop.f32.mrf.mxu0
      %v915 = vadd.f32 %v706, %v914
      %916 = vmatmul.f32.gmra.mxu0 %v194
      %v917 = vpop.f32.mrf.mxu0
      %v918 = vadd.f32 %v709, %v917
      %919 = vmatmul.f32.gmra.mxu0 %v198
      %v920 = vpop.f32.mrf.mxu0
      %v921 = vadd.f32 %v712, %v920
      %922 = vmatmul.f32.gmra.mxu0 %v202
      %v923 = vpop.f32.mrf.mxu0
      %v924 = vadd.f32 %v715, %v923
      %925 = vmatmul.f32.gmra.mxu0 %v206
      %v926 = vpop.f32.mrf.mxu0
      %v927 = vadd.f32 %v718, %v926
      %928 = vmatmul.f32.gmra.mxu0 %v210
      %v929 = vpop.f32.mrf.mxu0
      %v930 = vadd.f32 %v721, %v929
      %931 = vmatmul.f32.gmra.mxu0 %v214
      %v932 = vpop.f32.mrf.mxu0
      %v933 = vadd.f32 %v724, %v932
      %934 = vmatmul.f32.gmra.mxu0 %v218
      %v935 = vpop.f32.mrf.mxu0
      %v936 = vadd.f32 %v727, %v935
      %937 = vmatmul.f32.gmra.mxu0 %v222
      %v938 = vpop.f32.mrf.mxu0
      %v939 = vadd.f32 %v730, %v938
      %940 = vmatmul.f32.gmra.mxu0 %v226
      %v941 = vpop.f32.mrf.mxu0
      %v942 = vadd.f32 %v733, %v941
      %943 = vmatmul.f32.gmra.mxu0 %v230
      %v944 = vpop.f32.mrf.mxu0
      %v945 = vadd.f32 %v736, %v944
      %946 = vmatmul.f32.gmra.mxu0 %v234
      %v947 = vpop.f32.mrf.mxu0
      %v948 = vadd.f32 %v739, %v947
      %949 = vmatmul.f32.gmra.mxu0 %v238
      %v950 = vpop.f32.mrf.mxu0
      %v951 = vadd.f32 %v742, %v950
      %952 = vmatmul.f32.gmra.mxu0 %v242
      %v953 = vpop.f32.mrf.mxu0
      %v954 = vadd.f32 %v745, %v953
      %955 = vmatmul.f32.gmra.mxu0 %v246
      %v956 = vpop.f32.mrf.mxu0
      %v957 = vadd.f32 %v748, %v956
      %958 = vmatmul.f32.gmra.mxu0 %v250
      %v959 = vpop.f32.mrf.mxu0
      %v960 = vadd.f32 %v751, %v959
      %961 = vmatmul.f32.gmra.mxu0 %v254
      %v962 = vpop.f32.mrf.mxu0
      %v963 = vadd.f32 %v754, %v962
      %964 = vmatmul.f32.gmra.mxu0 %v258
      %v965 = vpop.f32.mrf.mxu0
      %v966 = vadd.f32 %v757, %v965
      %967 = vmatmul.f32.gmra.mxu0 %v262
      %v968 = vpop.f32.mrf.mxu0
      %v969 = vadd.f32 %v760, %v968
      %970 = vmatmul.f32.gmra.mxu0 %v266
      %v971 = vpop.f32.mrf.mxu0
      %v972 = vadd.f32 %v763, %v971
      %973 = vmatmul.f32.gmra.mxu0 %v270
      %v974 = vpop.f32.mrf.mxu0
      %v975 = vadd.f32 %v766, %v974
      %976 = vmatmul.f32.gmra.mxu0 %v274
      %v977 = vpop.f32.mrf.mxu0
      %v978 = vadd.f32 %v769, %v977
      %979 = vmatmul.f32.gmra.mxu0 %v278
      %v980 = vpop.f32.mrf.mxu0
      %v981 = vadd.f32 %v772, %v980
      %982 = vmatmul.f32.gmra.mxu0 %v282
      %v983 = vpop.f32.mrf.mxu0
      %v984 = vadd.f32 %v775, %v983
      %985 = vmatmul.f32.gmra.mxu0 %v286
      %v986 = vpop.f32.mrf.mxu0
      %v987 = vadd.f32 %v778, %v986
      %988 = vmatmul.f32.gmra.mxu0 %v290
      %v989 = vpop.f32.mrf.mxu0
      %v990 = vadd.f32 %v781, %v989
      %991 = vmatmul.f32.gmra.mxu0 %v294
      %v992 = vpop.f32.mrf.mxu0
      %v993 = vadd.f32 %v784, %v992
      %994 = vmatmul.f32.gmra.mxu0 %v298
      %v995 = vpop.f32.mrf.mxu0
      %v996 = vadd.f32 %v787, %v995
      %997 = vmatmul.f32.gmra.mxu0 %v302
      %v998 = vpop.f32.mrf.mxu0
      %v999 = vadd.f32 %v790, %v998
      %1000 = vmatmul.f32.gmra.mxu0 %v306
      %v1001 = vpop.f32.mrf.mxu0
      %v1002 = vadd.f32 %v793, %v1001
      %1003 = vmatmul.f32.gmra.mxu0 %v310
      %v1004 = vpop.f32.mrf.mxu0
      %v1005 = vadd.f32 %v796, %v1004
      %1006 = vmatmul.f32.gmra.mxu0 %v314
      %v1007 = vpop.f32.mrf.mxu0
      %v1008 = vadd.f32 %v799, %v1007
      %1009 = vmatmul.f32.gmra.mxu0 %v318
      %v1010 = vpop.f32.mrf.mxu0
      %v1011 = vadd.f32 %v802, %v1010
      %1012 = vmatmul.f32.gmra.mxu0 %v322
      %v1013 = vpop.f32.mrf.mxu0
      %v1014 = vadd.f32 %v805, %v1013
      %1015 = vmatmul.f32.gmra.mxu0 %v326
      %v1016 = vpop.f32.mrf.mxu0
      %v1017 = vadd.f32 %v808, %v1016
      %1018 = vdwg.mxu0
      %1019 = vmatpush.msra.mxu0 %v391
      %1020 = vmatpush.msra.mxu0 %v390
      %1021 = vmatpush.msra.mxu0 %v389
      %1022 = vmatpush.msra.mxu0 %v388
      %1023 = vmatpush.msra.mxu0 %v387
      %1024 = vmatpush.msra.mxu0 %v386
      %1025 = vmatpush.msra.mxu0 %v385
      %1026 = vmatpush.msra.mxu0 %v384
      %1027 = vmatpush.msra.mxu0 %v383
      %1028 = vmatpush.msra.mxu0 %v382
      %1029 = vmatpush.msra.mxu0 %v381
      %1030 = vmatpush.msra.mxu0 %v380
      %1031 = vmatpush.msra.mxu0 %v379
      %1032 = vmatpush.msra.mxu0 %v378
      %1033 = vmatpush.msra.mxu0 %v377
      %1034 = vmatpush.msra.mxu0 %v376
      %1035 = vmatmul.f32.gmra.mxu0 %v75
      %v1036 = vpop.f32.mrf.mxu0
      %v1037 = vadd.f32 %v828, %v1036
      %1038 = vmatmul.f32.gmra.mxu0 %v79
      %v1039 = vpop.f32.mrf.mxu0
      %v1040 = vadd.f32 %v831, %v1039
      %1041 = vmatmul.f32.gmra.mxu0 %v83
      %v1042 = vpop.f32.mrf.mxu0
      %v1043 = vadd.f32 %v834, %v1042
      %1044 = vmatmul.f32.gmra.mxu0 %v87
      %v1045 = vpop.f32.mrf.mxu0
      %v1046 = vadd.f32 %v837, %v1045
      %1047 = vmatmul.f32.gmra.mxu0 %v91
      %v1048 = vpop.f32.mrf.mxu0
      %v1049 = vadd.f32 %v840, %v1048
      %1050 = vmatmul.f32.gmra.mxu0 %v95
      %v1051 = vpop.f32.mrf.mxu0
      %v1052 = vadd.f32 %v843, %v1051
      %1053 = vmatmul.f32.gmra.mxu0 %v99
      %v1054 = vpop.f32.mrf.mxu0
      %v1055 = vadd.f32 %v846, %v1054
      %1056 = vmatmul.f32.gmra.mxu0 %v103
      %v1057 = vpop.f32.mrf.mxu0
      %v1058 = vadd.f32 %v849, %v1057
      %1059 = vmatmul.f32.gmra.mxu0 %v107
      %v1060 = vpop.f32.mrf.mxu0
      %v1061 = vadd.f32 %v852, %v1060
      %1062 = vmatmul.f32.gmra.mxu0 %v111
      %v1063 = vpop.f32.mrf.mxu0
      %v1064 = vadd.f32 %v855, %v1063
      %1065 = vmatmul.f32.gmra.mxu0 %v115
      %v1066 = vpop.f32.mrf.mxu0
      %v1067 = vadd.f32 %v858, %v1066
      %1068 = vmatmul.f32.gmra.mxu0 %v119
      %v1069 = vpop.f32.mrf.mxu0
      %v1070 = vadd.f32 %v861, %v1069
      %1071 = vmatmul.f32.gmra.mxu0 %v123
      %v1072 = vpop.f32.mrf.mxu0
      %v1073 = vadd.f32 %v864, %v1072
      %1074 = vmatmul.f32.gmra.mxu0 %v127
      %v1075 = vpop.f32.mrf.mxu0
      %v1076 = vadd.f32 %v867, %v1075
      %1077 = vmatmul.f32.gmra.mxu0 %v131
      %v1078 = vpop.f32.mrf.mxu0
      %v1079 = vadd.f32 %v870, %v1078
      %1080 = vmatmul.f32.gmra.mxu0 %v135
      %v1081 = vpop.f32.mrf.mxu0
      %v1082 = vadd.f32 %v873, %v1081
      %1083 = vmatmul.f32.gmra.mxu0 %v139
      %v1084 = vpop.f32.mrf.mxu0
      %v1085 = vadd.f32 %v876, %v1084
      %1086 = vmatmul.f32.gmra.mxu0 %v143
      %v1087 = vpop.f32.mrf.mxu0
      %v1088 = vadd.f32 %v879, %v1087
      %1089 = vmatmul.f32.gmra.mxu0 %v147
      %v1090 = vpop.f32.mrf.mxu0
      %v1091 = vadd.f32 %v882, %v1090
      %1092 = vmatmul.f32.gmra.mxu0 %v151
      %v1093 = vpop.f32.mrf.mxu0
      %v1094 = vadd.f32 %v885, %v1093
      %1095 = vmatmul.f32.gmra.mxu0 %v155
      %v1096 = vpop.f32.mrf.mxu0
      %v1097 = vadd.f32 %v888, %v1096
      %1098 = vmatmul.f32.gmra.mxu0 %v159
      %v1099 = vpop.f32.mrf.mxu0
      %v1100 = vadd.f32 %v891, %v1099
      %1101 = vmatmul.f32.gmra.mxu0 %v163
      %v1102 = vpop.f32.mrf.mxu0
      %v1103 = vadd.f32 %v894, %v1102
      %1104 = vmatmul.f32.gmra.mxu0 %v167
      %v1105 = vpop.f32.mrf.mxu0
      %v1106 = vadd.f32 %v897, %v1105
      %1107 = vmatmul.f32.gmra.mxu0 %v171
      %v1108 = vpop.f32.mrf.mxu0
      %v1109 = vadd.f32 %v900, %v1108
      %1110 = vmatmul.f32.gmra.mxu0 %v175
      %v1111 = vpop.f32.mrf.mxu0
      %v1112 = vadd.f32 %v903, %v1111
      %1113 = vmatmul.f32.gmra.mxu0 %v179
      %v1114 = vpop.f32.mrf.mxu0
      %v1115 = vadd.f32 %v906, %v1114
      %1116 = vmatmul.f32.gmra.mxu0 %v183
      %v1117 = vpop.f32.mrf.mxu0
      %v1118 = vadd.f32 %v909, %v1117
      %1119 = vmatmul.f32.gmra.mxu0 %v187
      %v1120 = vpop.f32.mrf.mxu0
      %v1121 = vadd.f32 %v912, %v1120
      %1122 = vmatmul.f32.gmra.mxu0 %v191
      %v1123 = vpop.f32.mrf.mxu0
      %v1124 = vadd.f32 %v915, %v1123
      %1125 = vmatmul.f32.gmra.mxu0 %v195
      %v1126 = vpop.f32.mrf.mxu0
      %v1127 = vadd.f32 %v918, %v1126
      %1128 = vmatmul.f32.gmra.mxu0 %v199
      %v1129 = vpop.f32.mrf.mxu0
      %v1130 = vadd.f32 %v921, %v1129
      %1131 = vmatmul.f32.gmra.mxu0 %v203
      %v1132 = vpop.f32.mrf.mxu0
      %v1133 = vadd.f32 %v924, %v1132
      %1134 = vmatmul.f32.gmra.mxu0 %v207
      %v1135 = vpop.f32.mrf.mxu0
      %v1136 = vadd.f32 %v927, %v1135
      %1137 = vmatmul.f32.gmra.mxu0 %v211
      %v1138 = vpop.f32.mrf.mxu0
      %v1139 = vadd.f32 %v930, %v1138
      %1140 = vmatmul.f32.gmra.mxu0 %v215
      %v1141 = vpop.f32.mrf.mxu0
      %v1142 = vadd.f32 %v933, %v1141
      %1143 = vmatmul.f32.gmra.mxu0 %v219
      %v1144 = vpop.f32.mrf.mxu0
      %v1145 = vadd.f32 %v936, %v1144
      %1146 = vmatmul.f32.gmra.mxu0 %v223
      %v1147 = vpop.f32.mrf.mxu0
      %v1148 = vadd.f32 %v939, %v1147
      %1149 = vmatmul.f32.gmra.mxu0 %v227
      %v1150 = vpop.f32.mrf.mxu0
      %v1151 = vadd.f32 %v942, %v1150
      %1152 = vmatmul.f32.gmra.mxu0 %v231
      %v1153 = vpop.f32.mrf.mxu0
      %v1154 = vadd.f32 %v945, %v1153
      %1155 = vmatmul.f32.gmra.mxu0 %v235
      %v1156 = vpop.f32.mrf.mxu0
      %v1157 = vadd.f32 %v948, %v1156
      %1158 = vmatmul.f32.gmra.mxu0 %v239
      %v1159 = vpop.f32.mrf.mxu0
      %v1160 = vadd.f32 %v951, %v1159
      %1161 = vmatmul.f32.gmra.mxu0 %v243
      %v1162 = vpop.f32.mrf.mxu0
      %v1163 = vadd.f32 %v954, %v1162
      %1164 = vmatmul.f32.gmra.mxu0 %v247
      %v1165 = vpop.f32.mrf.mxu0
      %v1166 = vadd.f32 %v957, %v1165
      %1167 = vmatmul.f32.gmra.mxu0 %v251
      %v1168 = vpop.f32.mrf.mxu0
      %v1169 = vadd.f32 %v960, %v1168
      %1170 = vmatmul.f32.gmra.mxu0 %v255
      %v1171 = vpop.f32.mrf.mxu0
      %v1172 = vadd.f32 %v963, %v1171
      %1173 = vmatmul.f32.gmra.mxu0 %v259
      %v1174 = vpop.f32.mrf.mxu0
      %v1175 = vadd.f32 %v966, %v1174
      %1176 = vmatmul.f32.gmra.mxu0 %v263
      %v1177 = vpop.f32.mrf.mxu0
      %v1178 = vadd.f32 %v969, %v1177
      %1179 = vmatmul.f32.gmra.mxu0 %v267
      %v1180 = vpop.f32.mrf.mxu0
      %v1181 = vadd.f32 %v972, %v1180
      %1182 = vmatmul.f32.gmra.mxu0 %v271
      %v1183 = vpop.f32.mrf.mxu0
      %v1184 = vadd.f32 %v975, %v1183
      %1185 = vmatmul.f32.gmra.mxu0 %v275
      %v1186 = vpop.f32.mrf.mxu0
      %v1187 = vadd.f32 %v978, %v1186
      %1188 = vmatmul.f32.gmra.mxu0 %v279
      %v1189 = vpop.f32.mrf.mxu0
      %v1190 = vadd.f32 %v981, %v1189
      %1191 = vmatmul.f32.gmra.mxu0 %v283
      %v1192 = vpop.f32.mrf.mxu0
      %v1193 = vadd.f32 %v984, %v1192
      %1194 = vmatmul.f32.gmra.mxu0 %v287
      %v1195 = vpop.f32.mrf.mxu0
      %v1196 = vadd.f32 %v987, %v1195
      %1197 = vmatmul.f32.gmra.mxu0 %v291
      %v1198 = vpop.f32.mrf.mxu0
      %v1199 = vadd.f32 %v990, %v1198
      %1200 = vmatmul.f32.gmra.mxu0 %v295
      %v1201 = vpop.f32.mrf.mxu0
      %v1202 = vadd.f32 %v993, %v1201
      %1203 = vmatmul.f32.gmra.mxu0 %v299
      %v1204 = vpop.f32.mrf.mxu0
      %v1205 = vadd.f32 %v996, %v1204
      %1206 = vmatmul.f32.gmra.mxu0 %v303
      %v1207 = vpop.f32.mrf.mxu0
      %v1208 = vadd.f32 %v999, %v1207
      %1209 = vmatmul.f32.gmra.mxu0 %v307
      %v1210 = vpop.f32.mrf.mxu0
      %v1211 = vadd.f32 %v1002, %v1210
      %1212 = vmatmul.f32.gmra.mxu0 %v311
      %v1213 = vpop.f32.mrf.mxu0
      %v1214 = vadd.f32 %v1005, %v1213
      %1215 = vmatmul.f32.gmra.mxu0 %v315
      %v1216 = vpop.f32.mrf.mxu0
      %v1217 = vadd.f32 %v1008, %v1216
      %1218 = vmatmul.f32.gmra.mxu0 %v319
      %v1219 = vpop.f32.mrf.mxu0
      %v1220 = vadd.f32 %v1011, %v1219
      %1221 = vmatmul.f32.gmra.mxu0 %v323
      %v1222 = vpop.f32.mrf.mxu0
      %v1223 = vadd.f32 %v1014, %v1222
      %1224 = vmatmul.f32.gmra.mxu0 %v327
      %v1225 = vpop.f32.mrf.mxu0
      %v1226 = vadd.f32 %v1017, %v1225
      %1227 = vdwg.mxu0
      %s1228 = scalar_lea.vmem [#allocation2], %s45
      %1229 = vst [vmem:[%s1228] sm:$0xff] %v1037
      %1230 = vst [vmem:[%s1228 + $0x8] sm:$0xff] %v1040
      %1231 = vst [vmem:[%s1228 + $0x10] sm:$0xff] %v1043
      %1232 = vst [vmem:[%s1228 + $0x18] sm:$0xff] %v1046
      %1233 = vst [vmem:[%s1228 + $0x20] sm:$0xff] %v1049
      %1234 = vst [vmem:[%s1228 + $0x28] sm:$0xff] %v1052
      %1235 = vst [vmem:[%s1228 + $0x30] sm:$0xff] %v1055
      %1236 = vst [vmem:[%s1228 + $0x38] sm:$0xff] %v1058
      %1237 = vst [vmem:[%s1228 + $0x40] sm:$0xff] %v1061
      %1238 = vst [vmem:[%s1228 + $0x48] sm:$0xff] %v1064
      %1239 = vst [vmem:[%s1228 + $0x50] sm:$0xff] %v1067
      %1240 = vst [vmem:[%s1228 + $0x58] sm:$0xff] %v1070
      %1241 = vst [vmem:[%s1228 + $0x60] sm:$0xff] %v1073
      %1242 = vst [vmem:[%s1228 + $0x68] sm:$0xff] %v1076
      %1243 = vst [vmem:[%s1228 + $0x70] sm:$0xff] %v1079
      %1244 = vst [vmem:[%s1228 + $0x78] sm:$0xff] %v1082
      %1245 = vst [vmem:[%s1228 + $0x80] sm:$0xff] %v1085
      %1246 = vst [vmem:[%s1228 + $0x88] sm:$0xff] %v1088
      %1247 = vst [vmem:[%s1228 + $0x90] sm:$0xff] %v1091
      %1248 = vst [vmem:[%s1228 + $0x98] sm:$0xff] %v1094
      %1249 = vst [vmem:[%s1228 + $0xa0] sm:$0xff] %v1097
      %1250 = vst [vmem:[%s1228 + $0xa8] sm:$0xff] %v1100
      %1251 = vst [vmem:[%s1228 + $0xb0] sm:$0xff] %v1103
      %1252 = vst [vmem:[%s1228 + $0xb8] sm:$0xff] %v1106
      %1253 = vst [vmem:[%s1228 + $0xc0] sm:$0xff] %v1109
      %1254 = vst [vmem:[%s1228 + $0xc8] sm:$0xff] %v1112
      %1255 = vst [vmem:[%s1228 + $0xd0] sm:$0xff] %v1115
      %1256 = vst [vmem:[%s1228 + $0xd8] sm:$0xff] %v1118
      %1257 = vst [vmem:[%s1228 + $0xe0] sm:$0xff] %v1121
      %1258 = vst [vmem:[%s1228 + $0xe8] sm:$0xff] %v1124
      %1259 = vst [vmem:[%s1228 + $0xf0] sm:$0xff] %v1127
      %1260 = vst [vmem:[%s1228 + $0xf8] sm:$0xff] %v1130
      %1261 = vst [vmem:[%s1228 + $0x100] sm:$0xff] %v1133
      %1262 = vst [vmem:[%s1228 + $0x108] sm:$0xff] %v1136
      %1263 = vst [vmem:[%s1228 + $0x110] sm:$0xff] %v1139
      %1264 = vst [vmem:[%s1228 + $0x118] sm:$0xff] %v1142
      %1265 = vst [vmem:[%s1228 + $0x120] sm:$0xff] %v1145
      %1266 = vst [vmem:[%s1228 + $0x128] sm:$0xff] %v1148
      %1267 = vst [vmem:[%s1228 + $0x130] sm:$0xff] %v1151
      %1268 = vst [vmem:[%s1228 + $0x138] sm:$0xff] %v1154
      %1269 = vst [vmem:[%s1228 + $0x140] sm:$0xff] %v1157
      %1270 = vst [vmem:[%s1228 + $0x148] sm:$0xff] %v1160
      %1271 = vst [vmem:[%s1228 + $0x150] sm:$0xff] %v1163
      %1272 = vst [vmem:[%s1228 + $0x158] sm:$0xff] %v1166
      %1273 = vst [vmem:[%s1228 + $0x160] sm:$0xff] %v1169
      %1274 = vst [vmem:[%s1228 + $0x168] sm:$0xff] %v1172
      %1275 = vst [vmem:[%s1228 + $0x170] sm:$0xff] %v1175
      %1276 = vst [vmem:[%s1228 + $0x178] sm:$0xff] %v1178
      %1277 = vst [vmem:[%s1228 + $0x180] sm:$0xff] %v1181
      %1278 = vst [vmem:[%s1228 + $0x188] sm:$0xff] %v1184
      %1279 = vst [vmem:[%s1228 + $0x190] sm:$0xff] %v1187
      %1280 = vst [vmem:[%s1228 + $0x198] sm:$0xff] %v1190
      %1281 = vst [vmem:[%s1228 + $0x1a0] sm:$0xff] %v1193
      %1282 = vst [vmem:[%s1228 + $0x1a8] sm:$0xff] %v1196
      %1283 = vst [vmem:[%s1228 + $0x1b0] sm:$0xff] %v1199
      %1284 = vst [vmem:[%s1228 + $0x1b8] sm:$0xff] %v1202
      %1285 = vst [vmem:[%s1228 + $0x1c0] sm:$0xff] %v1205
      %1286 = vst [vmem:[%s1228 + $0x1c8] sm:$0xff] %v1208
      %1287 = vst [vmem:[%s1228 + $0x1d0] sm:$0xff] %v1211
      %1288 = vst [vmem:[%s1228 + $0x1d8] sm:$0xff] %v1214
      %1289 = vst [vmem:[%s1228 + $0x1e0] sm:$0xff] %v1217
      %1290 = vst [vmem:[%s1228 + $0x1e8] sm:$0xff] %v1220
      %1291 = vst [vmem:[%s1228 + $0x1f0] sm:$0xff] %v1223
      %1292 = vst [vmem:[%s1228 + $0x1f8] sm:$0xff] %v1226
    $region21: #{tpu_custom_call.1} parent=1 // pred_fallthru
      _
    %p1293 = scmp.eq.s32.totalorder 0, 0
    // Predicated region
    $region27: #{tpu_custom_call.1} parent=1 // pred_check
      %p1294 = pneg %p1293
    $region28: #{tpu_custom_call.1} parent=1 // pred_check_branch
      %1296 = sbr.rel (%p1294) target = $region30
    $region29: #{tpu_custom_call.1} parent=1 // pred_region
      %1297 = vst [vmem:[#allocation3] sm:$0xff] 0.0
      %1298 = vst [vmem:[#allocation3 + $0x8] sm:$0xff] 0.0
      %1299 = vst [vmem:[#allocation3 + $0x10] sm:$0xff] 0.0
      %1300 = vst [vmem:[#allocation3 + $0x18] sm:$0xff] 0.0
      %1301 = vst [vmem:[#allocation3 + $0x20] sm:$0xff] 0.0
      %1302 = vst [vmem:[#allocation3 + $0x28] sm:$0xff] 0.0
      %1303 = vst [vmem:[#allocation3 + $0x30] sm:$0xff] 0.0
      %1304 = vst [vmem:[#allocation3 + $0x38] sm:$0xff] 0.0
      %1305 = vst [vmem:[#allocation3 + $0x40] sm:$0xff] 0.0
      %1306 = vst [vmem:[#allocation3 + $0x48] sm:$0xff] 0.0
      %1307 = vst [vmem:[#allocation3 + $0x50] sm:$0xff] 0.0
      %1308 = vst [vmem:[#allocation3 + $0x58] sm:$0xff] 0.0
      %1309 = vst [vmem:[#allocation3 + $0x60] sm:$0xff] 0.0
      %1310 = vst [vmem:[#allocation3 + $0x68] sm:$0xff] 0.0
      %1311 = vst [vmem:[#allocation3 + $0x70] sm:$0xff] 0.0
      %1312 = vst [vmem:[#allocation3 + $0x78] sm:$0xff] 0.0
      %1313 = vst [vmem:[#allocation3 + $0x80] sm:$0xff] 0.0
      %1314 = vst [vmem:[#allocation3 + $0x88] sm:$0xff] 0.0
      %1315 = vst [vmem:[#allocation3 + $0x90] sm:$0xff] 0.0
      %1316 = vst [vmem:[#allocation3 + $0x98] sm:$0xff] 0.0
      %1317 = vst [vmem:[#allocation3 + $0xa0] sm:$0xff] 0.0
      %1318 = vst [vmem:[#allocation3 + $0xa8] sm:$0xff] 0.0
      %1319 = vst [vmem:[#allocation3 + $0xb0] sm:$0xff] 0.0
      %1320 = vst [vmem:[#allocation3 + $0xb8] sm:$0xff] 0.0
      %1321 = vst [vmem:[#allocation3 + $0xc0] sm:$0xff] 0.0
      %1322 = vst [vmem:[#allocation3 + $0xc8] sm:$0xff] 0.0
      %1323 = vst [vmem:[#allocation3 + $0xd0] sm:$0xff] 0.0
      %1324 = vst [vmem:[#allocation3 + $0xd8] sm:$0xff] 0.0
      %1325 = vst [vmem:[#allocation3 + $0xe0] sm:$0xff] 0.0
      %1326 = vst [vmem:[#allocation3 + $0xe8] sm:$0xff] 0.0
      %1327 = vst [vmem:[#allocation3 + $0xf0] sm:$0xff] 0.0
      %1328 = vst [vmem:[#allocation3 + $0xf8] sm:$0xff] 0.0
      %1329 = vst [vmem:[#allocation3 + $0x100] sm:$0xff] 0.0
      %1330 = vst [vmem:[#allocation3 + $0x108] sm:$0xff] 0.0
      %1331 = vst [vmem:[#allocation3 + $0x110] sm:$0xff] 0.0
      %1332 = vst [vmem:[#allocation3 + $0x118] sm:$0xff] 0.0
      %1333 = vst [vmem:[#allocation3 + $0x120] sm:$0xff] 0.0
      %1334 = vst [vmem:[#allocation3 + $0x128] sm:$0xff] 0.0
      %1335 = vst [vmem:[#allocation3 + $0x130] sm:$0xff] 0.0
      %1336 = vst [vmem:[#allocation3 + $0x138] sm:$0xff] 0.0
      %1337 = vst [vmem:[#allocation3 + $0x140] sm:$0xff] 0.0
      %1338 = vst [vmem:[#allocation3 + $0x148] sm:$0xff] 0.0
      %1339 = vst [vmem:[#allocation3 + $0x150] sm:$0xff] 0.0
      %1340 = vst [vmem:[#allocation3 + $0x158] sm:$0xff] 0.0
      %1341 = vst [vmem:[#allocation3 + $0x160] sm:$0xff] 0.0
      %1342 = vst [vmem:[#allocation3 + $0x168] sm:$0xff] 0.0
      %1343 = vst [vmem:[#allocation3 + $0x170] sm:$0xff] 0.0
      %1344 = vst [vmem:[#allocation3 + $0x178] sm:$0xff] 0.0
      %1345 = vst [vmem:[#allocation3 + $0x180] sm:$0xff] 0.0
      %1346 = vst [vmem:[#allocation3 + $0x188] sm:$0xff] 0.0
      %1347 = vst [vmem:[#allocation3 + $0x190] sm:$0xff] 0.0
      %1348 = vst [vmem:[#allocation3 + $0x198] sm:$0xff] 0.0
      %1349 = vst [vmem:[#allocation3 + $0x1a0] sm:$0xff] 0.0
      %1350 = vst [vmem:[#allocation3 + $0x1a8] sm:$0xff] 0.0
      %1351 = vst [vmem:[#allocation3 + $0x1b0] sm:$0xff] 0.0
      %1352 = vst [vmem:[#allocation3 + $0x1b8] sm:$0xff] 0.0
      %1353 = vst [vmem:[#allocation3 + $0x1c0] sm:$0xff] 0.0
      %1354 = vst [vmem:[#allocation3 + $0x1c8] sm:$0xff] 0.0
      %1355 = vst [vmem:[#allocation3 + $0x1d0] sm:$0xff] 0.0
      %1356 = vst [vmem:[#allocation3 + $0x1d8] sm:$0xff] 0.0
      %1357 = vst [vmem:[#allocation3 + $0x1e0] sm:$0xff] 0.0
      %1358 = vst [vmem:[#allocation3 + $0x1e8] sm:$0xff] 0.0
      %1359 = vst [vmem:[#allocation3 + $0x1f0] sm:$0xff] 0.0
      %1360 = vst [vmem:[#allocation3 + $0x1f8] sm:$0xff] 0.0
    $region30: #{tpu_custom_call.1} parent=1 // pred_fallthru
      _
    %v1361 = vld [vmem:[#allocation3] sm:$0xff]
    %v1362 = vld [vmem:[#allocation3 + $0x8] sm:$0xff]
    %v1363 = vld [vmem:[#allocation3 + $0x10] sm:$0xff]
    %v1364 = vld [vmem:[#allocation3 + $0x18] sm:$0xff]
    %v1365 = vld [vmem:[#allocation3 + $0x20] sm:$0xff]
    %v1366 = vld [vmem:[#allocation3 + $0x28] sm:$0xff]
    %v1367 = vld [vmem:[#allocation3 + $0x30] sm:$0xff]
    %v1368 = vld [vmem:[#allocation3 + $0x38] sm:$0xff]
    %v1369 = vld [vmem:[#allocation3 + $0x40] sm:$0xff]
    %v1370 = vld [vmem:[#allocation3 + $0x48] sm:$0xff]
    %v1371 = vld [vmem:[#allocation3 + $0x50] sm:$0xff]
    %v1372 = vld [vmem:[#allocation3 + $0x58] sm:$0xff]
    %v1373 = vld [vmem:[#allocation3 + $0x60] sm:$0xff]
    %v1374 = vld [vmem:[#allocation3 + $0x68] sm:$0xff]
    %v1375 = vld [vmem:[#allocation3 + $0x70] sm:$0xff]
    %v1376 = vld [vmem:[#allocation3 + $0x78] sm:$0xff]
    %v1377 = vld [vmem:[#allocation3 + $0x80] sm:$0xff]
    %v1378 = vld [vmem:[#allocation3 + $0x88] sm:$0xff]
    %v1379 = vld [vmem:[#allocation3 + $0x90] sm:$0xff]
    %v1380 = vld [vmem:[#allocation3 + $0x98] sm:$0xff]
    %v1381 = vld [vmem:[#allocation3 + $0xa0] sm:$0xff]
    %v1382 = vld [vmem:[#allocation3 + $0xa8] sm:$0xff]
    %v1383 = vld [vmem:[#allocation3 + $0xb0] sm:$0xff]
    %v1384 = vld [vmem:[#allocation3 + $0xb8] sm:$0xff]
    %v1385 = vld [vmem:[#allocation3 + $0xc0] sm:$0xff]
    %v1386 = vld [vmem:[#allocation3 + $0xc8] sm:$0xff]
    %v1387 = vld [vmem:[#allocation3 + $0xd0] sm:$0xff]
    %v1388 = vld [vmem:[#allocation3 + $0xd8] sm:$0xff]
    %v1389 = vld [vmem:[#allocation3 + $0xe0] sm:$0xff]
    %v1390 = vld [vmem:[#allocation3 + $0xe8] sm:$0xff]
    %v1391 = vld [vmem:[#allocation3 + $0xf0] sm:$0xff]
    %v1392 = vld [vmem:[#allocation3 + $0xf8] sm:$0xff]
    %v1393 = vld [vmem:[#allocation3 + $0x100] sm:$0xff]
    %v1394 = vld [vmem:[#allocation3 + $0x108] sm:$0xff]
    %v1395 = vld [vmem:[#allocation3 + $0x110] sm:$0xff]
    %v1396 = vld [vmem:[#allocation3 + $0x118] sm:$0xff]
    %v1397 = vld [vmem:[#allocation3 + $0x120] sm:$0xff]
    %v1398 = vld [vmem:[#allocation3 + $0x128] sm:$0xff]
    %v1399 = vld [vmem:[#allocation3 + $0x130] sm:$0xff]
    %v1400 = vld [vmem:[#allocation3 + $0x138] sm:$0xff]
    %v1401 = vld [vmem:[#allocation3 + $0x140] sm:$0xff]
    %v1402 = vld [vmem:[#allocation3 + $0x148] sm:$0xff]
    %v1403 = vld [vmem:[#allocation3 + $0x150] sm:$0xff]
    %v1404 = vld [vmem:[#allocation3 + $0x158] sm:$0xff]
    %v1405 = vld [vmem:[#allocation3 + $0x160] sm:$0xff]
    %v1406 = vld [vmem:[#allocation3 + $0x168] sm:$0xff]
    %v1407 = vld [vmem:[#allocation3 + $0x170] sm:$0xff]
    %v1408 = vld [vmem:[#allocation3 + $0x178] sm:$0xff]
    %v1409 = vld [vmem:[#allocation3 + $0x180] sm:$0xff]
    %v1410 = vld [vmem:[#allocation3 + $0x188] sm:$0xff]
    %v1411 = vld [vmem:[#allocation3 + $0x190] sm:$0xff]
    %v1412 = vld [vmem:[#allocation3 + $0x198] sm:$0xff]
    %v1413 = vld [vmem:[#allocation3 + $0x1a0] sm:$0xff]
    %v1414 = vld [vmem:[#allocation3 + $0x1a8] sm:$0xff]
    %v1415 = vld [vmem:[#allocation3 + $0x1b0] sm:$0xff]
    %v1416 = vld [vmem:[#allocation3 + $0x1b8] sm:$0xff]
    %v1417 = vld [vmem:[#allocation3 + $0x1c0] sm:$0xff]
    %v1418 = vld [vmem:[#allocation3 + $0x1c8] sm:$0xff]
    %v1419 = vld [vmem:[#allocation3 + $0x1d0] sm:$0xff]
    %v1420 = vld [vmem:[#allocation3 + $0x1d8] sm:$0xff]
    %v1421 = vld [vmem:[#allocation3 + $0x1e0] sm:$0xff]
    %v1422 = vld [vmem:[#allocation3 + $0x1e8] sm:$0xff]
    %v1423 = vld [vmem:[#allocation3 + $0x1f0] sm:$0xff]
    %v1424 = vld [vmem:[#allocation3 + $0x1f8] sm:$0xff]
    %v1425 = vld [vmem:[#allocation8] sm:$0xff]
    %v1426 = vld [vmem:[#allocation8 + $0x8] sm:$0xff]
    %v1427 = vld [vmem:[#allocation8 + $0x10] sm:$0xff]
    %v1428 = vld [vmem:[#allocation8 + $0x18] sm:$0xff]
    %v1429 = vld [vmem:[#allocation8 + $0x20] sm:$0xff]
    %v1430 = vld [vmem:[#allocation8 + $0x28] sm:$0xff]
    %v1431 = vld [vmem:[#allocation8 + $0x30] sm:$0xff]
    %v1432 = vld [vmem:[#allocation8 + $0x38] sm:$0xff]
    %v1433 = vld [vmem:[#allocation8 + $0x40] sm:$0xff]
    %v1434 = vld [vmem:[#allocation8 + $0x48] sm:$0xff]
    %v1435 = vld [vmem:[#allocation8 + $0x50] sm:$0xff]
    %v1436 = vld [vmem:[#allocation8 + $0x58] sm:$0xff]
    %v1437 = vld [vmem:[#allocation8 + $0x60] sm:$0xff]
    %v1438 = vld [vmem:[#allocation8 + $0x68] sm:$0xff]
    %v1439 = vld [vmem:[#allocation8 + $0x70] sm:$0xff]
    %v1440 = vld [vmem:[#allocation8 + $0x78] sm:$0xff]
    %v1441 = vld [vmem:[#allocation8 + $0x80] sm:$0xff]
    %v1442 = vld [vmem:[#allocation8 + $0x88] sm:$0xff]
    %v1443 = vld [vmem:[#allocation8 + $0x90] sm:$0xff]
    %v1444 = vld [vmem:[#allocation8 + $0x98] sm:$0xff]
    %v1445 = vld [vmem:[#allocation8 + $0xa0] sm:$0xff]
    %v1446 = vld [vmem:[#allocation8 + $0xa8] sm:$0xff]
    %v1447 = vld [vmem:[#allocation8 + $0xb0] sm:$0xff]
    %v1448 = vld [vmem:[#allocation8 + $0xb8] sm:$0xff]
    %v1449 = vld [vmem:[#allocation8 + $0xc0] sm:$0xff]
    %v1450 = vld [vmem:[#allocation8 + $0xc8] sm:$0xff]
    %v1451 = vld [vmem:[#allocation8 + $0xd0] sm:$0xff]
    %v1452 = vld [vmem:[#allocation8 + $0xd8] sm:$0xff]
    %v1453 = vld [vmem:[#allocation8 + $0xe0] sm:$0xff]
    %v1454 = vld [vmem:[#allocation8 + $0xe8] sm:$0xff]
    %v1455 = vld [vmem:[#allocation8 + $0xf0] sm:$0xff]
    %v1456 = vld [vmem:[#allocation8 + $0xf8] sm:$0xff]
    %v1457 = vld [vmem:[#allocation8 + $0x100] sm:$0xff]
    %v1458 = vld [vmem:[#allocation8 + $0x108] sm:$0xff]
    %v1459 = vld [vmem:[#allocation8 + $0x110] sm:$0xff]
    %v1460 = vld [vmem:[#allocation8 + $0x118] sm:$0xff]
    %v1461 = vld [vmem:[#allocation8 + $0x120] sm:$0xff]
    %v1462 = vld [vmem:[#allocation8 + $0x128] sm:$0xff]
    %v1463 = vld [vmem:[#allocation8 + $0x130] sm:$0xff]
    %v1464 = vld [vmem:[#allocation8 + $0x138] sm:$0xff]
    %v1465 = vld [vmem:[#allocation8 + $0x140] sm:$0xff]
    %v1466 = vld [vmem:[#allocation8 + $0x148] sm:$0xff]
    %v1467 = vld [vmem:[#allocation8 + $0x150] sm:$0xff]
    %v1468 = vld [vmem:[#allocation8 + $0x158] sm:$0xff]
    %v1469 = vld [vmem:[#allocation8 + $0x160] sm:$0xff]
    %v1470 = vld [vmem:[#allocation8 + $0x168] sm:$0xff]
    %v1471 = vld [vmem:[#allocation8 + $0x170] sm:$0xff]
    %v1472 = vld [vmem:[#allocation8 + $0x178] sm:$0xff]
    %v1473 = vld [vmem:[#allocation8 + $0x180] sm:$0xff]
    %v1474 = vld [vmem:[#allocation8 + $0x188] sm:$0xff]
    %v1475 = vld [vmem:[#allocation8 + $0x190] sm:$0xff]
    %v1476 = vld [vmem:[#allocation8 + $0x198] sm:$0xff]
    %v1477 = vld [vmem:[#allocation8 + $0x1a0] sm:$0xff]
    %v1478 = vld [vmem:[#allocation8 + $0x1a8] sm:$0xff]
    %v1479 = vld [vmem:[#allocation8 + $0x1b0] sm:$0xff]
    %v1480 = vld [vmem:[#allocation8 + $0x1b8] sm:$0xff]
    %v1481 = vld [vmem:[#allocation8 + $0x1c0] sm:$0xff]
    %v1482 = vld [vmem:[#allocation8 + $0x1c8] sm:$0xff]
    %v1483 = vld [vmem:[#allocation8 + $0x1d0] sm:$0xff]
    %v1484 = vld [vmem:[#allocation8 + $0x1d8] sm:$0xff]
    %v1485 = vld [vmem:[#allocation8 + $0x1e0] sm:$0xff]
    %v1486 = vld [vmem:[#allocation8 + $0x1e8] sm:$0xff]
    %v1487 = vld [vmem:[#allocation8 + $0x1f0] sm:$0xff]
    %v1488 = vld [vmem:[#allocation8 + $0x1f8] sm:$0xff]
    %v1489 = vld [vmem:[#allocation8 + $0x200] sm:$0xff]
    %v1490 = vld [vmem:[#allocation8 + $0x208] sm:$0xff]
    %v1491 = vld [vmem:[#allocation8 + $0x210] sm:$0xff]
    %v1492 = vld [vmem:[#allocation8 + $0x218] sm:$0xff]
    %v1493 = vld [vmem:[#allocation8 + $0x220] sm:$0xff]
    %v1494 = vld [vmem:[#allocation8 + $0x228] sm:$0xff]
    %v1495 = vld [vmem:[#allocation8 + $0x230] sm:$0xff]
    %v1496 = vld [vmem:[#allocation8 + $0x238] sm:$0xff]
    %v1497 = vld [vmem:[#allocation8 + $0x240] sm:$0xff]
    %v1498 = vld [vmem:[#allocation8 + $0x248] sm:$0xff]
    %v1499 = vld [vmem:[#allocation8 + $0x250] sm:$0xff]
    %v1500 = vld [vmem:[#allocation8 + $0x258] sm:$0xff]
    %v1501 = vld [vmem:[#allocation8 + $0x260] sm:$0xff]
    %v1502 = vld [vmem:[#allocation8 + $0x268] sm:$0xff]
    %v1503 = vld [vmem:[#allocation8 + $0x270] sm:$0xff]
    %v1504 = vld [vmem:[#allocation8 + $0x278] sm:$0xff]
    %v1505 = vld [vmem:[#allocation8 + $0x280] sm:$0xff]
    %v1506 = vld [vmem:[#allocation8 + $0x288] sm:$0xff]
    %v1507 = vld [vmem:[#allocation8 + $0x290] sm:$0xff]
    %v1508 = vld [vmem:[#allocation8 + $0x298] sm:$0xff]
    %v1509 = vld [vmem:[#allocation8 + $0x2a0] sm:$0xff]
    %v1510 = vld [vmem:[#allocation8 + $0x2a8] sm:$0xff]
    %v1511 = vld [vmem:[#allocation8 + $0x2b0] sm:$0xff]
    %v1512 = vld [vmem:[#allocation8 + $0x2b8] sm:$0xff]
    %v1513 = vld [vmem:[#allocation8 + $0x2c0] sm:$0xff]
    %v1514 = vld [vmem:[#allocation8 + $0x2c8] sm:$0xff]
    %v1515 = vld [vmem:[#allocation8 + $0x2d0] sm:$0xff]
    %v1516 = vld [vmem:[#allocation8 + $0x2d8] sm:$0xff]
    %v1517 = vld [vmem:[#allocation8 + $0x2e0] sm:$0xff]
    %v1518 = vld [vmem:[#allocation8 + $0x2e8] sm:$0xff]
    %v1519 = vld [vmem:[#allocation8 + $0x2f0] sm:$0xff]
    %v1520 = vld [vmem:[#allocation8 + $0x2f8] sm:$0xff]
    %v1521 = vld [vmem:[#allocation8 + $0x300] sm:$0xff]
    %v1522 = vld [vmem:[#allocation8 + $0x308] sm:$0xff]
    %v1523 = vld [vmem:[#allocation8 + $0x310] sm:$0xff]
    %v1524 = vld [vmem:[#allocation8 + $0x318] sm:$0xff]
    %v1525 = vld [vmem:[#allocation8 + $0x320] sm:$0xff]
    %v1526 = vld [vmem:[#allocation8 + $0x328] sm:$0xff]
    %v1527 = vld [vmem:[#allocation8 + $0x330] sm:$0xff]
    %v1528 = vld [vmem:[#allocation8 + $0x338] sm:$0xff]
    %v1529 = vld [vmem:[#allocation8 + $0x340] sm:$0xff]
    %v1530 = vld [vmem:[#allocation8 + $0x348] sm:$0xff]
    %v1531 = vld [vmem:[#allocation8 + $0x350] sm:$0xff]
    %v1532 = vld [vmem:[#allocation8 + $0x358] sm:$0xff]
    %v1533 = vld [vmem:[#allocation8 + $0x360] sm:$0xff]
    %v1534 = vld [vmem:[#allocation8 + $0x368] sm:$0xff]
    %v1535 = vld [vmem:[#allocation8 + $0x370] sm:$0xff]
    %v1536 = vld [vmem:[#allocation8 + $0x378] sm:$0xff]
    %v1537 = vld [vmem:[#allocation8 + $0x380] sm:$0xff]
    %v1538 = vld [vmem:[#allocation8 + $0x388] sm:$0xff]
    %v1539 = vld [vmem:[#allocation8 + $0x390] sm:$0xff]
    %v1540 = vld [vmem:[#allocation8 + $0x398] sm:$0xff]
    %v1541 = vld [vmem:[#allocation8 + $0x3a0] sm:$0xff]
    %v1542 = vld [vmem:[#allocation8 + $0x3a8] sm:$0xff]
    %v1543 = vld [vmem:[#allocation8 + $0x3b0] sm:$0xff]
    %v1544 = vld [vmem:[#allocation8 + $0x3b8] sm:$0xff]
    %v1545 = vld [vmem:[#allocation8 + $0x3c0] sm:$0xff]
    %v1546 = vld [vmem:[#allocation8 + $0x3c8] sm:$0xff]
    %v1547 = vld [vmem:[#allocation8 + $0x3d0] sm:$0xff]
    %v1548 = vld [vmem:[#allocation8 + $0x3d8] sm:$0xff]
    %v1549 = vld [vmem:[#allocation8 + $0x3e0] sm:$0xff]
    %v1550 = vld [vmem:[#allocation8 + $0x3e8] sm:$0xff]
    %v1551 = vld [vmem:[#allocation8 + $0x3f0] sm:$0xff]
    %v1552 = vld [vmem:[#allocation8 + $0x3f8] sm:$0xff]
    %v1553 = vld [vmem:[#allocation8 + $0x400] sm:$0xff]
    %v1554 = vld [vmem:[#allocation8 + $0x408] sm:$0xff]
    %v1555 = vld [vmem:[#allocation8 + $0x410] sm:$0xff]
    %v1556 = vld [vmem:[#allocation8 + $0x418] sm:$0xff]
    %v1557 = vld [vmem:[#allocation8 + $0x420] sm:$0xff]
    %v1558 = vld [vmem:[#allocation8 + $0x428] sm:$0xff]
    %v1559 = vld [vmem:[#allocation8 + $0x430] sm:$0xff]
    %v1560 = vld [vmem:[#allocation8 + $0x438] sm:$0xff]
    %v1561 = vld [vmem:[#allocation8 + $0x440] sm:$0xff]
    %v1562 = vld [vmem:[#allocation8 + $0x448] sm:$0xff]
    %v1563 = vld [vmem:[#allocation8 + $0x450] sm:$0xff]
    %v1564 = vld [vmem:[#allocation8 + $0x458] sm:$0xff]
    %v1565 = vld [vmem:[#allocation8 + $0x460] sm:$0xff]
    %v1566 = vld [vmem:[#allocation8 + $0x468] sm:$0xff]
    %v1567 = vld [vmem:[#allocation8 + $0x470] sm:$0xff]
    %v1568 = vld [vmem:[#allocation8 + $0x478] sm:$0xff]
    %v1569 = vld [vmem:[#allocation8 + $0x480] sm:$0xff]
    %v1570 = vld [vmem:[#allocation8 + $0x488] sm:$0xff]
    %v1571 = vld [vmem:[#allocation8 + $0x490] sm:$0xff]
    %v1572 = vld [vmem:[#allocation8 + $0x498] sm:$0xff]
    %v1573 = vld [vmem:[#allocation8 + $0x4a0] sm:$0xff]
    %v1574 = vld [vmem:[#allocation8 + $0x4a8] sm:$0xff]
    %v1575 = vld [vmem:[#allocation8 + $0x4b0] sm:$0xff]
    %v1576 = vld [vmem:[#allocation8 + $0x4b8] sm:$0xff]
    %v1577 = vld [vmem:[#allocation8 + $0x4c0] sm:$0xff]
    %v1578 = vld [vmem:[#allocation8 + $0x4c8] sm:$0xff]
    %v1579 = vld [vmem:[#allocation8 + $0x4d0] sm:$0xff]
    %v1580 = vld [vmem:[#allocation8 + $0x4d8] sm:$0xff]
    %v1581 = vld [vmem:[#allocation8 + $0x4e0] sm:$0xff]
    %v1582 = vld [vmem:[#allocation8 + $0x4e8] sm:$0xff]
    %v1583 = vld [vmem:[#allocation8 + $0x4f0] sm:$0xff]
    %v1584 = vld [vmem:[#allocation8 + $0x4f8] sm:$0xff]
    %v1585 = vld [vmem:[#allocation8 + $0x500] sm:$0xff]
    %v1586 = vld [vmem:[#allocation8 + $0x508] sm:$0xff]
    %v1587 = vld [vmem:[#allocation8 + $0x510] sm:$0xff]
    %v1588 = vld [vmem:[#allocation8 + $0x518] sm:$0xff]
    %v1589 = vld [vmem:[#allocation8 + $0x520] sm:$0xff]
    %v1590 = vld [vmem:[#allocation8 + $0x528] sm:$0xff]
    %v1591 = vld [vmem:[#allocation8 + $0x530] sm:$0xff]
    %v1592 = vld [vmem:[#allocation8 + $0x538] sm:$0xff]
    %v1593 = vld [vmem:[#allocation8 + $0x540] sm:$0xff]
    %v1594 = vld [vmem:[#allocation8 + $0x548] sm:$0xff]
    %v1595 = vld [vmem:[#allocation8 + $0x550] sm:$0xff]
    %v1596 = vld [vmem:[#allocation8 + $0x558] sm:$0xff]
    %v1597 = vld [vmem:[#allocation8 + $0x560] sm:$0xff]
    %v1598 = vld [vmem:[#allocation8 + $0x568] sm:$0xff]
    %v1599 = vld [vmem:[#allocation8 + $0x570] sm:$0xff]
    %v1600 = vld [vmem:[#allocation8 + $0x578] sm:$0xff]
    %v1601 = vld [vmem:[#allocation8 + $0x580] sm:$0xff]
    %v1602 = vld [vmem:[#allocation8 + $0x588] sm:$0xff]
    %v1603 = vld [vmem:[#allocation8 + $0x590] sm:$0xff]
    %v1604 = vld [vmem:[#allocation8 + $0x598] sm:$0xff]
    %v1605 = vld [vmem:[#allocation8 + $0x5a0] sm:$0xff]
    %v1606 = vld [vmem:[#allocation8 + $0x5a8] sm:$0xff]
    %v1607 = vld [vmem:[#allocation8 + $0x5b0] sm:$0xff]
    %v1608 = vld [vmem:[#allocation8 + $0x5b8] sm:$0xff]
    %v1609 = vld [vmem:[#allocation8 + $0x5c0] sm:$0xff]
    %v1610 = vld [vmem:[#allocation8 + $0x5c8] sm:$0xff]
    %v1611 = vld [vmem:[#allocation8 + $0x5d0] sm:$0xff]
    %v1612 = vld [vmem:[#allocation8 + $0x5d8] sm:$0xff]
    %v1613 = vld [vmem:[#allocation8 + $0x5e0] sm:$0xff]
    %v1614 = vld [vmem:[#allocation8 + $0x5e8] sm:$0xff]
    %v1615 = vld [vmem:[#allocation8 + $0x5f0] sm:$0xff]
    %v1616 = vld [vmem:[#allocation8 + $0x5f8] sm:$0xff]
    %v1617 = vld [vmem:[#allocation8 + $0x600] sm:$0xff]
    %v1618 = vld [vmem:[#allocation8 + $0x608] sm:$0xff]
    %v1619 = vld [vmem:[#allocation8 + $0x610] sm:$0xff]
    %v1620 = vld [vmem:[#allocation8 + $0x618] sm:$0xff]
    %v1621 = vld [vmem:[#allocation8 + $0x620] sm:$0xff]
    %v1622 = vld [vmem:[#allocation8 + $0x628] sm:$0xff]
    %v1623 = vld [vmem:[#allocation8 + $0x630] sm:$0xff]
    %v1624 = vld [vmem:[#allocation8 + $0x638] sm:$0xff]
    %v1625 = vld [vmem:[#allocation8 + $0x640] sm:$0xff]
    %v1626 = vld [vmem:[#allocation8 + $0x648] sm:$0xff]
    %v1627 = vld [vmem:[#allocation8 + $0x650] sm:$0xff]
    %v1628 = vld [vmem:[#allocation8 + $0x658] sm:$0xff]
    %v1629 = vld [vmem:[#allocation8 + $0x660] sm:$0xff]
    %v1630 = vld [vmem:[#allocation8 + $0x668] sm:$0xff]
    %v1631 = vld [vmem:[#allocation8 + $0x670] sm:$0xff]
    %v1632 = vld [vmem:[#allocation8 + $0x678] sm:$0xff]
    %v1633 = vld [vmem:[#allocation8 + $0x680] sm:$0xff]
    %v1634 = vld [vmem:[#allocation8 + $0x688] sm:$0xff]
    %v1635 = vld [vmem:[#allocation8 + $0x690] sm:$0xff]
    %v1636 = vld [vmem:[#allocation8 + $0x698] sm:$0xff]
    %v1637 = vld [vmem:[#allocation8 + $0x6a0] sm:$0xff]
    %v1638 = vld [vmem:[#allocation8 + $0x6a8] sm:$0xff]
    %v1639 = vld [vmem:[#allocation8 + $0x6b0] sm:$0xff]
    %v1640 = vld [vmem:[#allocation8 + $0x6b8] sm:$0xff]
    %v1641 = vld [vmem:[#allocation8 + $0x6c0] sm:$0xff]
    %v1642 = vld [vmem:[#allocation8 + $0x6c8] sm:$0xff]
    %v1643 = vld [vmem:[#allocation8 + $0x6d0] sm:$0xff]
    %v1644 = vld [vmem:[#allocation8 + $0x6d8] sm:$0xff]
    %v1645 = vld [vmem:[#allocation8 + $0x6e0] sm:$0xff]
    %v1646 = vld [vmem:[#allocation8 + $0x6e8] sm:$0xff]
    %v1647 = vld [vmem:[#allocation8 + $0x6f0] sm:$0xff]
    %v1648 = vld [vmem:[#allocation8 + $0x6f8] sm:$0xff]
    %v1649 = vld [vmem:[#allocation8 + $0x700] sm:$0xff]
    %v1650 = vld [vmem:[#allocation8 + $0x708] sm:$0xff]
    %v1651 = vld [vmem:[#allocation8 + $0x710] sm:$0xff]
    %v1652 = vld [vmem:[#allocation8 + $0x718] sm:$0xff]
    %v1653 = vld [vmem:[#allocation8 + $0x720] sm:$0xff]
    %v1654 = vld [vmem:[#allocation8 + $0x728] sm:$0xff]
    %v1655 = vld [vmem:[#allocation8 + $0x730] sm:$0xff]
    %v1656 = vld [vmem:[#allocation8 + $0x738] sm:$0xff]
    %v1657 = vld [vmem:[#allocation8 + $0x740] sm:$0xff]
    %v1658 = vld [vmem:[#allocation8 + $0x748] sm:$0xff]
    %v1659 = vld [vmem:[#allocation8 + $0x750] sm:$0xff]
    %v1660 = vld [vmem:[#allocation8 + $0x758] sm:$0xff]
    %v1661 = vld [vmem:[#allocation8 + $0x760] sm:$0xff]
    %v1662 = vld [vmem:[#allocation8 + $0x768] sm:$0xff]
    %v1663 = vld [vmem:[#allocation8 + $0x770] sm:$0xff]
    %v1664 = vld [vmem:[#allocation8 + $0x778] sm:$0xff]
    %v1665 = vld [vmem:[#allocation8 + $0x780] sm:$0xff]
    %v1666 = vld [vmem:[#allocation8 + $0x788] sm:$0xff]
    %v1667 = vld [vmem:[#allocation8 + $0x790] sm:$0xff]
    %v1668 = vld [vmem:[#allocation8 + $0x798] sm:$0xff]
    %v1669 = vld [vmem:[#allocation8 + $0x7a0] sm:$0xff]
    %v1670 = vld [vmem:[#allocation8 + $0x7a8] sm:$0xff]
    %v1671 = vld [vmem:[#allocation8 + $0x7b0] sm:$0xff]
    %v1672 = vld [vmem:[#allocation8 + $0x7b8] sm:$0xff]
    %v1673 = vld [vmem:[#allocation8 + $0x7c0] sm:$0xff]
    %v1674 = vld [vmem:[#allocation8 + $0x7c8] sm:$0xff]
    %v1675 = vld [vmem:[#allocation8 + $0x7d0] sm:$0xff]
    %v1676 = vld [vmem:[#allocation8 + $0x7d8] sm:$0xff]
    %v1677 = vld [vmem:[#allocation8 + $0x7e0] sm:$0xff]
    %v1678 = vld [vmem:[#allocation8 + $0x7e8] sm:$0xff]
    %v1679 = vld [vmem:[#allocation8 + $0x7f0] sm:$0xff]
    %v1680 = vld [vmem:[#allocation8 + $0x7f8] sm:$0xff]
    %s1681 = scalar_lea.vmem [#allocation2], %s45
    %v1682 = vld [vmem:[%s1681] sm:$0xff]
    %v1683 = vld [vmem:[%s1681 + $0x8] sm:$0xff]
    %v1684 = vld [vmem:[%s1681 + $0x10] sm:$0xff]
    %v1685 = vld [vmem:[%s1681 + $0x18] sm:$0xff]
    %v1686 = vld [vmem:[%s1681 + $0x20] sm:$0xff]
    %v1687 = vld [vmem:[%s1681 + $0x28] sm:$0xff]
    %v1688 = vld [vmem:[%s1681 + $0x30] sm:$0xff]
    %v1689 = vld [vmem:[%s1681 + $0x38] sm:$0xff]
    %v1690 = vld [vmem:[%s1681 + $0x40] sm:$0xff]
    %v1691 = vld [vmem:[%s1681 + $0x48] sm:$0xff]
    %v1692 = vld [vmem:[%s1681 + $0x50] sm:$0xff]
    %v1693 = vld [vmem:[%s1681 + $0x58] sm:$0xff]
    %v1694 = vld [vmem:[%s1681 + $0x60] sm:$0xff]
    %v1695 = vld [vmem:[%s1681 + $0x68] sm:$0xff]
    %v1696 = vld [vmem:[%s1681 + $0x70] sm:$0xff]
    %v1697 = vld [vmem:[%s1681 + $0x78] sm:$0xff]
    %v1698 = vld [vmem:[%s1681 + $0x80] sm:$0xff]
    %v1699 = vld [vmem:[%s1681 + $0x88] sm:$0xff]
    %v1700 = vld [vmem:[%s1681 + $0x90] sm:$0xff]
    %v1701 = vld [vmem:[%s1681 + $0x98] sm:$0xff]
    %v1702 = vld [vmem:[%s1681 + $0xa0] sm:$0xff]
    %v1703 = vld [vmem:[%s1681 + $0xa8] sm:$0xff]
    %v1704 = vld [vmem:[%s1681 + $0xb0] sm:$0xff]
    %v1705 = vld [vmem:[%s1681 + $0xb8] sm:$0xff]
    %v1706 = vld [vmem:[%s1681 + $0xc0] sm:$0xff]
    %v1707 = vld [vmem:[%s1681 + $0xc8] sm:$0xff]
    %v1708 = vld [vmem:[%s1681 + $0xd0] sm:$0xff]
    %v1709 = vld [vmem:[%s1681 + $0xd8] sm:$0xff]
    %v1710 = vld [vmem:[%s1681 + $0xe0] sm:$0xff]
    %v1711 = vld [vmem:[%s1681 + $0xe8] sm:$0xff]
    %v1712 = vld [vmem:[%s1681 + $0xf0] sm:$0xff]
    %v1713 = vld [vmem:[%s1681 + $0xf8] sm:$0xff]
    %v1714 = vld [vmem:[%s1681 + $0x100] sm:$0xff]
    %v1715 = vld [vmem:[%s1681 + $0x108] sm:$0xff]
    %v1716 = vld [vmem:[%s1681 + $0x110] sm:$0xff]
    %v1717 = vld [vmem:[%s1681 + $0x118] sm:$0xff]
    %v1718 = vld [vmem:[%s1681 + $0x120] sm:$0xff]
    %v1719 = vld [vmem:[%s1681 + $0x128] sm:$0xff]
    %v1720 = vld [vmem:[%s1681 + $0x130] sm:$0xff]
    %v1721 = vld [vmem:[%s1681 + $0x138] sm:$0xff]
    %v1722 = vld [vmem:[%s1681 + $0x140] sm:$0xff]
    %v1723 = vld [vmem:[%s1681 + $0x148] sm:$0xff]
    %v1724 = vld [vmem:[%s1681 + $0x150] sm:$0xff]
    %v1725 = vld [vmem:[%s1681 + $0x158] sm:$0xff]
    %v1726 = vld [vmem:[%s1681 + $0x160] sm:$0xff]
    %v1727 = vld [vmem:[%s1681 + $0x168] sm:$0xff]
    %v1728 = vld [vmem:[%s1681 + $0x170] sm:$0xff]
    %v1729 = vld [vmem:[%s1681 + $0x178] sm:$0xff]
    %v1730 = vld [vmem:[%s1681 + $0x180] sm:$0xff]
    %v1731 = vld [vmem:[%s1681 + $0x188] sm:$0xff]
    %v1732 = vld [vmem:[%s1681 + $0x190] sm:$0xff]
    %v1733 = vld [vmem:[%s1681 + $0x198] sm:$0xff]
    %v1734 = vld [vmem:[%s1681 + $0x1a0] sm:$0xff]
    %v1735 = vld [vmem:[%s1681 + $0x1a8] sm:$0xff]
    %v1736 = vld [vmem:[%s1681 + $0x1b0] sm:$0xff]
    %v1737 = vld [vmem:[%s1681 + $0x1b8] sm:$0xff]
    %v1738 = vld [vmem:[%s1681 + $0x1c0] sm:$0xff]
    %v1739 = vld [vmem:[%s1681 + $0x1c8] sm:$0xff]
    %v1740 = vld [vmem:[%s1681 + $0x1d0] sm:$0xff]
    %v1741 = vld [vmem:[%s1681 + $0x1d8] sm:$0xff]
    %v1742 = vld [vmem:[%s1681 + $0x1e0] sm:$0xff]
    %v1743 = vld [vmem:[%s1681 + $0x1e8] sm:$0xff]
    %v1744 = vld [vmem:[%s1681 + $0x1f0] sm:$0xff]
    %v1745 = vld [vmem:[%s1681 + $0x1f8] sm:$0xff]
    %1746 = vmatpush.msra.mxu0 %v1697
    %1747 = vmatpush.msra.mxu0 %v1696
    %1748 = vmatpush.msra.mxu0 %v1695
    %1749 = vmatpush.msra.mxu0 %v1694
    %1750 = vmatpush.msra.mxu0 %v1693
    %1751 = vmatpush.msra.mxu0 %v1692
    %1752 = vmatpush.msra.mxu0 %v1691
    %1753 = vmatpush.msra.mxu0 %v1690
    %1754 = vmatpush.msra.mxu0 %v1689
    %1755 = vmatpush.msra.mxu0 %v1688
    %1756 = vmatpush.msra.mxu0 %v1687
    %1757 = vmatpush.msra.mxu0 %v1686
    %1758 = vmatpush.msra.mxu0 %v1685
    %1759 = vmatpush.msra.mxu0 %v1684
    %1760 = vmatpush.msra.mxu0 %v1683
    %1761 = vmatpush.msra.mxu0 %v1682
    %1762 = vmatmul.f32.gmra.mxu0 %v1425
    %v1763 = vpop.f32.mrf.mxu0
    %v1764 = vadd.f32 0.0, %v1763
    %1765 = vmatmul.f32.gmra.mxu0 %v1429
    %v1766 = vpop.f32.mrf.mxu0
    %v1767 = vadd.f32 0.0, %v1766
    %1768 = vmatmul.f32.gmra.mxu0 %v1433
    %v1769 = vpop.f32.mrf.mxu0
    %v1770 = vadd.f32 0.0, %v1769
    %1771 = vmatmul.f32.gmra.mxu0 %v1437
    %v1772 = vpop.f32.mrf.mxu0
    %v1773 = vadd.f32 0.0, %v1772
    %1774 = vmatmul.f32.gmra.mxu0 %v1441
    %v1775 = vpop.f32.mrf.mxu0
    %v1776 = vadd.f32 0.0, %v1775
    %1777 = vmatmul.f32.gmra.mxu0 %v1445
    %v1778 = vpop.f32.mrf.mxu0
    %v1779 = vadd.f32 0.0, %v1778
    %1780 = vmatmul.f32.gmra.mxu0 %v1449
    %v1781 = vpop.f32.mrf.mxu0
    %v1782 = vadd.f32 0.0, %v1781
    %1783 = vmatmul.f32.gmra.mxu0 %v1453
    %v1784 = vpop.f32.mrf.mxu0
    %v1785 = vadd.f32 0.0, %v1784
    %1786 = vmatmul.f32.gmra.mxu0 %v1457
    %v1787 = vpop.f32.mrf.mxu0
    %v1788 = vadd.f32 0.0, %v1787
    %1789 = vmatmul.f32.gmra.mxu0 %v1461
    %v1790 = vpop.f32.mrf.mxu0
    %v1791 = vadd.f32 0.0, %v1790
    %1792 = vmatmul.f32.gmra.mxu0 %v1465
    %v1793 = vpop.f32.mrf.mxu0
    %v1794 = vadd.f32 0.0, %v1793
    %1795 = vmatmul.f32.gmra.mxu0 %v1469
    %v1796 = vpop.f32.mrf.mxu0
    %v1797 = vadd.f32 0.0, %v1796
    %1798 = vmatmul.f32.gmra.mxu0 %v1473
    %v1799 = vpop.f32.mrf.mxu0
    %v1800 = vadd.f32 0.0, %v1799
    %1801 = vmatmul.f32.gmra.mxu0 %v1477
    %v1802 = vpop.f32.mrf.mxu0
    %v1803 = vadd.f32 0.0, %v1802
    %1804 = vmatmul.f32.gmra.mxu0 %v1481
    %v1805 = vpop.f32.mrf.mxu0
    %v1806 = vadd.f32 0.0, %v1805
    %1807 = vmatmul.f32.gmra.mxu0 %v1485
    %v1808 = vpop.f32.mrf.mxu0
    %v1809 = vadd.f32 0.0, %v1808
    %1810 = vmatmul.f32.gmra.mxu0 %v1489
    %v1811 = vpop.f32.mrf.mxu0
    %v1812 = vadd.f32 0.0, %v1811
    %1813 = vmatmul.f32.gmra.mxu0 %v1493
    %v1814 = vpop.f32.mrf.mxu0
    %v1815 = vadd.f32 0.0, %v1814
    %1816 = vmatmul.f32.gmra.mxu0 %v1497
    %v1817 = vpop.f32.mrf.mxu0
    %v1818 = vadd.f32 0.0, %v1817
    %1819 = vmatmul.f32.gmra.mxu0 %v1501
    %v1820 = vpop.f32.mrf.mxu0
    %v1821 = vadd.f32 0.0, %v1820
    %1822 = vmatmul.f32.gmra.mxu0 %v1505
    %v1823 = vpop.f32.mrf.mxu0
    %v1824 = vadd.f32 0.0, %v1823
    %1825 = vmatmul.f32.gmra.mxu0 %v1509
    %v1826 = vpop.f32.mrf.mxu0
    %v1827 = vadd.f32 0.0, %v1826
    %1828 = vmatmul.f32.gmra.mxu0 %v1513
    %v1829 = vpop.f32.mrf.mxu0
    %v1830 = vadd.f32 0.0, %v1829
    %1831 = vmatmul.f32.gmra.mxu0 %v1517
    %v1832 = vpop.f32.mrf.mxu0
    %v1833 = vadd.f32 0.0, %v1832
    %1834 = vmatmul.f32.gmra.mxu0 %v1521
    %v1835 = vpop.f32.mrf.mxu0
    %v1836 = vadd.f32 0.0, %v1835
    %1837 = vmatmul.f32.gmra.mxu0 %v1525
    %v1838 = vpop.f32.mrf.mxu0
    %v1839 = vadd.f32 0.0, %v1838
    %1840 = vmatmul.f32.gmra.mxu0 %v1529
    %v1841 = vpop.f32.mrf.mxu0
    %v1842 = vadd.f32 0.0, %v1841
    %1843 = vmatmul.f32.gmra.mxu0 %v1533
    %v1844 = vpop.f32.mrf.mxu0
    %v1845 = vadd.f32 0.0, %v1844
    %1846 = vmatmul.f32.gmra.mxu0 %v1537
    %v1847 = vpop.f32.mrf.mxu0
    %v1848 = vadd.f32 0.0, %v1847
    %1849 = vmatmul.f32.gmra.mxu0 %v1541
    %v1850 = vpop.f32.mrf.mxu0
    %v1851 = vadd.f32 0.0, %v1850
    %1852 = vmatmul.f32.gmra.mxu0 %v1545
    %v1853 = vpop.f32.mrf.mxu0
    %v1854 = vadd.f32 0.0, %v1853
    %1855 = vmatmul.f32.gmra.mxu0 %v1549
    %v1856 = vpop.f32.mrf.mxu0
    %v1857 = vadd.f32 0.0, %v1856
    %1858 = vmatmul.f32.gmra.mxu0 %v1553
    %v1859 = vpop.f32.mrf.mxu0
    %v1860 = vadd.f32 0.0, %v1859
    %1861 = vmatmul.f32.gmra.mxu0 %v1557
    %v1862 = vpop.f32.mrf.mxu0
    %v1863 = vadd.f32 0.0, %v1862
    %1864 = vmatmul.f32.gmra.mxu0 %v1561
    %v1865 = vpop.f32.mrf.mxu0
    %v1866 = vadd.f32 0.0, %v1865
    %1867 = vmatmul.f32.gmra.mxu0 %v1565
    %v1868 = vpop.f32.mrf.mxu0
    %v1869 = vadd.f32 0.0, %v1868
    %1870 = vmatmul.f32.gmra.mxu0 %v1569
    %v1871 = vpop.f32.mrf.mxu0
    %v1872 = vadd.f32 0.0, %v1871
    %1873 = vmatmul.f32.gmra.mxu0 %v1573
    %v1874 = vpop.f32.mrf.mxu0
    %v1875 = vadd.f32 0.0, %v1874
    %1876 = vmatmul.f32.gmra.mxu0 %v1577
    %v1877 = vpop.f32.mrf.mxu0
    %v1878 = vadd.f32 0.0, %v1877
    %1879 = vmatmul.f32.gmra.mxu0 %v1581
    %v1880 = vpop.f32.mrf.mxu0
    %v1881 = vadd.f32 0.0, %v1880
    %1882 = vmatmul.f32.gmra.mxu0 %v1585
    %v1883 = vpop.f32.mrf.mxu0
    %v1884 = vadd.f32 0.0, %v1883
    %1885 = vmatmul.f32.gmra.mxu0 %v1589
    %v1886 = vpop.f32.mrf.mxu0
    %v1887 = vadd.f32 0.0, %v1886
    %1888 = vmatmul.f32.gmra.mxu0 %v1593
    %v1889 = vpop.f32.mrf.mxu0
    %v1890 = vadd.f32 0.0, %v1889
    %1891 = vmatmul.f32.gmra.mxu0 %v1597
    %v1892 = vpop.f32.mrf.mxu0
    %v1893 = vadd.f32 0.0, %v1892
    %1894 = vmatmul.f32.gmra.mxu0 %v1601
    %v1895 = vpop.f32.mrf.mxu0
    %v1896 = vadd.f32 0.0, %v1895
    %1897 = vmatmul.f32.gmra.mxu0 %v1605
    %v1898 = vpop.f32.mrf.mxu0
    %v1899 = vadd.f32 0.0, %v1898
    %1900 = vmatmul.f32.gmra.mxu0 %v1609
    %v1901 = vpop.f32.mrf.mxu0
    %v1902 = vadd.f32 0.0, %v1901
    %1903 = vmatmul.f32.gmra.mxu0 %v1613
    %v1904 = vpop.f32.mrf.mxu0
    %v1905 = vadd.f32 0.0, %v1904
    %1906 = vmatmul.f32.gmra.mxu0 %v1617
    %v1907 = vpop.f32.mrf.mxu0
    %v1908 = vadd.f32 0.0, %v1907
    %1909 = vmatmul.f32.gmra.mxu0 %v1621
    %v1910 = vpop.f32.mrf.mxu0
    %v1911 = vadd.f32 0.0, %v1910
    %1912 = vmatmul.f32.gmra.mxu0 %v1625
    %v1913 = vpop.f32.mrf.mxu0
    %v1914 = vadd.f32 0.0, %v1913
    %1915 = vmatmul.f32.gmra.mxu0 %v1629
    %v1916 = vpop.f32.mrf.mxu0
    %v1917 = vadd.f32 0.0, %v1916
    %1918 = vmatmul.f32.gmra.mxu0 %v1633
    %v1919 = vpop.f32.mrf.mxu0
    %v1920 = vadd.f32 0.0, %v1919
    %1921 = vmatmul.f32.gmra.mxu0 %v1637
    %v1922 = vpop.f32.mrf.mxu0
    %v1923 = vadd.f32 0.0, %v1922
    %1924 = vmatmul.f32.gmra.mxu0 %v1641
    %v1925 = vpop.f32.mrf.mxu0
    %v1926 = vadd.f32 0.0, %v1925
    %1927 = vmatmul.f32.gmra.mxu0 %v1645
    %v1928 = vpop.f32.mrf.mxu0
    %v1929 = vadd.f32 0.0, %v1928
    %1930 = vmatmul.f32.gmra.mxu0 %v1649
    %v1931 = vpop.f32.mrf.mxu0
    %v1932 = vadd.f32 0.0, %v1931
    %1933 = vmatmul.f32.gmra.mxu0 %v1653
    %v1934 = vpop.f32.mrf.mxu0
    %v1935 = vadd.f32 0.0, %v1934
    %1936 = vmatmul.f32.gmra.mxu0 %v1657
    %v1937 = vpop.f32.mrf.mxu0
    %v1938 = vadd.f32 0.0, %v1937
    %1939 = vmatmul.f32.gmra.mxu0 %v1661
    %v1940 = vpop.f32.mrf.mxu0
    %v1941 = vadd.f32 0.0, %v1940
    %1942 = vmatmul.f32.gmra.mxu0 %v1665
    %v1943 = vpop.f32.mrf.mxu0
    %v1944 = vadd.f32 0.0, %v1943
    %1945 = vmatmul.f32.gmra.mxu0 %v1669
    %v1946 = vpop.f32.mrf.mxu0
    %v1947 = vadd.f32 0.0, %v1946
    %1948 = vmatmul.f32.gmra.mxu0 %v1673
    %v1949 = vpop.f32.mrf.mxu0
    %v1950 = vadd.f32 0.0, %v1949
    %1951 = vmatmul.f32.gmra.mxu0 %v1677
    %v1952 = vpop.f32.mrf.mxu0
    %v1953 = vadd.f32 0.0, %v1952
    %1954 = vdwg.mxu0
    %1955 = vmatpush.msra.mxu0 %v1713
    %1956 = vmatpush.msra.mxu0 %v1712
    %1957 = vmatpush.msra.mxu0 %v1711
    %1958 = vmatpush.msra.mxu0 %v1710
    %1959 = vmatpush.msra.mxu0 %v1709
    %1960 = vmatpush.msra.mxu0 %v1708
    %1961 = vmatpush.msra.mxu0 %v1707
    %1962 = vmatpush.msra.mxu0 %v1706
    %1963 = vmatpush.msra.mxu0 %v1705
    %1964 = vmatpush.msra.mxu0 %v1704
    %1965 = vmatpush.msra.mxu0 %v1703
    %1966 = vmatpush.msra.mxu0 %v1702
    %1967 = vmatpush.msra.mxu0 %v1701
    %1968 = vmatpush.msra.mxu0 %v1700
    %1969 = vmatpush.msra.mxu0 %v1699
    %1970 = vmatpush.msra.mxu0 %v1698
    %1971 = vmatmul.f32.gmra.mxu0 %v1426
    %v1972 = vpop.f32.mrf.mxu0
    %v1973 = vadd.f32 %v1764, %v1972
    %1974 = vmatmul.f32.gmra.mxu0 %v1430
    %v1975 = vpop.f32.mrf.mxu0
    %v1976 = vadd.f32 %v1767, %v1975
    %1977 = vmatmul.f32.gmra.mxu0 %v1434
    %v1978 = vpop.f32.mrf.mxu0
    %v1979 = vadd.f32 %v1770, %v1978
    %1980 = vmatmul.f32.gmra.mxu0 %v1438
    %v1981 = vpop.f32.mrf.mxu0
    %v1982 = vadd.f32 %v1773, %v1981
    %1983 = vmatmul.f32.gmra.mxu0 %v1442
    %v1984 = vpop.f32.mrf.mxu0
    %v1985 = vadd.f32 %v1776, %v1984
    %1986 = vmatmul.f32.gmra.mxu0 %v1446
    %v1987 = vpop.f32.mrf.mxu0
    %v1988 = vadd.f32 %v1779, %v1987
    %1989 = vmatmul.f32.gmra.mxu0 %v1450
    %v1990 = vpop.f32.mrf.mxu0
    %v1991 = vadd.f32 %v1782, %v1990
    %1992 = vmatmul.f32.gmra.mxu0 %v1454
    %v1993 = vpop.f32.mrf.mxu0
    %v1994 = vadd.f32 %v1785, %v1993
    %1995 = vmatmul.f32.gmra.mxu0 %v1458
    %v1996 = vpop.f32.mrf.mxu0
    %v1997 = vadd.f32 %v1788, %v1996
    %1998 = vmatmul.f32.gmra.mxu0 %v1462
    %v1999 = vpop.f32.mrf.mxu0
    %v2000 = vadd.f32 %v1791, %v1999
    %2001 = vmatmul.f32.gmra.mxu0 %v1466
    %v2002 = vpop.f32.mrf.mxu0
    %v2003 = vadd.f32 %v1794, %v2002
    %2004 = vmatmul.f32.gmra.mxu0 %v1470
    %v2005 = vpop.f32.mrf.mxu0
    %v2006 = vadd.f32 %v1797, %v2005
    %2007 = vmatmul.f32.gmra.mxu0 %v1474
    %v2008 = vpop.f32.mrf.mxu0
    %v2009 = vadd.f32 %v1800, %v2008
    %2010 = vmatmul.f32.gmra.mxu0 %v1478
    %v2011 = vpop.f32.mrf.mxu0
    %v2012 = vadd.f32 %v1803, %v2011
    %2013 = vmatmul.f32.gmra.mxu0 %v1482
    %v2014 = vpop.f32.mrf.mxu0
    %v2015 = vadd.f32 %v1806, %v2014
    %2016 = vmatmul.f32.gmra.mxu0 %v1486
    %v2017 = vpop.f32.mrf.mxu0
    %v2018 = vadd.f32 %v1809, %v2017
    %2019 = vmatmul.f32.gmra.mxu0 %v1490
    %v2020 = vpop.f32.mrf.mxu0
    %v2021 = vadd.f32 %v1812, %v2020
    %2022 = vmatmul.f32.gmra.mxu0 %v1494
    %v2023 = vpop.f32.mrf.mxu0
    %v2024 = vadd.f32 %v1815, %v2023
    %2025 = vmatmul.f32.gmra.mxu0 %v1498
    %v2026 = vpop.f32.mrf.mxu0
    %v2027 = vadd.f32 %v1818, %v2026
    %2028 = vmatmul.f32.gmra.mxu0 %v1502
    %v2029 = vpop.f32.mrf.mxu0
    %v2030 = vadd.f32 %v1821, %v2029
    %2031 = vmatmul.f32.gmra.mxu0 %v1506
    %v2032 = vpop.f32.mrf.mxu0
    %v2033 = vadd.f32 %v1824, %v2032
    %2034 = vmatmul.f32.gmra.mxu0 %v1510
    %v2035 = vpop.f32.mrf.mxu0
    %v2036 = vadd.f32 %v1827, %v2035
    %2037 = vmatmul.f32.gmra.mxu0 %v1514
    %v2038 = vpop.f32.mrf.mxu0
    %v2039 = vadd.f32 %v1830, %v2038
    %2040 = vmatmul.f32.gmra.mxu0 %v1518
    %v2041 = vpop.f32.mrf.mxu0
    %v2042 = vadd.f32 %v1833, %v2041
    %2043 = vmatmul.f32.gmra.mxu0 %v1522
    %v2044 = vpop.f32.mrf.mxu0
    %v2045 = vadd.f32 %v1836, %v2044
    %2046 = vmatmul.f32.gmra.mxu0 %v1526
    %v2047 = vpop.f32.mrf.mxu0
    %v2048 = vadd.f32 %v1839, %v2047
    %2049 = vmatmul.f32.gmra.mxu0 %v1530
    %v2050 = vpop.f32.mrf.mxu0
    %v2051 = vadd.f32 %v1842, %v2050
    %2052 = vmatmul.f32.gmra.mxu0 %v1534
    %v2053 = vpop.f32.mrf.mxu0
    %v2054 = vadd.f32 %v1845, %v2053
    %2055 = vmatmul.f32.gmra.mxu0 %v1538
    %v2056 = vpop.f32.mrf.mxu0
    %v2057 = vadd.f32 %v1848, %v2056
    %2058 = vmatmul.f32.gmra.mxu0 %v1542
    %v2059 = vpop.f32.mrf.mxu0
    %v2060 = vadd.f32 %v1851, %v2059
    %2061 = vmatmul.f32.gmra.mxu0 %v1546
    %v2062 = vpop.f32.mrf.mxu0
    %v2063 = vadd.f32 %v1854, %v2062
    %2064 = vmatmul.f32.gmra.mxu0 %v1550
    %v2065 = vpop.f32.mrf.mxu0
    %v2066 = vadd.f32 %v1857, %v2065
    %2067 = vmatmul.f32.gmra.mxu0 %v1554
    %v2068 = vpop.f32.mrf.mxu0
    %v2069 = vadd.f32 %v1860, %v2068
    %2070 = vmatmul.f32.gmra.mxu0 %v1558
    %v2071 = vpop.f32.mrf.mxu0
    %v2072 = vadd.f32 %v1863, %v2071
    %2073 = vmatmul.f32.gmra.mxu0 %v1562
    %v2074 = vpop.f32.mrf.mxu0
    %v2075 = vadd.f32 %v1866, %v2074
    %2076 = vmatmul.f32.gmra.mxu0 %v1566
    %v2077 = vpop.f32.mrf.mxu0
    %v2078 = vadd.f32 %v1869, %v2077
    %2079 = vmatmul.f32.gmra.mxu0 %v1570
    %v2080 = vpop.f32.mrf.mxu0
    %v2081 = vadd.f32 %v1872, %v2080
    %2082 = vmatmul.f32.gmra.mxu0 %v1574
    %v2083 = vpop.f32.mrf.mxu0
    %v2084 = vadd.f32 %v1875, %v2083
    %2085 = vmatmul.f32.gmra.mxu0 %v1578
    %v2086 = vpop.f32.mrf.mxu0
    %v2087 = vadd.f32 %v1878, %v2086
    %2088 = vmatmul.f32.gmra.mxu0 %v1582
    %v2089 = vpop.f32.mrf.mxu0
    %v2090 = vadd.f32 %v1881, %v2089
    %2091 = vmatmul.f32.gmra.mxu0 %v1586
    %v2092 = vpop.f32.mrf.mxu0
    %v2093 = vadd.f32 %v1884, %v2092
    %2094 = vmatmul.f32.gmra.mxu0 %v1590
    %v2095 = vpop.f32.mrf.mxu0
    %v2096 = vadd.f32 %v1887, %v2095
    %2097 = vmatmul.f32.gmra.mxu0 %v1594
    %v2098 = vpop.f32.mrf.mxu0
    %v2099 = vadd.f32 %v1890, %v2098
    %2100 = vmatmul.f32.gmra.mxu0 %v1598
    %v2101 = vpop.f32.mrf.mxu0
    %v2102 = vadd.f32 %v1893, %v2101
    %2103 = vmatmul.f32.gmra.mxu0 %v1602
    %v2104 = vpop.f32.mrf.mxu0
    %v2105 = vadd.f32 %v1896, %v2104
    %2106 = vmatmul.f32.gmra.mxu0 %v1606
    %v2107 = vpop.f32.mrf.mxu0
    %v2108 = vadd.f32 %v1899, %v2107
    %2109 = vmatmul.f32.gmra.mxu0 %v1610
    %v2110 = vpop.f32.mrf.mxu0
    %v2111 = vadd.f32 %v1902, %v2110
    %2112 = vmatmul.f32.gmra.mxu0 %v1614
    %v2113 = vpop.f32.mrf.mxu0
    %v2114 = vadd.f32 %v1905, %v2113
    %2115 = vmatmul.f32.gmra.mxu0 %v1618
    %v2116 = vpop.f32.mrf.mxu0
    %v2117 = vadd.f32 %v1908, %v2116
    %2118 = vmatmul.f32.gmra.mxu0 %v1622
    %v2119 = vpop.f32.mrf.mxu0
    %v2120 = vadd.f32 %v1911, %v2119
    %2121 = vmatmul.f32.gmra.mxu0 %v1626
    %v2122 = vpop.f32.mrf.mxu0
    %v2123 = vadd.f32 %v1914, %v2122
    %2124 = vmatmul.f32.gmra.mxu0 %v1630
    %v2125 = vpop.f32.mrf.mxu0
    %v2126 = vadd.f32 %v1917, %v2125
    %2127 = vmatmul.f32.gmra.mxu0 %v1634
    %v2128 = vpop.f32.mrf.mxu0
    %v2129 = vadd.f32 %v1920, %v2128
    %2130 = vmatmul.f32.gmra.mxu0 %v1638
    %v2131 = vpop.f32.mrf.mxu0
    %v2132 = vadd.f32 %v1923, %v2131
    %2133 = vmatmul.f32.gmra.mxu0 %v1642
    %v2134 = vpop.f32.mrf.mxu0
    %v2135 = vadd.f32 %v1926, %v2134
    %2136 = vmatmul.f32.gmra.mxu0 %v1646
    %v2137 = vpop.f32.mrf.mxu0
    %v2138 = vadd.f32 %v1929, %v2137
    %2139 = vmatmul.f32.gmra.mxu0 %v1650
    %v2140 = vpop.f32.mrf.mxu0
    %v2141 = vadd.f32 %v1932, %v2140
    %2142 = vmatmul.f32.gmra.mxu0 %v1654
    %v2143 = vpop.f32.mrf.mxu0
    %v2144 = vadd.f32 %v1935, %v2143
    %2145 = vmatmul.f32.gmra.mxu0 %v1658
    %v2146 = vpop.f32.mrf.mxu0
    %v2147 = vadd.f32 %v1938, %v2146
    %2148 = vmatmul.f32.gmra.mxu0 %v1662
    %v2149 = vpop.f32.mrf.mxu0
    %v2150 = vadd.f32 %v1941, %v2149
    %2151 = vmatmul.f32.gmra.mxu0 %v1666
    %v2152 = vpop.f32.mrf.mxu0
    %v2153 = vadd.f32 %v1944, %v2152
    %2154 = vmatmul.f32.gmra.mxu0 %v1670
    %v2155 = vpop.f32.mrf.mxu0
    %v2156 = vadd.f32 %v1947, %v2155
    %2157 = vmatmul.f32.gmra.mxu0 %v1674
    %v2158 = vpop.f32.mrf.mxu0
    %v2159 = vadd.f32 %v1950, %v2158
    %2160 = vmatmul.f32.gmra.mxu0 %v1678
    %v2161 = vpop.f32.mrf.mxu0
    %v2162 = vadd.f32 %v1953, %v2161
    %2163 = vdwg.mxu0
    %2164 = vmatpush.msra.mxu0 %v1729
    %2165 = vmatpush.msra.mxu0 %v1728
    %2166 = vmatpush.msra.mxu0 %v1727
    %2167 = vmatpush.msra.mxu0 %v1726
    %2168 = vmatpush.msra.mxu0 %v1725
    %2169 = vmatpush.msra.mxu0 %v1724
    %2170 = vmatpush.msra.mxu0 %v1723
    %2171 = vmatpush.msra.mxu0 %v1722
    %2172 = vmatpush.msra.mxu0 %v1721
    %2173 = vmatpush.msra.mxu0 %v1720
    %2174 = vmatpush.msra.mxu0 %v1719
    %2175 = vmatpush.msra.mxu0 %v1718
    %2176 = vmatpush.msra.mxu0 %v1717
    %2177 = vmatpush.msra.mxu0 %v1716
    %2178 = vmatpush.msra.mxu0 %v1715
    %2179 = vmatpush.msra.mxu0 %v1714
    %2180 = vmatmul.f32.gmra.mxu0 %v1427
    %v2181 = vpop.f32.mrf.mxu0
    %v2182 = vadd.f32 %v1973, %v2181
    %2183 = vmatmul.f32.gmra.mxu0 %v1431
    %v2184 = vpop.f32.mrf.mxu0
    %v2185 = vadd.f32 %v1976, %v2184
    %2186 = vmatmul.f32.gmra.mxu0 %v1435
    %v2187 = vpop.f32.mrf.mxu0
    %v2188 = vadd.f32 %v1979, %v2187
    %2189 = vmatmul.f32.gmra.mxu0 %v1439
    %v2190 = vpop.f32.mrf.mxu0
    %v2191 = vadd.f32 %v1982, %v2190
    %2192 = vmatmul.f32.gmra.mxu0 %v1443
    %v2193 = vpop.f32.mrf.mxu0
    %v2194 = vadd.f32 %v1985, %v2193
    %2195 = vmatmul.f32.gmra.mxu0 %v1447
    %v2196 = vpop.f32.mrf.mxu0
    %v2197 = vadd.f32 %v1988, %v2196
    %2198 = vmatmul.f32.gmra.mxu0 %v1451
    %v2199 = vpop.f32.mrf.mxu0
    %v2200 = vadd.f32 %v1991, %v2199
    %2201 = vmatmul.f32.gmra.mxu0 %v1455
    %v2202 = vpop.f32.mrf.mxu0
    %v2203 = vadd.f32 %v1994, %v2202
    %2204 = vmatmul.f32.gmra.mxu0 %v1459
    %v2205 = vpop.f32.mrf.mxu0
    %v2206 = vadd.f32 %v1997, %v2205
    %2207 = vmatmul.f32.gmra.mxu0 %v1463
    %v2208 = vpop.f32.mrf.mxu0
    %v2209 = vadd.f32 %v2000, %v2208
    %2210 = vmatmul.f32.gmra.mxu0 %v1467
    %v2211 = vpop.f32.mrf.mxu0
    %v2212 = vadd.f32 %v2003, %v2211
    %2213 = vmatmul.f32.gmra.mxu0 %v1471
    %v2214 = vpop.f32.mrf.mxu0
    %v2215 = vadd.f32 %v2006, %v2214
    %2216 = vmatmul.f32.gmra.mxu0 %v1475
    %v2217 = vpop.f32.mrf.mxu0
    %v2218 = vadd.f32 %v2009, %v2217
    %2219 = vmatmul.f32.gmra.mxu0 %v1479
    %v2220 = vpop.f32.mrf.mxu0
    %v2221 = vadd.f32 %v2012, %v2220
    %2222 = vmatmul.f32.gmra.mxu0 %v1483
    %v2223 = vpop.f32.mrf.mxu0
    %v2224 = vadd.f32 %v2015, %v2223
    %2225 = vmatmul.f32.gmra.mxu0 %v1487
    %v2226 = vpop.f32.mrf.mxu0
    %v2227 = vadd.f32 %v2018, %v2226
    %2228 = vmatmul.f32.gmra.mxu0 %v1491
    %v2229 = vpop.f32.mrf.mxu0
    %v2230 = vadd.f32 %v2021, %v2229
    %2231 = vmatmul.f32.gmra.mxu0 %v1495
    %v2232 = vpop.f32.mrf.mxu0
    %v2233 = vadd.f32 %v2024, %v2232
    %2234 = vmatmul.f32.gmra.mxu0 %v1499
    %v2235 = vpop.f32.mrf.mxu0
    %v2236 = vadd.f32 %v2027, %v2235
    %2237 = vmatmul.f32.gmra.mxu0 %v1503
    %v2238 = vpop.f32.mrf.mxu0
    %v2239 = vadd.f32 %v2030, %v2238
    %2240 = vmatmul.f32.gmra.mxu0 %v1507
    %v2241 = vpop.f32.mrf.mxu0
    %v2242 = vadd.f32 %v2033, %v2241
    %2243 = vmatmul.f32.gmra.mxu0 %v1511
    %v2244 = vpop.f32.mrf.mxu0
    %v2245 = vadd.f32 %v2036, %v2244
    %2246 = vmatmul.f32.gmra.mxu0 %v1515
    %v2247 = vpop.f32.mrf.mxu0
    %v2248 = vadd.f32 %v2039, %v2247
    %2249 = vmatmul.f32.gmra.mxu0 %v1519
    %v2250 = vpop.f32.mrf.mxu0
    %v2251 = vadd.f32 %v2042, %v2250
    %2252 = vmatmul.f32.gmra.mxu0 %v1523
    %v2253 = vpop.f32.mrf.mxu0
    %v2254 = vadd.f32 %v2045, %v2253
    %2255 = vmatmul.f32.gmra.mxu0 %v1527
    %v2256 = vpop.f32.mrf.mxu0
    %v2257 = vadd.f32 %v2048, %v2256
    %2258 = vmatmul.f32.gmra.mxu0 %v1531
    %v2259 = vpop.f32.mrf.mxu0
    %v2260 = vadd.f32 %v2051, %v2259
    %2261 = vmatmul.f32.gmra.mxu0 %v1535
    %v2262 = vpop.f32.mrf.mxu0
    %v2263 = vadd.f32 %v2054, %v2262
    %2264 = vmatmul.f32.gmra.mxu0 %v1539
    %v2265 = vpop.f32.mrf.mxu0
    %v2266 = vadd.f32 %v2057, %v2265
    %2267 = vmatmul.f32.gmra.mxu0 %v1543
    %v2268 = vpop.f32.mrf.mxu0
    %v2269 = vadd.f32 %v2060, %v2268
    %2270 = vmatmul.f32.gmra.mxu0 %v1547
    %v2271 = vpop.f32.mrf.mxu0
    %v2272 = vadd.f32 %v2063, %v2271
    %2273 = vmatmul.f32.gmra.mxu0 %v1551
    %v2274 = vpop.f32.mrf.mxu0
    %v2275 = vadd.f32 %v2066, %v2274
    %2276 = vmatmul.f32.gmra.mxu0 %v1555
    %v2277 = vpop.f32.mrf.mxu0
    %v2278 = vadd.f32 %v2069, %v2277
    %2279 = vmatmul.f32.gmra.mxu0 %v1559
    %v2280 = vpop.f32.mrf.mxu0
    %v2281 = vadd.f32 %v2072, %v2280
    %2282 = vmatmul.f32.gmra.mxu0 %v1563
    %v2283 = vpop.f32.mrf.mxu0
    %v2284 = vadd.f32 %v2075, %v2283
    %2285 = vmatmul.f32.gmra.mxu0 %v1567
    %v2286 = vpop.f32.mrf.mxu0
    %v2287 = vadd.f32 %v2078, %v2286
    %2288 = vmatmul.f32.gmra.mxu0 %v1571
    %v2289 = vpop.f32.mrf.mxu0
    %v2290 = vadd.f32 %v2081, %v2289
    %2291 = vmatmul.f32.gmra.mxu0 %v1575
    %v2292 = vpop.f32.mrf.mxu0
    %v2293 = vadd.f32 %v2084, %v2292
    %2294 = vmatmul.f32.gmra.mxu0 %v1579
    %v2295 = vpop.f32.mrf.mxu0
    %v2296 = vadd.f32 %v2087, %v2295
    %2297 = vmatmul.f32.gmra.mxu0 %v1583
    %v2298 = vpop.f32.mrf.mxu0
    %v2299 = vadd.f32 %v2090, %v2298
    %2300 = vmatmul.f32.gmra.mxu0 %v1587
    %v2301 = vpop.f32.mrf.mxu0
    %v2302 = vadd.f32 %v2093, %v2301
    %2303 = vmatmul.f32.gmra.mxu0 %v1591
    %v2304 = vpop.f32.mrf.mxu0
    %v2305 = vadd.f32 %v2096, %v2304
    %2306 = vmatmul.f32.gmra.mxu0 %v1595
    %v2307 = vpop.f32.mrf.mxu0
    %v2308 = vadd.f32 %v2099, %v2307
    %2309 = vmatmul.f32.gmra.mxu0 %v1599
    %v2310 = vpop.f32.mrf.mxu0
    %v2311 = vadd.f32 %v2102, %v2310
    %2312 = vmatmul.f32.gmra.mxu0 %v1603
    %v2313 = vpop.f32.mrf.mxu0
    %v2314 = vadd.f32 %v2105, %v2313
    %2315 = vmatmul.f32.gmra.mxu0 %v1607
    %v2316 = vpop.f32.mrf.mxu0
    %v2317 = vadd.f32 %v2108, %v2316
    %2318 = vmatmul.f32.gmra.mxu0 %v1611
    %v2319 = vpop.f32.mrf.mxu0
    %v2320 = vadd.f32 %v2111, %v2319
    %2321 = vmatmul.f32.gmra.mxu0 %v1615
    %v2322 = vpop.f32.mrf.mxu0
    %v2323 = vadd.f32 %v2114, %v2322
    %2324 = vmatmul.f32.gmra.mxu0 %v1619
    %v2325 = vpop.f32.mrf.mxu0
    %v2326 = vadd.f32 %v2117, %v2325
    %2327 = vmatmul.f32.gmra.mxu0 %v1623
    %v2328 = vpop.f32.mrf.mxu0
    %v2329 = vadd.f32 %v2120, %v2328
    %2330 = vmatmul.f32.gmra.mxu0 %v1627
    %v2331 = vpop.f32.mrf.mxu0
    %v2332 = vadd.f32 %v2123, %v2331
    %2333 = vmatmul.f32.gmra.mxu0 %v1631
    %v2334 = vpop.f32.mrf.mxu0
    %v2335 = vadd.f32 %v2126, %v2334
    %2336 = vmatmul.f32.gmra.mxu0 %v1635
    %v2337 = vpop.f32.mrf.mxu0
    %v2338 = vadd.f32 %v2129, %v2337
    %2339 = vmatmul.f32.gmra.mxu0 %v1639
    %v2340 = vpop.f32.mrf.mxu0
    %v2341 = vadd.f32 %v2132, %v2340
    %2342 = vmatmul.f32.gmra.mxu0 %v1643
    %v2343 = vpop.f32.mrf.mxu0
    %v2344 = vadd.f32 %v2135, %v2343
    %2345 = vmatmul.f32.gmra.mxu0 %v1647
    %v2346 = vpop.f32.mrf.mxu0
    %v2347 = vadd.f32 %v2138, %v2346
    %2348 = vmatmul.f32.gmra.mxu0 %v1651
    %v2349 = vpop.f32.mrf.mxu0
    %v2350 = vadd.f32 %v2141, %v2349
    %2351 = vmatmul.f32.gmra.mxu0 %v1655
    %v2352 = vpop.f32.mrf.mxu0
    %v2353 = vadd.f32 %v2144, %v2352
    %2354 = vmatmul.f32.gmra.mxu0 %v1659
    %v2355 = vpop.f32.mrf.mxu0
    %v2356 = vadd.f32 %v2147, %v2355
    %2357 = vmatmul.f32.gmra.mxu0 %v1663
    %v2358 = vpop.f32.mrf.mxu0
    %v2359 = vadd.f32 %v2150, %v2358
    %2360 = vmatmul.f32.gmra.mxu0 %v1667
    %v2361 = vpop.f32.mrf.mxu0
    %v2362 = vadd.f32 %v2153, %v2361
    %2363 = vmatmul.f32.gmra.mxu0 %v1671
    %v2364 = vpop.f32.mrf.mxu0
    %v2365 = vadd.f32 %v2156, %v2364
    %2366 = vmatmul.f32.gmra.mxu0 %v1675
    %v2367 = vpop.f32.mrf.mxu0
    %v2368 = vadd.f32 %v2159, %v2367
    %2369 = vmatmul.f32.gmra.mxu0 %v1679
    %v2370 = vpop.f32.mrf.mxu0
    %v2371 = vadd.f32 %v2162, %v2370
    %2372 = vdwg.mxu0
    %2373 = vmatpush.msra.mxu0 %v1745
    %2374 = vmatpush.msra.mxu0 %v1744
    %2375 = vmatpush.msra.mxu0 %v1743
    %2376 = vmatpush.msra.mxu0 %v1742
    %2377 = vmatpush.msra.mxu0 %v1741
    %2378 = vmatpush.msra.mxu0 %v1740
    %2379 = vmatpush.msra.mxu0 %v1739
    %2380 = vmatpush.msra.mxu0 %v1738
    %2381 = vmatpush.msra.mxu0 %v1737
    %2382 = vmatpush.msra.mxu0 %v1736
    %2383 = vmatpush.msra.mxu0 %v1735
    %2384 = vmatpush.msra.mxu0 %v1734
    %2385 = vmatpush.msra.mxu0 %v1733
    %2386 = vmatpush.msra.mxu0 %v1732
    %2387 = vmatpush.msra.mxu0 %v1731
    %2388 = vmatpush.msra.mxu0 %v1730
    %2389 = vmatmul.f32.gmra.mxu0 %v1428
    %v2390 = vpop.f32.mrf.mxu0
    %v2391 = vadd.f32 %v2182, %v2390
    %2392 = vmatmul.f32.gmra.mxu0 %v1432
    %v2393 = vpop.f32.mrf.mxu0
    %v2394 = vadd.f32 %v2185, %v2393
    %2395 = vmatmul.f32.gmra.mxu0 %v1436
    %v2396 = vpop.f32.mrf.mxu0
    %v2397 = vadd.f32 %v2188, %v2396
    %2398 = vmatmul.f32.gmra.mxu0 %v1440
    %v2399 = vpop.f32.mrf.mxu0
    %v2400 = vadd.f32 %v2191, %v2399
    %2401 = vmatmul.f32.gmra.mxu0 %v1444
    %v2402 = vpop.f32.mrf.mxu0
    %v2403 = vadd.f32 %v2194, %v2402
    %2404 = vmatmul.f32.gmra.mxu0 %v1448
    %v2405 = vpop.f32.mrf.mxu0
    %v2406 = vadd.f32 %v2197, %v2405
    %2407 = vmatmul.f32.gmra.mxu0 %v1452
    %v2408 = vpop.f32.mrf.mxu0
    %v2409 = vadd.f32 %v2200, %v2408
    %2410 = vmatmul.f32.gmra.mxu0 %v1456
    %v2411 = vpop.f32.mrf.mxu0
    %v2412 = vadd.f32 %v2203, %v2411
    %2413 = vmatmul.f32.gmra.mxu0 %v1460
    %v2414 = vpop.f32.mrf.mxu0
    %v2415 = vadd.f32 %v2206, %v2414
    %2416 = vmatmul.f32.gmra.mxu0 %v1464
    %v2417 = vpop.f32.mrf.mxu0
    %v2418 = vadd.f32 %v2209, %v2417
    %2419 = vmatmul.f32.gmra.mxu0 %v1468
    %v2420 = vpop.f32.mrf.mxu0
    %v2421 = vadd.f32 %v2212, %v2420
    %2422 = vmatmul.f32.gmra.mxu0 %v1472
    %v2423 = vpop.f32.mrf.mxu0
    %v2424 = vadd.f32 %v2215, %v2423
    %2425 = vmatmul.f32.gmra.mxu0 %v1476
    %v2426 = vpop.f32.mrf.mxu0
    %v2427 = vadd.f32 %v2218, %v2426
    %2428 = vmatmul.f32.gmra.mxu0 %v1480
    %v2429 = vpop.f32.mrf.mxu0
    %v2430 = vadd.f32 %v2221, %v2429
    %2431 = vmatmul.f32.gmra.mxu0 %v1484
    %v2432 = vpop.f32.mrf.mxu0
    %v2433 = vadd.f32 %v2224, %v2432
    %2434 = vmatmul.f32.gmra.mxu0 %v1488
    %v2435 = vpop.f32.mrf.mxu0
    %v2436 = vadd.f32 %v2227, %v2435
    %2437 = vmatmul.f32.gmra.mxu0 %v1492
    %v2438 = vpop.f32.mrf.mxu0
    %v2439 = vadd.f32 %v2230, %v2438
    %2440 = vmatmul.f32.gmra.mxu0 %v1496
    %v2441 = vpop.f32.mrf.mxu0
    %v2442 = vadd.f32 %v2233, %v2441
    %2443 = vmatmul.f32.gmra.mxu0 %v1500
    %v2444 = vpop.f32.mrf.mxu0
    %v2445 = vadd.f32 %v2236, %v2444
    %2446 = vmatmul.f32.gmra.mxu0 %v1504
    %v2447 = vpop.f32.mrf.mxu0
    %v2448 = vadd.f32 %v2239, %v2447
    %2449 = vmatmul.f32.gmra.mxu0 %v1508
    %v2450 = vpop.f32.mrf.mxu0
    %v2451 = vadd.f32 %v2242, %v2450
    %2452 = vmatmul.f32.gmra.mxu0 %v1512
    %v2453 = vpop.f32.mrf.mxu0
    %v2454 = vadd.f32 %v2245, %v2453
    %2455 = vmatmul.f32.gmra.mxu0 %v1516
    %v2456 = vpop.f32.mrf.mxu0
    %v2457 = vadd.f32 %v2248, %v2456
    %2458 = vmatmul.f32.gmra.mxu0 %v1520
    %v2459 = vpop.f32.mrf.mxu0
    %v2460 = vadd.f32 %v2251, %v2459
    %2461 = vmatmul.f32.gmra.mxu0 %v1524
    %v2462 = vpop.f32.mrf.mxu0
    %v2463 = vadd.f32 %v2254, %v2462
    %2464 = vmatmul.f32.gmra.mxu0 %v1528
    %v2465 = vpop.f32.mrf.mxu0
    %v2466 = vadd.f32 %v2257, %v2465
    %2467 = vmatmul.f32.gmra.mxu0 %v1532
    %v2468 = vpop.f32.mrf.mxu0
    %v2469 = vadd.f32 %v2260, %v2468
    %2470 = vmatmul.f32.gmra.mxu0 %v1536
    %v2471 = vpop.f32.mrf.mxu0
    %v2472 = vadd.f32 %v2263, %v2471
    %2473 = vmatmul.f32.gmra.mxu0 %v1540
    %v2474 = vpop.f32.mrf.mxu0
    %v2475 = vadd.f32 %v2266, %v2474
    %2476 = vmatmul.f32.gmra.mxu0 %v1544
    %v2477 = vpop.f32.mrf.mxu0
    %v2478 = vadd.f32 %v2269, %v2477
    %2479 = vmatmul.f32.gmra.mxu0 %v1548
    %v2480 = vpop.f32.mrf.mxu0
    %v2481 = vadd.f32 %v2272, %v2480
    %2482 = vmatmul.f32.gmra.mxu0 %v1552
    %v2483 = vpop.f32.mrf.mxu0
    %v2484 = vadd.f32 %v2275, %v2483
    %2485 = vmatmul.f32.gmra.mxu0 %v1556
    %v2486 = vpop.f32.mrf.mxu0
    %v2487 = vadd.f32 %v2278, %v2486
    %2488 = vmatmul.f32.gmra.mxu0 %v1560
    %v2489 = vpop.f32.mrf.mxu0
    %v2490 = vadd.f32 %v2281, %v2489
    %2491 = vmatmul.f32.gmra.mxu0 %v1564
    %v2492 = vpop.f32.mrf.mxu0
    %v2493 = vadd.f32 %v2284, %v2492
    %2494 = vmatmul.f32.gmra.mxu0 %v1568
    %v2495 = vpop.f32.mrf.mxu0
    %v2496 = vadd.f32 %v2287, %v2495
    %2497 = vmatmul.f32.gmra.mxu0 %v1572
    %v2498 = vpop.f32.mrf.mxu0
    %v2499 = vadd.f32 %v2290, %v2498
    %2500 = vmatmul.f32.gmra.mxu0 %v1576
    %v2501 = vpop.f32.mrf.mxu0
    %v2502 = vadd.f32 %v2293, %v2501
    %2503 = vmatmul.f32.gmra.mxu0 %v1580
    %v2504 = vpop.f32.mrf.mxu0
    %v2505 = vadd.f32 %v2296, %v2504
    %2506 = vmatmul.f32.gmra.mxu0 %v1584
    %v2507 = vpop.f32.mrf.mxu0
    %v2508 = vadd.f32 %v2299, %v2507
    %2509 = vmatmul.f32.gmra.mxu0 %v1588
    %v2510 = vpop.f32.mrf.mxu0
    %v2511 = vadd.f32 %v2302, %v2510
    %2512 = vmatmul.f32.gmra.mxu0 %v1592
    %v2513 = vpop.f32.mrf.mxu0
    %v2514 = vadd.f32 %v2305, %v2513
    %2515 = vmatmul.f32.gmra.mxu0 %v1596
    %v2516 = vpop.f32.mrf.mxu0
    %v2517 = vadd.f32 %v2308, %v2516
    %2518 = vmatmul.f32.gmra.mxu0 %v1600
    %v2519 = vpop.f32.mrf.mxu0
    %v2520 = vadd.f32 %v2311, %v2519
    %2521 = vmatmul.f32.gmra.mxu0 %v1604
    %v2522 = vpop.f32.mrf.mxu0
    %v2523 = vadd.f32 %v2314, %v2522
    %2524 = vmatmul.f32.gmra.mxu0 %v1608
    %v2525 = vpop.f32.mrf.mxu0
    %v2526 = vadd.f32 %v2317, %v2525
    %2527 = vmatmul.f32.gmra.mxu0 %v1612
    %v2528 = vpop.f32.mrf.mxu0
    %v2529 = vadd.f32 %v2320, %v2528
    %2530 = vmatmul.f32.gmra.mxu0 %v1616
    %v2531 = vpop.f32.mrf.mxu0
    %v2532 = vadd.f32 %v2323, %v2531
    %2533 = vmatmul.f32.gmra.mxu0 %v1620
    %v2534 = vpop.f32.mrf.mxu0
    %v2535 = vadd.f32 %v2326, %v2534
    %2536 = vmatmul.f32.gmra.mxu0 %v1624
    %v2537 = vpop.f32.mrf.mxu0
    %v2538 = vadd.f32 %v2329, %v2537
    %2539 = vmatmul.f32.gmra.mxu0 %v1628
    %v2540 = vpop.f32.mrf.mxu0
    %v2541 = vadd.f32 %v2332, %v2540
    %2542 = vmatmul.f32.gmra.mxu0 %v1632
    %v2543 = vpop.f32.mrf.mxu0
    %v2544 = vadd.f32 %v2335, %v2543
    %2545 = vmatmul.f32.gmra.mxu0 %v1636
    %v2546 = vpop.f32.mrf.mxu0
    %v2547 = vadd.f32 %v2338, %v2546
    %2548 = vmatmul.f32.gmra.mxu0 %v1640
    %v2549 = vpop.f32.mrf.mxu0
    %v2550 = vadd.f32 %v2341, %v2549
    %2551 = vmatmul.f32.gmra.mxu0 %v1644
    %v2552 = vpop.f32.mrf.mxu0
    %v2553 = vadd.f32 %v2344, %v2552
    %2554 = vmatmul.f32.gmra.mxu0 %v1648
    %v2555 = vpop.f32.mrf.mxu0
    %v2556 = vadd.f32 %v2347, %v2555
    %2557 = vmatmul.f32.gmra.mxu0 %v1652
    %v2558 = vpop.f32.mrf.mxu0
    %v2559 = vadd.f32 %v2350, %v2558
    %2560 = vmatmul.f32.gmra.mxu0 %v1656
    %v2561 = vpop.f32.mrf.mxu0
    %v2562 = vadd.f32 %v2353, %v2561
    %2563 = vmatmul.f32.gmra.mxu0 %v1660
    %v2564 = vpop.f32.mrf.mxu0
    %v2565 = vadd.f32 %v2356, %v2564
    %2566 = vmatmul.f32.gmra.mxu0 %v1664
    %v2567 = vpop.f32.mrf.mxu0
    %v2568 = vadd.f32 %v2359, %v2567
    %2569 = vmatmul.f32.gmra.mxu0 %v1668
    %v2570 = vpop.f32.mrf.mxu0
    %v2571 = vadd.f32 %v2362, %v2570
    %2572 = vmatmul.f32.gmra.mxu0 %v1672
    %v2573 = vpop.f32.mrf.mxu0
    %v2574 = vadd.f32 %v2365, %v2573
    %2575 = vmatmul.f32.gmra.mxu0 %v1676
    %v2576 = vpop.f32.mrf.mxu0
    %v2577 = vadd.f32 %v2368, %v2576
    %2578 = vmatmul.f32.gmra.mxu0 %v1680
    %v2579 = vpop.f32.mrf.mxu0
    %v2580 = vadd.f32 %v2371, %v2579
    %2581 = vdwg.mxu0
    %v2582 = vadd.f32 %v1361, %v2391
    %v2583 = vadd.f32 %v1362, %v2394
    %v2584 = vadd.f32 %v1363, %v2397
    %v2585 = vadd.f32 %v1364, %v2400
    %v2586 = vadd.f32 %v1365, %v2403
    %v2587 = vadd.f32 %v1366, %v2406
    %v2588 = vadd.f32 %v1367, %v2409
    %v2589 = vadd.f32 %v1368, %v2412
    %v2590 = vadd.f32 %v1369, %v2415
    %v2591 = vadd.f32 %v1370, %v2418
    %v2592 = vadd.f32 %v1371, %v2421
    %v2593 = vadd.f32 %v1372, %v2424
    %v2594 = vadd.f32 %v1373, %v2427
    %v2595 = vadd.f32 %v1374, %v2430
    %v2596 = vadd.f32 %v1375, %v2433
    %v2597 = vadd.f32 %v1376, %v2436
    %v2598 = vadd.f32 %v1377, %v2439
    %v2599 = vadd.f32 %v1378, %v2442
    %v2600 = vadd.f32 %v1379, %v2445
    %v2601 = vadd.f32 %v1380, %v2448
    %v2602 = vadd.f32 %v1381, %v2451
    %v2603 = vadd.f32 %v1382, %v2454
    %v2604 = vadd.f32 %v1383, %v2457
    %v2605 = vadd.f32 %v1384, %v2460
    %v2606 = vadd.f32 %v1385, %v2463
    %v2607 = vadd.f32 %v1386, %v2466
    %v2608 = vadd.f32 %v1387, %v2469
    %v2609 = vadd.f32 %v1388, %v2472
    %v2610 = vadd.f32 %v1389, %v2475
    %v2611 = vadd.f32 %v1390, %v2478
    %v2612 = vadd.f32 %v1391, %v2481
    %v2613 = vadd.f32 %v1392, %v2484
    %v2614 = vadd.f32 %v1393, %v2487
    %v2615 = vadd.f32 %v1394, %v2490
    %v2616 = vadd.f32 %v1395, %v2493
    %v2617 = vadd.f32 %v1396, %v2496
    %v2618 = vadd.f32 %v1397, %v2499
    %v2619 = vadd.f32 %v1398, %v2502
    %v2620 = vadd.f32 %v1399, %v2505
    %v2621 = vadd.f32 %v1400, %v2508
    %v2622 = vadd.f32 %v1401, %v2511
    %v2623 = vadd.f32 %v1402, %v2514
    %v2624 = vadd.f32 %v1403, %v2517
    %v2625 = vadd.f32 %v1404, %v2520
    %v2626 = vadd.f32 %v1405, %v2523
    %v2627 = vadd.f32 %v1406, %v2526
    %v2628 = vadd.f32 %v1407, %v2529
    %v2629 = vadd.f32 %v1408, %v2532
    %v2630 = vadd.f32 %v1409, %v2535
    %v2631 = vadd.f32 %v1410, %v2538
    %v2632 = vadd.f32 %v1411, %v2541
    %v2633 = vadd.f32 %v1412, %v2544
    %v2634 = vadd.f32 %v1413, %v2547
    %v2635 = vadd.f32 %v1414, %v2550
    %v2636 = vadd.f32 %v1415, %v2553
    %v2637 = vadd.f32 %v1416, %v2556
    %v2638 = vadd.f32 %v1417, %v2559
    %v2639 = vadd.f32 %v1418, %v2562
    %v2640 = vadd.f32 %v1419, %v2565
    %v2641 = vadd.f32 %v1420, %v2568
    %v2642 = vadd.f32 %v1421, %v2571
    %v2643 = vadd.f32 %v1422, %v2574
    %v2644 = vadd.f32 %v1423, %v2577
    %v2645 = vadd.f32 %v1424, %v2580
    %2646 = vst [vmem:[#allocation3] sm:$0xff] %v2582
    %2647 = vst [vmem:[#allocation3 + $0x8] sm:$0xff] %v2583
    %2648 = vst [vmem:[#allocation3 + $0x10] sm:$0xff] %v2584
    %2649 = vst [vmem:[#allocation3 + $0x18] sm:$0xff] %v2585
    %2650 = vst [vmem:[#allocation3 + $0x20] sm:$0xff] %v2586
    %2651 = vst [vmem:[#allocation3 + $0x28] sm:$0xff] %v2587
    %2652 = vst [vmem:[#allocation3 + $0x30] sm:$0xff] %v2588
    %2653 = vst [vmem:[#allocation3 + $0x38] sm:$0xff] %v2589
    %2654 = vst [vmem:[#allocation3 + $0x40] sm:$0xff] %v2590
    %2655 = vst [vmem:[#allocation3 + $0x48] sm:$0xff] %v2591
    %2656 = vst [vmem:[#allocation3 + $0x50] sm:$0xff] %v2592
    %2657 = vst [vmem:[#allocation3 + $0x58] sm:$0xff] %v2593
    %2658 = vst [vmem:[#allocation3 + $0x60] sm:$0xff] %v2594
    %2659 = vst [vmem:[#allocation3 + $0x68] sm:$0xff] %v2595
    %2660 = vst [vmem:[#allocation3 + $0x70] sm:$0xff] %v2596
    %2661 = vst [vmem:[#allocation3 + $0x78] sm:$0xff] %v2597
    %2662 = vst [vmem:[#allocation3 + $0x80] sm:$0xff] %v2598
    %2663 = vst [vmem:[#allocation3 + $0x88] sm:$0xff] %v2599
    %2664 = vst [vmem:[#allocation3 + $0x90] sm:$0xff] %v2600
    %2665 = vst [vmem:[#allocation3 + $0x98] sm:$0xff] %v2601
    %2666 = vst [vmem:[#allocation3 + $0xa0] sm:$0xff] %v2602
    %2667 = vst [vmem:[#allocation3 + $0xa8] sm:$0xff] %v2603
    %2668 = vst [vmem:[#allocation3 + $0xb0] sm:$0xff] %v2604
    %2669 = vst [vmem:[#allocation3 + $0xb8] sm:$0xff] %v2605
    %2670 = vst [vmem:[#allocation3 + $0xc0] sm:$0xff] %v2606
    %2671 = vst [vmem:[#allocation3 + $0xc8] sm:$0xff] %v2607
    %2672 = vst [vmem:[#allocation3 + $0xd0] sm:$0xff] %v2608
    %2673 = vst [vmem:[#allocation3 + $0xd8] sm:$0xff] %v2609
    %2674 = vst [vmem:[#allocation3 + $0xe0] sm:$0xff] %v2610
    %2675 = vst [vmem:[#allocation3 + $0xe8] sm:$0xff] %v2611
    %2676 = vst [vmem:[#allocation3 + $0xf0] sm:$0xff] %v2612
    %2677 = vst [vmem:[#allocation3 + $0xf8] sm:$0xff] %v2613
    %2678 = vst [vmem:[#allocation3 + $0x100] sm:$0xff] %v2614
    %2679 = vst [vmem:[#allocation3 + $0x108] sm:$0xff] %v2615
    %2680 = vst [vmem:[#allocation3 + $0x110] sm:$0xff] %v2616
    %2681 = vst [vmem:[#allocation3 + $0x118] sm:$0xff] %v2617
    %2682 = vst [vmem:[#allocation3 + $0x120] sm:$0xff] %v2618
    %2683 = vst [vmem:[#allocation3 + $0x128] sm:$0xff] %v2619
    %2684 = vst [vmem:[#allocation3 + $0x130] sm:$0xff] %v2620
    %2685 = vst [vmem:[#allocation3 + $0x138] sm:$0xff] %v2621
    %2686 = vst [vmem:[#allocation3 + $0x140] sm:$0xff] %v2622
    %2687 = vst [vmem:[#allocation3 + $0x148] sm:$0xff] %v2623
    %2688 = vst [vmem:[#allocation3 + $0x150] sm:$0xff] %v2624
    %2689 = vst [vmem:[#allocation3 + $0x158] sm:$0xff] %v2625
    %2690 = vst [vmem:[#allocation3 + $0x160] sm:$0xff] %v2626
    %2691 = vst [vmem:[#allocation3 + $0x168] sm:$0xff] %v2627
    %2692 = vst [vmem:[#allocation3 + $0x170] sm:$0xff] %v2628
    %2693 = vst [vmem:[#allocation3 + $0x178] sm:$0xff] %v2629
    %2694 = vst [vmem:[#allocation3 + $0x180] sm:$0xff] %v2630
    %2695 = vst [vmem:[#allocation3 + $0x188] sm:$0xff] %v2631
    %2696 = vst [vmem:[#allocation3 + $0x190] sm:$0xff] %v2632
    %2697 = vst [vmem:[#allocation3 + $0x198] sm:$0xff] %v2633
    %2698 = vst [vmem:[#allocation3 + $0x1a0] sm:$0xff] %v2634
    %2699 = vst [vmem:[#allocation3 + $0x1a8] sm:$0xff] %v2635
    %2700 = vst [vmem:[#allocation3 + $0x1b0] sm:$0xff] %v2636
    %2701 = vst [vmem:[#allocation3 + $0x1b8] sm:$0xff] %v2637
    %2702 = vst [vmem:[#allocation3 + $0x1c0] sm:$0xff] %v2638
    %2703 = vst [vmem:[#allocation3 + $0x1c8] sm:$0xff] %v2639
    %2704 = vst [vmem:[#allocation3 + $0x1d0] sm:$0xff] %v2640
    %2705 = vst [vmem:[#allocation3 + $0x1d8] sm:$0xff] %v2641
    %2706 = vst [vmem:[#allocation3 + $0x1e0] sm:$0xff] %v2642
    %2707 = vst [vmem:[#allocation3 + $0x1e8] sm:$0xff] %v2643
    %2708 = vst [vmem:[#allocation3 + $0x1f0] sm:$0xff] %v2644
    %2709 = vst [vmem:[#allocation3 + $0x1f8] sm:$0xff] %v2645
    // Predicated region
    $region31: #{tpu_custom_call.1} parent=1 // pred_check
      %p2710 = pneg %p1293
    $region32: #{tpu_custom_call.1} parent=1 // pred_check_branch
      %2712 = sbr.rel (%p2710) target = $region34
    $region33: #{tpu_custom_call.1} parent=1 // pred_region
      %v2713 = vld [vmem:[#allocation3] sm:$0xff]
      %v2714 = vld [vmem:[#allocation3 + $0x8] sm:$0xff]
      %v2715 = vld [vmem:[#allocation3 + $0x10] sm:$0xff]
      %v2716 = vld [vmem:[#allocation3 + $0x18] sm:$0xff]
      %v2717 = vld [vmem:[#allocation3 + $0x20] sm:$0xff]
      %v2718 = vld [vmem:[#allocation3 + $0x28] sm:$0xff]
      %v2719 = vld [vmem:[#allocation3 + $0x30] sm:$0xff]
      %v2720 = vld [vmem:[#allocation3 + $0x38] sm:$0xff]
      %v2721 = vld [vmem:[#allocation3 + $0x40] sm:$0xff]
      %v2722 = vld [vmem:[#allocation3 + $0x48] sm:$0xff]
      %v2723 = vld [vmem:[#allocation3 + $0x50] sm:$0xff]
      %v2724 = vld [vmem:[#allocation3 + $0x58] sm:$0xff]
      %v2725 = vld [vmem:[#allocation3 + $0x60] sm:$0xff]
      %v2726 = vld [vmem:[#allocation3 + $0x68] sm:$0xff]
      %v2727 = vld [vmem:[#allocation3 + $0x70] sm:$0xff]
      %v2728 = vld [vmem:[#allocation3 + $0x78] sm:$0xff]
      %v2729 = vld [vmem:[#allocation3 + $0x80] sm:$0xff]
      %v2730 = vld [vmem:[#allocation3 + $0x88] sm:$0xff]
      %v2731 = vld [vmem:[#allocation3 + $0x90] sm:$0xff]
      %v2732 = vld [vmem:[#allocation3 + $0x98] sm:$0xff]
      %v2733 = vld [vmem:[#allocation3 + $0xa0] sm:$0xff]
      %v2734 = vld [vmem:[#allocation3 + $0xa8] sm:$0xff]
      %v2735 = vld [vmem:[#allocation3 + $0xb0] sm:$0xff]
      %v2736 = vld [vmem:[#allocation3 + $0xb8] sm:$0xff]
      %v2737 = vld [vmem:[#allocation3 + $0xc0] sm:$0xff]
      %v2738 = vld [vmem:[#allocation3 + $0xc8] sm:$0xff]
      %v2739 = vld [vmem:[#allocation3 + $0xd0] sm:$0xff]
      %v2740 = vld [vmem:[#allocation3 + $0xd8] sm:$0xff]
      %v2741 = vld [vmem:[#allocation3 + $0xe0] sm:$0xff]
      %v2742 = vld [vmem:[#allocation3 + $0xe8] sm:$0xff]
      %v2743 = vld [vmem:[#allocation3 + $0xf0] sm:$0xff]
      %v2744 = vld [vmem:[#allocation3 + $0xf8] sm:$0xff]
      %v2745 = vld [vmem:[#allocation3 + $0x100] sm:$0xff]
      %v2746 = vld [vmem:[#allocation3 + $0x108] sm:$0xff]
      %v2747 = vld [vmem:[#allocation3 + $0x110] sm:$0xff]
      %v2748 = vld [vmem:[#allocation3 + $0x118] sm:$0xff]
      %v2749 = vld [vmem:[#allocation3 + $0x120] sm:$0xff]
      %v2750 = vld [vmem:[#allocation3 + $0x128] sm:$0xff]
      %v2751 = vld [vmem:[#allocation3 + $0x130] sm:$0xff]
      %v2752 = vld [vmem:[#allocation3 + $0x138] sm:$0xff]
      %v2753 = vld [vmem:[#allocation3 + $0x140] sm:$0xff]
      %v2754 = vld [vmem:[#allocation3 + $0x148] sm:$0xff]
      %v2755 = vld [vmem:[#allocation3 + $0x150] sm:$0xff]
      %v2756 = vld [vmem:[#allocation3 + $0x158] sm:$0xff]
      %v2757 = vld [vmem:[#allocation3 + $0x160] sm:$0xff]
      %v2758 = vld [vmem:[#allocation3 + $0x168] sm:$0xff]
      %v2759 = vld [vmem:[#allocation3 + $0x170] sm:$0xff]
      %v2760 = vld [vmem:[#allocation3 + $0x178] sm:$0xff]
      %v2761 = vld [vmem:[#allocation3 + $0x180] sm:$0xff]
      %v2762 = vld [vmem:[#allocation3 + $0x188] sm:$0xff]
      %v2763 = vld [vmem:[#allocation3 + $0x190] sm:$0xff]
      %v2764 = vld [vmem:[#allocation3 + $0x198] sm:$0xff]
      %v2765 = vld [vmem:[#allocation3 + $0x1a0] sm:$0xff]
      %v2766 = vld [vmem:[#allocation3 + $0x1a8] sm:$0xff]
      %v2767 = vld [vmem:[#allocation3 + $0x1b0] sm:$0xff]
      %v2768 = vld [vmem:[#allocation3 + $0x1b8] sm:$0xff]
      %v2769 = vld [vmem:[#allocation3 + $0x1c0] sm:$0xff]
      %v2770 = vld [vmem:[#allocation3 + $0x1c8] sm:$0xff]
      %v2771 = vld [vmem:[#allocation3 + $0x1d0] sm:$0xff]
      %v2772 = vld [vmem:[#allocation3 + $0x1d8] sm:$0xff]
      %v2773 = vld [vmem:[#allocation3 + $0x1e0] sm:$0xff]
      %v2774 = vld [vmem:[#allocation3 + $0x1e8] sm:$0xff]
      %v2775 = vld [vmem:[#allocation3 + $0x1f0] sm:$0xff]
      %v2776 = vld [vmem:[#allocation3 + $0x1f8] sm:$0xff]
      %2777 = vst [vmem:[#allocation10] sm:$0xff] %v2713
      %2778 = vst [vmem:[#allocation10 + $0x8] sm:$0xff] %v2714
      %2779 = vst [vmem:[#allocation10 + $0x10] sm:$0xff] %v2715
      %2780 = vst [vmem:[#allocation10 + $0x18] sm:$0xff] %v2716
      %2781 = vst [vmem:[#allocation10 + $0x20] sm:$0xff] %v2717
      %2782 = vst [vmem:[#allocation10 + $0x28] sm:$0xff] %v2718
      %2783 = vst [vmem:[#allocation10 + $0x30] sm:$0xff] %v2719
      %2784 = vst [vmem:[#allocation10 + $0x38] sm:$0xff] %v2720
      %2785 = vst [vmem:[#allocation10 + $0x40] sm:$0xff] %v2721
      %2786 = vst [vmem:[#allocation10 + $0x48] sm:$0xff] %v2722
      %2787 = vst [vmem:[#allocation10 + $0x50] sm:$0xff] %v2723
      %2788 = vst [vmem:[#allocation10 + $0x58] sm:$0xff] %v2724
      %2789 = vst [vmem:[#allocation10 + $0x60] sm:$0xff] %v2725
      %2790 = vst [vmem:[#allocation10 + $0x68] sm:$0xff] %v2726
      %2791 = vst [vmem:[#allocation10 + $0x70] sm:$0xff] %v2727
      %2792 = vst [vmem:[#allocation10 + $0x78] sm:$0xff] %v2728
      %2793 = vst [vmem:[#allocation10 + $0x80] sm:$0xff] %v2729
      %2794 = vst [vmem:[#allocation10 + $0x88] sm:$0xff] %v2730
      %2795 = vst [vmem:[#allocation10 + $0x90] sm:$0xff] %v2731
      %2796 = vst [vmem:[#allocation10 + $0x98] sm:$0xff] %v2732
      %2797 = vst [vmem:[#allocation10 + $0xa0] sm:$0xff] %v2733
      %2798 = vst [vmem:[#allocation10 + $0xa8] sm:$0xff] %v2734
      %2799 = vst [vmem:[#allocation10 + $0xb0] sm:$0xff] %v2735
      %2800 = vst [vmem:[#allocation10 + $0xb8] sm:$0xff] %v2736
      %2801 = vst [vmem:[#allocation10 + $0xc0] sm:$0xff] %v2737
      %2802 = vst [vmem:[#allocation10 + $0xc8] sm:$0xff] %v2738
      %2803 = vst [vmem:[#allocation10 + $0xd0] sm:$0xff] %v2739
      %2804 = vst [vmem:[#allocation10 + $0xd8] sm:$0xff] %v2740
      %2805 = vst [vmem:[#allocation10 + $0xe0] sm:$0xff] %v2741
      %2806 = vst [vmem:[#allocation10 + $0xe8] sm:$0xff] %v2742
      %2807 = vst [vmem:[#allocation10 + $0xf0] sm:$0xff] %v2743
      %2808 = vst [vmem:[#allocation10 + $0xf8] sm:$0xff] %v2744
      %2809 = vst [vmem:[#allocation10 + $0x100] sm:$0xff] %v2745
      %2810 = vst [vmem:[#allocation10 + $0x108] sm:$0xff] %v2746
      %2811 = vst [vmem:[#allocation10 + $0x110] sm:$0xff] %v2747
      %2812 = vst [vmem:[#allocation10 + $0x118] sm:$0xff] %v2748
      %2813 = vst [vmem:[#allocation10 + $0x120] sm:$0xff] %v2749
      %2814 = vst [vmem:[#allocation10 + $0x128] sm:$0xff] %v2750
      %2815 = vst [vmem:[#allocation10 + $0x130] sm:$0xff] %v2751
      %2816 = vst [vmem:[#allocation10 + $0x138] sm:$0xff] %v2752
      %2817 = vst [vmem:[#allocation10 + $0x140] sm:$0xff] %v2753
      %2818 = vst [vmem:[#allocation10 + $0x148] sm:$0xff] %v2754
      %2819 = vst [vmem:[#allocation10 + $0x150] sm:$0xff] %v2755
      %2820 = vst [vmem:[#allocation10 + $0x158] sm:$0xff] %v2756
      %2821 = vst [vmem:[#allocation10 + $0x160] sm:$0xff] %v2757
      %2822 = vst [vmem:[#allocation10 + $0x168] sm:$0xff] %v2758
      %2823 = vst [vmem:[#allocation10 + $0x170] sm:$0xff] %v2759
      %2824 = vst [vmem:[#allocation10 + $0x178] sm:$0xff] %v2760
      %2825 = vst [vmem:[#allocation10 + $0x180] sm:$0xff] %v2761
      %2826 = vst [vmem:[#allocation10 + $0x188] sm:$0xff] %v2762
      %2827 = vst [vmem:[#allocation10 + $0x190] sm:$0xff] %v2763
      %2828 = vst [vmem:[#allocation10 + $0x198] sm:$0xff] %v2764
      %2829 = vst [vmem:[#allocation10 + $0x1a0] sm:$0xff] %v2765
      %2830 = vst [vmem:[#allocation10 + $0x1a8] sm:$0xff] %v2766
      %2831 = vst [vmem:[#allocation10 + $0x1b0] sm:$0xff] %v2767
      %2832 = vst [vmem:[#allocation10 + $0x1b8] sm:$0xff] %v2768
      %2833 = vst [vmem:[#allocation10 + $0x1c0] sm:$0xff] %v2769
      %2834 = vst [vmem:[#allocation10 + $0x1c8] sm:$0xff] %v2770
      %2835 = vst [vmem:[#allocation10 + $0x1d0] sm:$0xff] %v2771
      %2836 = vst [vmem:[#allocation10 + $0x1d8] sm:$0xff] %v2772
      %2837 = vst [vmem:[#allocation10 + $0x1e0] sm:$0xff] %v2773
      %2838 = vst [vmem:[#allocation10 + $0x1e8] sm:$0xff] %v2774
      %2839 = vst [vmem:[#allocation10 + $0x1f0] sm:$0xff] %v2775
      %2840 = vst [vmem:[#allocation10 + $0x1f8] sm:$0xff] %v2776
    $region34: #{tpu_custom_call.1} parent=1 // pred_fallthru
      _
    // Predicated region
    $region35: #{tpu_custom_call.1} parent=1 // pred_check
      _
    $region36: #{tpu_custom_call.1} parent=1 // pred_check_branch
      %2842 = sbr.rel (0) target = $region38
    $region37: #{tpu_custom_call.1} parent=1 // pred_region
      %2844 = vsyncadd [#allocation7], 0
      %s2845 = sshll.u32 [#allocation10], 4
      %s2846 = int_to_ptr.vmem [resolvable:$true] %s2845
      %s2847 = sshll.u32 %s3, 4
      %s2848 = int_to_ptr.hbm [resolvable:$true] %s2847
      %2853 = dma.vmem_to_hbm [thread:$0]  %s2846, 8192, %s2848, [#allocation7], 128, 128, 8
    $region38: #{tpu_custom_call.1} parent=1 // pred_fallthru
      _
    // Predicated region
    $region39: #{tpu_custom_call.1} parent=1 // pred_check
      _
    $region40: #{tpu_custom_call.1} parent=1 // pred_check_branch
      %2855 = sbr.rel (0) target = $region42
    $region41: #{tpu_custom_call.1} parent=1 // pred_region
      %2857 = dma.done [#allocation7], 8192
    $region42: #{tpu_custom_call.1} parent=1 // pred_fallthru
      _
    %2858 = vsyncpa [#allocation6], 1
    %2859 = vsyncpa [#allocation9], 1
    %2860 = vsyncpa [#allocation7], 1

</llo_original>
